<compile_context>
chip_gen: v7x
topology: tpu7x:2x2x1
jax: 0.10.0
libtpu: 0.0.40
codegen_flags: <defaults>
</compile_context>

<pallas_src>
import functools

import jax
import jax.numpy as jnp
from jax.experimental import pallas as pl
from jax.experimental.pallas import tpu as pltpu

KW = 4                              # kernel size
PADW = 2                            # int(np.ceil((4 - 1) / 2))
_VMEM_LIMIT = 48 * 1024 * 1024      # < v7x 64 MiB physical; >> tile working sets used here


def _round_up(x, m):
    return (x + m - 1) // m * m


def _pick_row_tile(m, tm_max):
    """Row tile: multiple of 16 (safe sublane granularity for bf16), <= tm_max."""
    m16 = (m // 16) * 16
    if m16 == 0:
        return m                    # tiny array: single full-extent block
    return min(tm_max, m16)


# -----------------------------------------------------------------------------
# Pallas kernels
# -----------------------------------------------------------------------------
def _matmul_bias_act_kernel(x_ref, w_ref, b_ref, o_ref, *, negative_slope):
    """(tm, K) @ (K, tn) bf16 on the MXU, f32 accumulate, + bias (+ LeakyReLU)."""
    acc = jnp.dot(x_ref[...], w_ref[...], preferred_element_type=jnp.float32)
    acc = acc + b_ref[...]                                   # f32 epilogue
    if negative_slope is not None:
        acc = jnp.where(acc >= 0, acc, negative_slope * acc)
    o_ref[...] = acc.astype(o_ref.dtype)


def conv_matmul(patches, w, b, *, negative_slope=None, out_dtype=jnp.bfloat16,
                tm_max=512):
    """Conv as matmul: (M, K) @ (K, Cout) + b with fused activation.

    Returns (M, Coutp) with Coutp = round_up(Cout, 128); the extra (zero) channels
    must be sliced off by the caller (no-op when Cout is already lane-dense).
    """
    M, K = patches.shape
    Cout = w.shape[1]
    Coutp = _round_up(Cout, 128)
    if Coutp != Cout:                                        # lane-dense output channels
        w = jnp.pad(w, ((0, 0), (0, Coutp - Cout)))
        b = jnp.pad(b, (0, Coutp - Cout))

    x = patches.astype(jnp.bfloat16)                         # MXU-native inputs
    w = w.astype(jnp.bfloat16)
    b2 = b.reshape(1, Coutp).astype(jnp.float32)

    tm = _pick_row_tile(M, tm_max)
    tn = 256 if Coutp % 256 == 0 else 128                    # matches 2x256 MXU; divides Coutp
    grid = (pl.cdiv(M, tm), Coutp // tn)

    out_itemsize = jnp.dtype(out_dtype).itemsize
    cost = pl.CostEstimate(
        flops=2 * M * K * Coutp,
        transcendentals=0,
        bytes_accessed=int(M * K * 2 + K * Coutp * 2 + Coutp * 4 + M * Coutp * out_itemsize),
    )

    kernel = functools.partial(_matmul_bias_act_kernel, negative_slope=negative_slope)
    return pl.pallas_call(
        kernel,
        out_shape=jax.ShapeDtypeStruct((M, Coutp), out_dtype),
        grid=grid,
        in_specs=[
            pl.BlockSpec((tm, K), lambda i, j: (i, 0)),      # patch row tile (ragged tail masked)
            pl.BlockSpec((K, tn), lambda i, j: (0, j)),      # weight column tile
            pl.BlockSpec((1, tn), lambda i, j: (0, j)),      # bias tile
        ],
        out_specs=pl.BlockSpec((tm, tn), lambda i, j: (i, j)),
        compiler_params=pltpu.CompilerParams(
            dimension_semantics=("parallel", "parallel"),
            vmem_limit_bytes=_VMEM_LIMIT),
        cost_estimate=cost,
    )(x, w, b2)


def _bn_stats_kernel(x_ref, mom_ref, *, n_rows, tm):
    """Accumulate per-channel sum (row 0) and sum-of-squares (row 1) over M tiles."""
    i = pl.program_id(0)

    @pl.when(i == 0)
    def _():
        mom_ref[...] = jnp.zeros_like(mom_ref)

    x = x_ref[...].astype(jnp.float32)
    row = jax.lax.broadcasted_iota(jnp.int32, x.shape, 0) + i * tm
    x = jnp.where(row < n_rows, x, 0.0)                      # mask ragged tail rows
    s = jnp.sum(x, axis=0, keepdims=True)
    sq = jnp.sum(x * x, axis=0, keepdims=True)
    mom_ref[...] += jnp.concatenate([s, sq], axis=0)


def _bn_apply_kernel(x_ref, scale_ref, shift_ref, o_ref, *, negative_slope):
    y = x_ref[...].astype(jnp.float32) * scale_ref[...] + shift_ref[...]
    y = jnp.where(y >= 0, y, negative_slope * y)
    o_ref[...] = y.astype(o_ref.dtype)


def batchnorm_lrelu(x, gamma, beta, *, eps=1e-5, negative_slope=0.2, tm_max=1024):
    """Training-mode BatchNorm over rows (N*H*W) + affine + LeakyReLU, tiled over M."""
    M, Cp = x.shape
    C = gamma.shape[0]
    if Cp != C:                                              # lane padding from the conv kernel
        gamma = jnp.pad(gamma, (0, Cp - C), constant_values=1.0)
        beta = jnp.pad(beta, (0, Cp - C))
    gamma = gamma.astype(jnp.float32)
    beta = beta.astype(jnp.float32)

    tm = _pick_row_tile(M, tm_max)
    grid = (pl.cdiv(M, tm),)

    # pass 1: per-channel moments, accumulated into a resident (2, Cp) output block
    moments = pl.pallas_call(
        functools.partial(_bn_stats_kernel, n_rows=M, tm=tm),
        out_shape=jax.ShapeDtypeStruct((2, Cp), jnp.float32),
        grid=grid,
        in_specs=[pl.BlockSpec((tm, Cp), lambda i: (i, 0))],
        out_specs=pl.BlockSpec((2, Cp), lambda i: (0, 0)),
        compiler_params=pltpu.CompilerParams(
            dimension_semantics=("arbitrary",),
            vmem_limit_bytes=_VMEM_LIMIT),
    )(x)

    mean = moments[0] / M
    var = moments[1] / M - mean * mean                       # biased (training-mode) variance
    rstd = jax.lax.rsqrt(var + eps)
    scale = (gamma * rstd).reshape(1, Cp)
    shift = (beta - mean * gamma * rstd).reshape(1, Cp)

    # pass 2: normalize + affine + LeakyReLU, parallel over M tiles
    return pl.pallas_call(
        functools.partial(_bn_apply_kernel, negative_slope=negative_slope),
        out_shape=jax.ShapeDtypeStruct((M, Cp), jnp.bfloat16),
        grid=grid,
        in_specs=[pl.BlockSpec((tm, Cp), lambda i: (i, 0)),
                  pl.BlockSpec((1, Cp), lambda i: (0, 0)),
                  pl.BlockSpec((1, Cp), lambda i: (0, 0))],
        out_specs=pl.BlockSpec((tm, Cp), lambda i: (i, 0)),
        compiler_params=pltpu.CompilerParams(
            dimension_semantics=("parallel",),
            vmem_limit_bytes=_VMEM_LIMIT),
    )(x, scale, shift)


# -----------------------------------------------------------------------------
# Glue: im2col, parameter construction, full forward
# -----------------------------------------------------------------------------
def im2col(x, stride):
    """x: (N, H, W, C) -> patches (N*Ho*Wo, KW*KW*C), tap ordering (kh, kw, cin)."""
    # TODO(synk): im2col still materializes a KW*KW-duplicated (bf16) patch slab in
    # HBM; a tap-accumulating kernel reading the padded NHWC activation directly
    # (pl.ANY + manual DMA) would cut input-side HBM traffic ~16x on stride-1 layers.
    N, H, W, C = x.shape
    xp = jnp.pad(x, ((0, 0), (PADW, PADW), (PADW, PADW), (0, 0)))
    Ho = (H + 2 * PADW - KW) // stride + 1
    Wo = (W + 2 * PADW - KW) // stride + 1
    cols = []
    for i in range(KW):
        for j in range(KW):
            cols.append(xp[:, i:i + stride * Ho:stride, j:j + stride * Wo:stride, :])
    patches = jnp.concatenate(cols, axis=-1)
    return patches.reshape(N * Ho * Wo, KW * KW * C), Ho, Wo


def _conv_init(key, cin, cout, use_bias):
    """Deterministic init mimicking PyTorch Conv2d defaults (uniform +/- 1/sqrt(fan_in))."""
    k1, k2 = jax.random.split(key)
    fan_in = cin * KW * KW
    bound = fan_in ** -0.5
    w = jax.random.uniform(k1, (KW, KW, cin, cout), jnp.float32, -bound, bound)
    w = w.reshape(KW * KW * cin, cout)                       # (kh, kw, cin) -> im2col matrix
    if use_bias:
        b = jax.random.uniform(k2, (cout,), jnp.float32, -bound, bound)
    else:
        b = jnp.zeros((cout,), jnp.float32)
    return w, b


def build_discriminator_params(key, input_nc, ndf=64, n_layers=3):
    """norm_layer == BatchNorm2d => use_bias=False for the normalized convs.
    Returns (params, configs): params is an array-only pytree, configs is a static
    tuple of (stride, has_bn, cout) per conv layer."""
    use_bias = False
    specs = [(input_nc, ndf, 2, True, False)]                # (cin, cout, stride, bias, bn)
    nf_mult = 1
    for n in range(1, n_layers):
        nf_mult_prev, nf_mult = nf_mult, min(2 ** n, 8)
        specs.append((ndf * nf_mult_prev, ndf * nf_mult, 2, use_bias, True))
    nf_mult_prev, nf_mult = nf_mult, min(2 ** n_layers, 8)
    specs.append((ndf * nf_mult_prev, ndf * nf_mult, 1, use_bias, True))
    specs.append((ndf * nf_mult, 1, 1, True, False))         # final 1-channel conv, no act

    params, configs = [], []
    for cin, cout, stride, bias, bn in specs:
        key, k = jax.random.split(key)
        w, b = _conv_init(k, cin, cout, bias)
        params.append(dict(
            w=w, b=b,
            gamma=jnp.ones((cout,), jnp.float32) if bn else None,   # BN default weight=1
            beta=jnp.zeros((cout,), jnp.float32) if bn else None,   # BN default bias=0
        ))
        configs.append((stride, bn, cout))
    return params, tuple(configs)


def nlayer_discriminator_forward(x_nchw, params, configs, use_sigmoid=False):
    # NCHW -> NHWC; activations carried in bf16 (matmul inputs), stats/epilogues in f32
    x = jnp.transpose(x_nchw, (0, 2, 3, 1)).astype(jnp.bfloat16)
    N = x.shape[0]
    last = len(configs) - 1
    for li, (p, (stride, has_bn, cout)) in enumerate(zip(params, configs)):
        patches, Ho, Wo = im2col(x, stride)
        if has_bn:
            y = conv_matmul(patches, p["w"], p["b"])                        # conv, no act
            y = batchnorm_lrelu(y, p["gamma"], p["beta"])                   # BN + LeakyReLU
        elif li == last:
            y = conv_matmul(patches, p["w"], p["b"], out_dtype=jnp.float32)  # final conv
        else:
            y = conv_matmul(patches, p["w"], p["b"], negative_slope=0.2)     # conv + LeakyReLU
        y = y[:, :cout]                     # drop lane padding (no-op when cout % 128 == 0)
        x = y.reshape(N, Ho, Wo, cout)
    out = jnp.transpose(x, (0, 3, 1, 2)).astype(jnp.float32)                 # back to NCHW
    if use_sigmoid:
        out = jax.nn.sigmoid(out)
    return out


# -----------------------------------------------------------------------------
if __name__ == "__main__":
    key = jax.random.PRNGKey(0)
    k_params, k_input = jax.random.split(key)

    # small config: input_nc=4, ndf=8, n_layers=3, input (2, 4, 16, 16) NCHW
    input_nc, ndf, n_layers = 4, 8, 3
    params, configs = build_discriminator_params(k_params, input_nc, ndf=ndf,
                                                 n_layers=n_layers)

    x = jax.random.normal(k_input, (2, input_nc, 16, 16), jnp.float32)

    fwd = jax.jit(nlayer_discriminator_forward,
                  static_argnames=("configs", "use_sigmoid"))
    out = jax.block_until_ready(fwd(x, params, configs=configs))

    # 16 -> 9 -> 5 -> 3 (stride 2) -> 4 (stride 1) -> 5 (final), 1 output channel
    assert out.shape == (2, 1, 5, 5), out.shape
    assert out.dtype == jnp.float32
    assert bool(jnp.all(jnp.isfinite(out)))
    print("KERNEL_OK")
</pallas_src>

<mosaic_0001>
module attributes {stable_mosaic.version = 11 : i64} {
  func.func @_matmul_bias_act_kernel(%arg0: i32, %arg1: i32, %arg2: memref<160x64xbf16, #tpu.memory_space<vmem>>, %arg3: memref<64x128xbf16, #tpu.memory_space<vmem>>, %arg4: memref<1x128xf32, #tpu.memory_space<vmem>>, %arg5: memref<160x128xbf16, #tpu.memory_space<vmem>>) attributes {dimension_semantics = [#tpu.dimension_semantics<parallel>, #tpu.dimension_semantics<parallel>], iteration_bounds = array<i64: 2, 1>, scalar_prefetch = 0 : i64, scratch_operands = 0 : i64, tpu.core_type = #tpu.core_type<tc>, window_params = [{transform_indices = @transform_0, window_bounds = array<i64: 160, 64>}, {transform_indices = @transform_1, window_bounds = array<i64: 64, 128>}, {transform_indices = @transform_2, window_bounds = array<i64: 1, 128>}, {transform_indices = @transform_3, window_bounds = array<i64: 160, 128>}]} {
    %c0 = arith.constant 0 : index
    %c0_0 = arith.constant 0 : index
    %0 = vector.load %arg2[%c0, %c0_0] : memref<160x64xbf16, #tpu.memory_space<vmem>>, vector<160x64xbf16>
    %c0_1 = arith.constant 0 : index
    %c0_2 = arith.constant 0 : index
    %1 = vector.load %arg3[%c0_1, %c0_2] : memref<64x128xbf16, #tpu.memory_space<vmem>>, vector<64x128xbf16>
    %cst = arith.constant dense<0.000000e+00> : vector<160x128xf32>
    %2 = tpu.matmul %0, %1, %cst {dimension_numbers = #tpu.dot_dimension_numbers<[1], [0], [0], [1], [0, 0, 1, 1], [], []>} : vector<160x64xbf16>, vector<64x128xbf16>, vector<160x128xf32> -> vector<160x128xf32>
    %c0_3 = arith.constant 0 : index
    %c0_4 = arith.constant 0 : index
    %3 = vector.load %arg4[%c0_3, %c0_4] : memref<1x128xf32, #tpu.memory_space<vmem>>, vector<1x128xf32>
    %4 = vector.broadcast %3 : vector<1x128xf32> to vector<160x128xf32>
    %5 = arith.addf %2, %4 : vector<160x128xf32>
    %cst_5 = arith.constant 0.000000e+00 : f32
    %6 = vector.broadcast %cst_5 : f32 to vector<160x128xf32>
    %7 = arith.cmpf oge, %5, %6 : vector<160x128xf32>
    %cst_6 = arith.constant 2.000000e-01 : f32
    %8 = vector.broadcast %cst_6 : f32 to vector<160x128xf32>
    %9 = arith.mulf %8, %5 : vector<160x128xf32>
    %10 = arith.select %7, %5, %9 : vector<160x128xi1>, vector<160x128xf32>
    %11 = arith.truncf %10 : vector<160x128xf32> to vector<160x128xbf16>
    %c0_7 = arith.constant 0 : index
    %c0_8 = arith.constant 0 : index
    %12 = vector.load %arg5[%c0_7, %c0_8] : memref<160x128xbf16, #tpu.memory_space<vmem>>, vector<160x128xbf16>
    tpu.vector_store %arg5[%c0_7, %c0_8], %11 {strides = array<i32>} : memref<160x128xbf16, #tpu.memory_space<vmem>>, vector<160x128xbf16>,
    return
  }
  func.func @transform_0(%arg0: i32, %arg1: i32) -> (i32, i32) {
    %c0_i32 = arith.constant 0 : i32
    %c0_i32_0 = arith.constant 0 : i32
    return %arg0, %c0_i32 : i32, i32
  }
  func.func @transform_1(%arg0: i32, %arg1: i32) -> (i32, i32) {
    %c0_i32 = arith.constant 0 : i32
    %c0_i32_0 = arith.constant 0 : i32
    return %c0_i32, %arg1 : i32, i32
  }
  func.func @transform_2(%arg0: i32, %arg1: i32) -> (i32, i32) {
    %c0_i32 = arith.constant 0 : i32
    %c0_i32_0 = arith.constant 0 : i32
    return %c0_i32, %arg1 : i32, i32
  }
  func.func @transform_3(%arg0: i32, %arg1: i32) -> (i32, i32) {
    %c0_i32 = arith.constant 0 : i32
    return %arg0, %arg1 : i32, i32
  }
}

module attributes {stable_mosaic.version = 11 : i64} {
  func.func @_bn_stats_kernel(%arg0: i32, %arg1: memref<48x128xbf16, #tpu.memory_space<vmem>>, %arg2: memref<2x128xf32, #tpu.memory_space<vmem>>) attributes {dimension_semantics = [#tpu.dimension_semantics<arbitrary>], iteration_bounds = array<i64: 2>, scalar_prefetch = 0 : i64, scratch_operands = 0 : i64, tpu.core_type = #tpu.core_type<tc>, window_params = [{transform_indices = @transform_0, window_bounds = array<i64: 48, 128>}, {pipeline_mode = #tpu.pipeline_mode<synchronous>, transform_indices = @transform_1, window_bounds = array<i64: 2, 128>}]} {
    %c0_i32 = arith.constant 0 : i32
    %0 = arith.cmpi eq, %arg0, %c0_i32 : i32
    %1 = arith.extui %0 : i1 to i32
    %c0_i32_0 = arith.constant 0 : i32
    %2 = arith.cmpi ne, %1, %c0_i32_0 : i32
    scf.if %2 {
      %cst_8 = arith.constant 0.000000e+00 : f32
      %22 = vector.broadcast %cst_8 : f32 to vector<2x128xf32>
      %c0_9 = arith.constant 0 : index
      %c0_10 = arith.constant 0 : index
      %23 = vector.load %arg2[%c0_9, %c0_10] : memref<2x128xf32, #tpu.memory_space<vmem>>, vector<2x128xf32>
      tpu.vector_store %arg2[%c0_9, %c0_10], %22 {strides = array<i32>} : memref<2x128xf32, #tpu.memory_space<vmem>>, vector<2x128xf32>,
    } else {
    }
    %c0 = arith.constant 0 : index
    %c0_1 = arith.constant 0 : index
    %3 = vector.load %arg1[%c0, %c0_1] : memref<48x128xbf16, #tpu.memory_space<vmem>>, vector<48x128xbf16>
    %4 = arith.extf %3 : vector<48x128xbf16> to vector<48x128xf32>
    %5 = tpu.iota {dimensions = array<i32: 0>} : vector<48x128xi32>
    %c48_i32 = arith.constant 48 : i32
    %6 = arith.muli %arg0, %c48_i32 : i32
    %7 = vector.broadcast %6 : i32 to vector<48x128xi32>
    %8 = arith.addi %5, %7 : vector<48x128xi32>
    %c50_i32 = arith.constant 50 : i32
    %9 = vector.broadcast %c50_i32 : i32 to vector<48x128xi32>
    %10 = arith.cmpi slt, %8, %9 : vector<48x128xi32>
    %cst = arith.constant 0.000000e+00 : f32
    %11 = vector.broadcast %cst : f32 to vector<48x128xf32>
    %12 = arith.select %10, %4, %11 : vector<48x128xi1>, vector<48x128xf32>
    %cst_2 = arith.constant dense<0.000000e+00> : vector<128xf32>
    %13 = vector.multi_reduction <add>, %12, %cst_2 [0] : vector<48x128xf32> to vector<128xf32>
    %14 = vector.shape_cast %13 : vector<128xf32> to vector<1x128xf32>
    %15 = arith.mulf %12, %12 : vector<48x128xf32>
    %cst_3 = arith.constant dense<0.000000e+00> : vector<128xf32>
    %16 = vector.multi_reduction <add>, %15, %cst_3 [0] : vector<48x128xf32> to vector<128xf32>
    %17 = vector.shape_cast %16 : vector<128xf32> to vector<1x128xf32>
    %c0_4 = arith.constant 0 : index
    %c0_5 = arith.constant 0 : index
    %18 = vector.load %arg2[%c0_4, %c0_5] : memref<2x128xf32, #tpu.memory_space<vmem>>, vector<2x128xf32>
    %19 = tpu.concatenate %14, %17 in 0 : vector<1x128xf32>, vector<1x128xf32> -> vector<2x128xf32>
    %20 = arith.addf %18, %19 : vector<2x128xf32>
    %c0_6 = arith.constant 0 : index
    %c0_7 = arith.constant 0 : index
    %21 = vector.load %arg2[%c0_6, %c0_7] : memref<2x128xf32, #tpu.memory_space<vmem>>, vector<2x128xf32>
    tpu.vector_store %arg2[%c0_6, %c0_7], %20 {strides = array<i32>} : memref<2x128xf32, #tpu.memory_space<vmem>>, vector<2x128xf32>,
    return
  }
  func.func @transform_0(%arg0: i32) -> (i32, i32) {
    %c0_i32 = arith.constant 0 : i32
    %c0_i32_0 = arith.constant 0 : i32
    return %arg0, %c0_i32 : i32, i32
  }
  func.func @transform_1(%arg0: i32) -> (i32, i32) {
    %c0_i32 = arith.constant 0 : i32
    %c0_i32_0 = arith.constant 0 : i32
    %c0_i32_1 = arith.constant 0 : i32
    return %c0_i32, %c0_i32_0 : i32, i32
  }
}

module attributes {stable_mosaic.version = 11 : i64} {
  func.func @_matmul_bias_act_kernel(%arg0: i32, %arg1: i32, %arg2: memref<48x128xbf16, #tpu.memory_space<vmem>>, %arg3: memref<128x128xbf16, #tpu.memory_space<vmem>>, %arg4: memref<1x128xf32, #tpu.memory_space<vmem>>, %arg5: memref<48x128xbf16, #tpu.memory_space<vmem>>) attributes {dimension_semantics = [#tpu.dimension_semantics<parallel>, #tpu.dimension_semantics<parallel>], iteration_bounds = array<i64: 2, 1>, scalar_prefetch = 0 : i64, scratch_operands = 0 : i64, tpu.core_type = #tpu.core_type<tc>, window_params = [{transform_indices = @transform_0, window_bounds = array<i64: 48, 128>}, {transform_indices = @transform_1, window_bounds = array<i64: 128, 128>}, {transform_indices = @transform_2, window_bounds = array<i64: 1, 128>}, {transform_indices = @transform_3, window_bounds = array<i64: 48, 128>}]} {
    %c0 = arith.constant 0 : index
    %c0_0 = arith.constant 0 : index
    %0 = vector.load %arg2[%c0, %c0_0] : memref<48x128xbf16, #tpu.memory_space<vmem>>, vector<48x128xbf16>
    %c0_1 = arith.constant 0 : index
    %c0_2 = arith.constant 0 : index
    %1 = vector.load %arg3[%c0_1, %c0_2] : memref<128x128xbf16, #tpu.memory_space<vmem>>, vector<128x128xbf16>
    %cst = arith.constant dense<0.000000e+00> : vector<48x128xf32>
    %2 = tpu.matmul %0, %1, %cst {dimension_numbers = #tpu.dot_dimension_numbers<[1], [0], [0], [1], [0, 0, 1, 1], [], []>} : vector<48x128xbf16>, vector<128x128xbf16>, vector<48x128xf32> -> vector<48x128xf32>
    %c0_3 = arith.constant 0 : index
    %c0_4 = arith.constant 0 : index
    %3 = vector.load %arg4[%c0_3, %c0_4] : memref<1x128xf32, #tpu.memory_space<vmem>>, vector<1x128xf32>
    %4 = vector.broadcast %3 : vector<1x128xf32> to vector<48x128xf32>
    %5 = arith.addf %2, %4 : vector<48x128xf32>
    %6 = arith.truncf %5 : vector<48x128xf32> to vector<48x128xbf16>
    %c0_5 = arith.constant 0 : index
    %c0_6 = arith.constant 0 : index
    %7 = vector.load %arg5[%c0_5, %c0_6] : memref<48x128xbf16, #tpu.memory_space<vmem>>, vector<48x128xbf16>
    tpu.vector_store %arg5[%c0_5, %c0_6], %6 {strides = array<i32>} : memref<48x128xbf16, #tpu.memory_space<vmem>>, vector<48x128xbf16>,
    return
  }
  func.func @transform_0(%arg0: i32, %arg1: i32) -> (i32, i32) {
    %c0_i32 = arith.constant 0 : i32
    %c0_i32_0 = arith.constant 0 : i32
    return %arg0, %c0_i32 : i32, i32
  }
  func.func @transform_1(%arg0: i32, %arg1: i32) -> (i32, i32) {
    %c0_i32 = arith.constant 0 : i32
    %c0_i32_0 = arith.constant 0 : i32
    return %c0_i32, %arg1 : i32, i32
  }
  func.func @transform_2(%arg0: i32, %arg1: i32) -> (i32, i32) {
    %c0_i32 = arith.constant 0 : i32
    %c0_i32_0 = arith.constant 0 : i32
    return %c0_i32, %arg1 : i32, i32
  }
  func.func @transform_3(%arg0: i32, %arg1: i32) -> (i32, i32) {
    %c0_i32 = arith.constant 0 : i32
    return %arg0, %arg1 : i32, i32
  }
}

module attributes {stable_mosaic.version = 11 : i64} {
  func.func @_bn_apply_kernel(%arg0: i32, %arg1: memref<48x128xbf16, #tpu.memory_space<vmem>>, %arg2: memref<1x128xf32, #tpu.memory_space<vmem>>, %arg3: memref<1x128xf32, #tpu.memory_space<vmem>>, %arg4: memref<48x128xbf16, #tpu.memory_space<vmem>>) attributes {dimension_semantics = [#tpu.dimension_semantics<parallel>], iteration_bounds = array<i64: 2>, scalar_prefetch = 0 : i64, scratch_operands = 0 : i64, tpu.core_type = #tpu.core_type<tc>, window_params = [{transform_indices = @transform_0, window_bounds = array<i64: 48, 128>}, {pipeline_mode = #tpu.pipeline_mode<synchronous>, transform_indices = @transform_1, window_bounds = array<i64: 1, 128>}, {pipeline_mode = #tpu.pipeline_mode<synchronous>, transform_indices = @transform_2, window_bounds = array<i64: 1, 128>}, {transform_indices = @transform_3, window_bounds = array<i64: 48, 128>}]} {
    %c0 = arith.constant 0 : index
    %c0_0 = arith.constant 0 : index
    %0 = vector.load %arg1[%c0, %c0_0] : memref<48x128xbf16, #tpu.memory_space<vmem>>, vector<48x128xbf16>
    %1 = arith.extf %0 : vector<48x128xbf16> to vector<48x128xf32>
    %c0_1 = arith.constant 0 : index
    %c0_2 = arith.constant 0 : index
    %2 = vector.load %arg2[%c0_1, %c0_2] : memref<1x128xf32, #tpu.memory_space<vmem>>, vector<1x128xf32>
    %3 = vector.broadcast %2 : vector<1x128xf32> to vector<48x128xf32>
    %4 = arith.mulf %1, %3 : vector<48x128xf32>
    %c0_3 = arith.constant 0 : index
    %c0_4 = arith.constant 0 : index
    %5 = vector.load %arg3[%c0_3, %c0_4] : memref<1x128xf32, #tpu.memory_space<vmem>>, vector<1x128xf32>
    %6 = vector.broadcast %5 : vector<1x128xf32> to vector<48x128xf32>
    %7 = arith.addf %4, %6 : vector<48x128xf32>
    %cst = arith.constant 0.000000e+00 : f32
    %8 = vector.broadcast %cst : f32 to vector<48x128xf32>
    %9 = arith.cmpf oge, %7, %8 : vector<48x128xf32>
    %cst_5 = arith.constant 2.000000e-01 : f32
    %10 = vector.broadcast %cst_5 : f32 to vector<48x128xf32>
    %11 = arith.mulf %10, %7 : vector<48x128xf32>
    %12 = arith.select %9, %7, %11 : vector<48x128xi1>, vector<48x128xf32>
    %13 = arith.truncf %12 : vector<48x128xf32> to vector<48x128xbf16>
    %c0_6 = arith.constant 0 : index
    %c0_7 = arith.constant 0 : index
    %14 = vector.load %arg4[%c0_6, %c0_7] : memref<48x128xbf16, #tpu.memory_space<vmem>>, vector<48x128xbf16>
    tpu.vector_store %arg4[%c0_6, %c0_7], %13 {strides = array<i32>} : memref<48x128xbf16, #tpu.memory_space<vmem>>, vector<48x128xbf16>,
    return
  }
  func.func @transform_0(%arg0: i32) -> (i32, i32) {
    %c0_i32 = arith.constant 0 : i32
    %c0_i32_0 = arith.constant 0 : i32
    return %arg0, %c0_i32 : i32, i32
  }
  func.func @transform_1(%arg0: i32) -> (i32, i32) {
    %c0_i32 = arith.constant 0 : i32
    %c0_i32_0 = arith.constant 0 : i32
    %c0_i32_1 = arith.constant 0 : i32
    return %c0_i32, %c0_i32_0 : i32, i32
  }
  func.func @transform_2(%arg0: i32) -> (i32, i32) {
    %c0_i32 = arith.constant 0 : i32
    %c0_i32_0 = arith.constant 0 : i32
    %c0_i32_1 = arith.constant 0 : i32
    return %c0_i32, %c0_i32_0 : i32, i32
  }
  func.func @transform_3(%arg0: i32) -> (i32, i32) {
    %c0_i32 = arith.constant 0 : i32
    %c0_i32_0 = arith.constant 0 : i32
    return %arg0, %c0_i32 : i32, i32
  }
}

module attributes {stable_mosaic.version = 11 : i64} {
  func.func @_matmul_bias_act_kernel(%arg0: i32, %arg1: i32, %arg2: memref<16x256xbf16, #tpu.memory_space<vmem>>, %arg3: memref<256x128xbf16, #tpu.memory_space<vmem>>, %arg4: memref<1x128xf32, #tpu.memory_space<vmem>>, %arg5: memref<16x128xbf16, #tpu.memory_space<vmem>>) attributes {dimension_semantics = [#tpu.dimension_semantics<parallel>, #tpu.dimension_semantics<parallel>], iteration_bounds = array<i64: 2, 1>, scalar_prefetch = 0 : i64, scratch_operands = 0 : i64, tpu.core_type = #tpu.core_type<tc>, window_params = [{transform_indices = @transform_0, window_bounds = array<i64: 16, 256>}, {transform_indices = @transform_1, window_bounds = array<i64: 256, 128>}, {transform_indices = @transform_2, window_bounds = array<i64: 1, 128>}, {transform_indices = @transform_3, window_bounds = array<i64: 16, 128>}]} {
    %c0 = arith.constant 0 : index
    %c0_0 = arith.constant 0 : index
    %0 = vector.load %arg2[%c0, %c0_0] : memref<16x256xbf16, #tpu.memory_space<vmem>>, vector<16x256xbf16>
    %c0_1 = arith.constant 0 : index
    %c0_2 = arith.constant 0 : index
    %1 = vector.load %arg3[%c0_1, %c0_2] : memref<256x128xbf16, #tpu.memory_space<vmem>>, vector<256x128xbf16>
    %cst = arith.constant dense<0.000000e+00> : vector<16x128xf32>
    %2 = tpu.matmul %0, %1, %cst {dimension_numbers = #tpu.dot_dimension_numbers<[1], [0], [0], [1], [0, 0, 1, 1], [], []>} : vector<16x256xbf16>, vector<256x128xbf16>, vector<16x128xf32> -> vector<16x128xf32>
    %c0_3 = arith.constant 0 : index
    %c0_4 = arith.constant 0 : index
    %3 = vector.load %arg4[%c0_3, %c0_4] : memref<1x128xf32, #tpu.memory_space<vmem>>, vector<1x128xf32>
    %4 = vector.broadcast %3 : vector<1x128xf32> to vector<16x128xf32>
    %5 = arith.addf %2, %4 : vector<16x128xf32>
    %6 = arith.truncf %5 : vector<16x128xf32> to vector<16x128xbf16>
    %c0_5 = arith.constant 0 : index
    %c0_6 = arith.constant 0 : index
    %7 = vector.load %arg5[%c0_5, %c0_6] : memref<16x128xbf16, #tpu.memory_space<vmem>>, vector<16x128xbf16>
    tpu.vector_store %arg5[%c0_5, %c0_6], %6 {strides = array<i32>} : memref<16x128xbf16, #tpu.memory_space<vmem>>, vector<16x128xbf16>,
    return
  }
  func.func @transform_0(%arg0: i32, %arg1: i32) -> (i32, i32) {
    %c0_i32 = arith.constant 0 : i32
    %c0_i32_0 = arith.constant 0 : i32
    return %arg0, %c0_i32 : i32, i32
  }
  func.func @transform_1(%arg0: i32, %arg1: i32) -> (i32, i32) {
    %c0_i32 = arith.constant 0 : i32
    %c0_i32_0 = arith.constant 0 : i32
    return %c0_i32, %arg1 : i32, i32
  }
  func.func @transform_2(%arg0: i32, %arg1: i32) -> (i32, i32) {
    %c0_i32 = arith.constant 0 : i32
    %c0_i32_0 = arith.constant 0 : i32
    return %c0_i32, %arg1 : i32, i32
  }
  func.func @transform_3(%arg0: i32, %arg1: i32) -> (i32, i32) {
    %c0_i32 = arith.constant 0 : i32
    return %arg0, %arg1 : i32, i32
  }
}

module attributes {stable_mosaic.version = 11 : i64} {
  func.func @_bn_stats_kernel(%arg0: i32, %arg1: memref<16x128xbf16, #tpu.memory_space<vmem>>, %arg2: memref<2x128xf32, #tpu.memory_space<vmem>>) attributes {dimension_semantics = [#tpu.dimension_semantics<arbitrary>], iteration_bounds = array<i64: 2>, scalar_prefetch = 0 : i64, scratch_operands = 0 : i64, tpu.core_type = #tpu.core_type<tc>, window_params = [{transform_indices = @transform_0, window_bounds = array<i64: 16, 128>}, {pipeline_mode = #tpu.pipeline_mode<synchronous>, transform_indices = @transform_1, window_bounds = array<i64: 2, 128>}]} {
    %c0_i32 = arith.constant 0 : i32
    %0 = arith.cmpi eq, %arg0, %c0_i32 : i32
    %1 = arith.extui %0 : i1 to i32
    %c0_i32_0 = arith.constant 0 : i32
    %2 = arith.cmpi ne, %1, %c0_i32_0 : i32
    scf.if %2 {
      %cst_8 = arith.constant 0.000000e+00 : f32
      %22 = vector.broadcast %cst_8 : f32 to vector<2x128xf32>
      %c0_9 = arith.constant 0 : index
      %c0_10 = arith.constant 0 : index
      %23 = vector.load %arg2[%c0_9, %c0_10] : memref<2x128xf32, #tpu.memory_space<vmem>>, vector<2x128xf32>
      tpu.vector_store %arg2[%c0_9, %c0_10], %22 {strides = array<i32>} : memref<2x128xf32, #tpu.memory_space<vmem>>, vector<2x128xf32>,
    } else {
    }
    %c0 = arith.constant 0 : index
    %c0_1 = arith.constant 0 : index
    %3 = vector.load %arg1[%c0, %c0_1] : memref<16x128xbf16, #tpu.memory_space<vmem>>, vector<16x128xbf16>
    %4 = arith.extf %3 : vector<16x128xbf16> to vector<16x128xf32>
    %5 = tpu.iota {dimensions = array<i32: 0>} : vector<16x128xi32>
    %c16_i32 = arith.constant 16 : i32
    %6 = arith.muli %arg0, %c16_i32 : i32
    %7 = vector.broadcast %6 : i32 to vector<16x128xi32>
    %8 = arith.addi %5, %7 : vector<16x128xi32>
    %c18_i32 = arith.constant 18 : i32
    %9 = vector.broadcast %c18_i32 : i32 to vector<16x128xi32>
    %10 = arith.cmpi slt, %8, %9 : vector<16x128xi32>
    %cst = arith.constant 0.000000e+00 : f32
    %11 = vector.broadcast %cst : f32 to vector<16x128xf32>
    %12 = arith.select %10, %4, %11 : vector<16x128xi1>, vector<16x128xf32>
    %cst_2 = arith.constant dense<0.000000e+00> : vector<128xf32>
    %13 = vector.multi_reduction <add>, %12, %cst_2 [0] : vector<16x128xf32> to vector<128xf32>
    %14 = vector.shape_cast %13 : vector<128xf32> to vector<1x128xf32>
    %15 = arith.mulf %12, %12 : vector<16x128xf32>
    %cst_3 = arith.constant dense<0.000000e+00> : vector<128xf32>
    %16 = vector.multi_reduction <add>, %15, %cst_3 [0] : vector<16x128xf32> to vector<128xf32>
    %17 = vector.shape_cast %16 : vector<128xf32> to vector<1x128xf32>
    %c0_4 = arith.constant 0 : index
    %c0_5 = arith.constant 0 : index
    %18 = vector.load %arg2[%c0_4, %c0_5] : memref<2x128xf32, #tpu.memory_space<vmem>>, vector<2x128xf32>
    %19 = tpu.concatenate %14, %17 in 0 : vector<1x128xf32>, vector<1x128xf32> -> vector<2x128xf32>
    %20 = arith.addf %18, %19 : vector<2x128xf32>
    %c0_6 = arith.constant 0 : index
    %c0_7 = arith.constant 0 : index
    %21 = vector.load %arg2[%c0_6, %c0_7] : memref<2x128xf32, #tpu.memory_space<vmem>>, vector<2x128xf32>
    tpu.vector_store %arg2[%c0_6, %c0_7], %20 {strides = array<i32>} : memref<2x128xf32, #tpu.memory_space<vmem>>, vector<2x128xf32>,
    return
  }
  func.func @transform_0(%arg0: i32) -> (i32, i32) {
    %c0_i32 = arith.constant 0 : i32
    %c0_i32_0 = arith.constant 0 : i32
    return %arg0, %c0_i32 : i32, i32
  }
  func.func @transform_1(%arg0: i32) -> (i32, i32) {
    %c0_i32 = arith.constant 0 : i32
    %c0_i32_0 = arith.constant 0 : i32
    %c0_i32_1 = arith.constant 0 : i32
    return %c0_i32, %c0_i32_0 : i32, i32
  }
}

module attributes {stable_mosaic.version = 11 : i64} {
  func.func @_bn_apply_kernel(%arg0: i32, %arg1: memref<16x128xbf16, #tpu.memory_space<vmem>>, %arg2: memref<1x128xf32, #tpu.memory_space<vmem>>, %arg3: memref<1x128xf32, #tpu.memory_space<vmem>>, %arg4: memref<16x128xbf16, #tpu.memory_space<vmem>>) attributes {dimension_semantics = [#tpu.dimension_semantics<parallel>], iteration_bounds = array<i64: 2>, scalar_prefetch = 0 : i64, scratch_operands = 0 : i64, tpu.core_type = #tpu.core_type<tc>, window_params = [{transform_indices = @transform_0, window_bounds = array<i64: 16, 128>}, {pipeline_mode = #tpu.pipeline_mode<synchronous>, transform_indices = @transform_1, window_bounds = array<i64: 1, 128>}, {pipeline_mode = #tpu.pipeline_mode<synchronous>, transform_indices = @transform_2, window_bounds = array<i64: 1, 128>}, {transform_indices = @transform_3, window_bounds = array<i64: 16, 128>}]} {
    %c0 = arith.constant 0 : index
    %c0_0 = arith.constant 0 : index
    %0 = vector.load %arg1[%c0, %c0_0] : memref<16x128xbf16, #tpu.memory_space<vmem>>, vector<16x128xbf16>
    %1 = arith.extf %0 : vector<16x128xbf16> to vector<16x128xf32>
    %c0_1 = arith.constant 0 : index
    %c0_2 = arith.constant 0 : index
    %2 = vector.load %arg2[%c0_1, %c0_2] : memref<1x128xf32, #tpu.memory_space<vmem>>, vector<1x128xf32>
    %3 = vector.broadcast %2 : vector<1x128xf32> to vector<16x128xf32>
    %4 = arith.mulf %1, %3 : vector<16x128xf32>
    %c0_3 = arith.constant 0 : index
    %c0_4 = arith.constant 0 : index
    %5 = vector.load %arg3[%c0_3, %c0_4] : memref<1x128xf32, #tpu.memory_space<vmem>>, vector<1x128xf32>
    %6 = vector.broadcast %5 : vector<1x128xf32> to vector<16x128xf32>
    %7 = arith.addf %4, %6 : vector<16x128xf32>
    %cst = arith.constant 0.000000e+00 : f32
    %8 = vector.broadcast %cst : f32 to vector<16x128xf32>
    %9 = arith.cmpf oge, %7, %8 : vector<16x128xf32>
    %cst_5 = arith.constant 2.000000e-01 : f32
    %10 = vector.broadcast %cst_5 : f32 to vector<16x128xf32>
    %11 = arith.mulf %10, %7 : vector<16x128xf32>
    %12 = arith.select %9, %7, %11 : vector<16x128xi1>, vector<16x128xf32>
    %13 = arith.truncf %12 : vector<16x128xf32> to vector<16x128xbf16>
    %c0_6 = arith.constant 0 : index
    %c0_7 = arith.constant 0 : index
    %14 = vector.load %arg4[%c0_6, %c0_7] : memref<16x128xbf16, #tpu.memory_space<vmem>>, vector<16x128xbf16>
    tpu.vector_store %arg4[%c0_6, %c0_7], %13 {strides = array<i32>} : memref<16x128xbf16, #tpu.memory_space<vmem>>, vector<16x128xbf16>,
    return
  }
  func.func @transform_0(%arg0: i32) -> (i32, i32) {
    %c0_i32 = arith.constant 0 : i32
    %c0_i32_0 = arith.constant 0 : i32
    return %arg0, %c0_i32 : i32, i32
  }
  func.func @transform_1(%arg0: i32) -> (i32, i32) {
    %c0_i32 = arith.constant 0 : i32
    %c0_i32_0 = arith.constant 0 : i32
    %c0_i32_1 = arith.constant 0 : i32
    return %c0_i32, %c0_i32_0 : i32, i32
  }
  func.func @transform_2(%arg0: i32) -> (i32, i32) {
    %c0_i32 = arith.constant 0 : i32
    %c0_i32_0 = arith.constant 0 : i32
    %c0_i32_1 = arith.constant 0 : i32
    return %c0_i32, %c0_i32_0 : i32, i32
  }
  func.func @transform_3(%arg0: i32) -> (i32, i32) {
    %c0_i32 = arith.constant 0 : i32
    %c0_i32_0 = arith.constant 0 : i32
    return %arg0, %c0_i32 : i32, i32
  }
}

module attributes {stable_mosaic.version = 11 : i64} {
  func.func @_matmul_bias_act_kernel(%arg0: i32, %arg1: i32, %arg2: memref<32x512xbf16, #tpu.memory_space<vmem>>, %arg3: memref<512x128xbf16, #tpu.memory_space<vmem>>, %arg4: memref<1x128xf32, #tpu.memory_space<vmem>>, %arg5: memref<32x128xbf16, #tpu.memory_space<vmem>>) attributes {dimension_semantics = [#tpu.dimension_semantics<parallel>, #tpu.dimension_semantics<parallel>], iteration_bounds = array<i64: 1, 1>, scalar_prefetch = 0 : i64, scratch_operands = 0 : i64, tpu.core_type = #tpu.core_type<tc>, window_params = [{transform_indices = @transform_0, window_bounds = array<i64: 32, 512>}, {transform_indices = @transform_1, window_bounds = array<i64: 512, 128>}, {transform_indices = @transform_2, window_bounds = array<i64: 1, 128>}, {transform_indices = @transform_3, window_bounds = array<i64: 32, 128>}]} {
    %c0 = arith.constant 0 : index
    %c0_0 = arith.constant 0 : index
    %0 = vector.load %arg2[%c0, %c0_0] : memref<32x512xbf16, #tpu.memory_space<vmem>>, vector<32x512xbf16>
    %c0_1 = arith.constant 0 : index
    %c0_2 = arith.constant 0 : index
    %1 = vector.load %arg3[%c0_1, %c0_2] : memref<512x128xbf16, #tpu.memory_space<vmem>>, vector<512x128xbf16>
    %cst = arith.constant dense<0.000000e+00> : vector<32x128xf32>
    %2 = tpu.matmul %0, %1, %cst {dimension_numbers = #tpu.dot_dimension_numbers<[1], [0], [0], [1], [0, 0, 1, 1], [], []>} : vector<32x512xbf16>, vector<512x128xbf16>, vector<32x128xf32> -> vector<32x128xf32>
    %c0_3 = arith.constant 0 : index
    %c0_4 = arith.constant 0 : index
    %3 = vector.load %arg4[%c0_3, %c0_4] : memref<1x128xf32, #tpu.memory_space<vmem>>, vector<1x128xf32>
    %4 = vector.broadcast %3 : vector<1x128xf32> to vector<32x128xf32>
    %5 = arith.addf %2, %4 : vector<32x128xf32>
    %6 = arith.truncf %5 : vector<32x128xf32> to vector<32x128xbf16>
    %c0_5 = arith.constant 0 : index
    %c0_6 = arith.constant 0 : index
    %7 = vector.load %arg5[%c0_5, %c0_6] : memref<32x128xbf16, #tpu.memory_space<vmem>>, vector<32x128xbf16>
    tpu.vector_store %arg5[%c0_5, %c0_6], %6 {strides = array<i32>} : memref<32x128xbf16, #tpu.memory_space<vmem>>, vector<32x128xbf16>,
    return
  }
  func.func @transform_0(%arg0: i32, %arg1: i32) -> (i32, i32) {
    %c0_i32 = arith.constant 0 : i32
    %c0_i32_0 = arith.constant 0 : i32
    return %arg0, %c0_i32 : i32, i32
  }
  func.func @transform_1(%arg0: i32, %arg1: i32) -> (i32, i32) {
    %c0_i32 = arith.constant 0 : i32
    %c0_i32_0 = arith.constant 0 : i32
    return %c0_i32, %arg1 : i32, i32
  }
  func.func @transform_2(%arg0: i32, %arg1: i32) -> (i32, i32) {
    %c0_i32 = arith.constant 0 : i32
    %c0_i32_0 = arith.constant 0 : i32
    return %c0_i32, %arg1 : i32, i32
  }
  func.func @transform_3(%arg0: i32, %arg1: i32) -> (i32, i32) {
    %c0_i32 = arith.constant 0 : i32
    return %arg0, %arg1 : i32, i32
  }
}

module attributes {stable_mosaic.version = 11 : i64} {
  func.func @_bn_stats_kernel(%arg0: i32, %arg1: memref<32x128xbf16, #tpu.memory_space<vmem>>, %arg2: memref<2x128xf32, #tpu.memory_space<vmem>>) attributes {dimension_semantics = [#tpu.dimension_semantics<arbitrary>], iteration_bounds = array<i64: 1>, scalar_prefetch = 0 : i64, scratch_operands = 0 : i64, tpu.core_type = #tpu.core_type<tc>, window_params = [{transform_indices = @transform_0, window_bounds = array<i64: 32, 128>}, {pipeline_mode = #tpu.pipeline_mode<synchronous>, transform_indices = @transform_1, window_bounds = array<i64: 2, 128>}]} {
    %c0_i32 = arith.constant 0 : i32
    %0 = arith.cmpi eq, %arg0, %c0_i32 : i32
    %1 = arith.extui %0 : i1 to i32
    %c0_i32_0 = arith.constant 0 : i32
    %2 = arith.cmpi ne, %1, %c0_i32_0 : i32
    scf.if %2 {
      %cst_9 = arith.constant 0.000000e+00 : f32
      %22 = vector.broadcast %cst_9 : f32 to vector<2x128xf32>
      %c0_10 = arith.constant 0 : index
      %c0_11 = arith.constant 0 : index
      %23 = vector.load %arg2[%c0_10, %c0_11] : memref<2x128xf32, #tpu.memory_space<vmem>>, vector<2x128xf32>
      tpu.vector_store %arg2[%c0_10, %c0_11], %22 {strides = array<i32>} : memref<2x128xf32, #tpu.memory_space<vmem>>, vector<2x128xf32>,
    } else {
    }
    %c0 = arith.constant 0 : index
    %c0_1 = arith.constant 0 : index
    %3 = vector.load %arg1[%c0, %c0_1] : memref<32x128xbf16, #tpu.memory_space<vmem>>, vector<32x128xbf16>
    %4 = arith.extf %3 : vector<32x128xbf16> to vector<32x128xf32>
    %5 = tpu.iota {dimensions = array<i32: 0>} : vector<32x128xi32>
    %c32_i32 = arith.constant 32 : i32
    %6 = arith.muli %arg0, %c32_i32 : i32
    %7 = vector.broadcast %6 : i32 to vector<32x128xi32>
    %8 = arith.addi %5, %7 : vector<32x128xi32>
    %c32_i32_2 = arith.constant 32 : i32
    %9 = vector.broadcast %c32_i32_2 : i32 to vector<32x128xi32>
    %10 = arith.cmpi slt, %8, %9 : vector<32x128xi32>
    %cst = arith.constant 0.000000e+00 : f32
    %11 = vector.broadcast %cst : f32 to vector<32x128xf32>
    %12 = arith.select %10, %4, %11 : vector<32x128xi1>, vector<32x128xf32>
    %cst_3 = arith.constant dense<0.000000e+00> : vector<128xf32>
    %13 = vector.multi_reduction <add>, %12, %cst_3 [0] : vector<32x128xf32> to vector<128xf32>
    %14 = vector.shape_cast %13 : vector<128xf32> to vector<1x128xf32>
    %15 = arith.mulf %12, %12 : vector<32x128xf32>
    %cst_4 = arith.constant dense<0.000000e+00> : vector<128xf32>
    %16 = vector.multi_reduction <add>, %15, %cst_4 [0] : vector<32x128xf32> to vector<128xf32>
    %17 = vector.shape_cast %16 : vector<128xf32> to vector<1x128xf32>
    %c0_5 = arith.constant 0 : index
    %c0_6 = arith.constant 0 : index
    %18 = vector.load %arg2[%c0_5, %c0_6] : memref<2x128xf32, #tpu.memory_space<vmem>>, vector<2x128xf32>
    %19 = tpu.concatenate %14, %17 in 0 : vector<1x128xf32>, vector<1x128xf32> -> vector<2x128xf32>
    %20 = arith.addf %18, %19 : vector<2x128xf32>
    %c0_7 = arith.constant 0 : index
    %c0_8 = arith.constant 0 : index
    %21 = vector.load %arg2[%c0_7, %c0_8] : memref<2x128xf32, #tpu.memory_space<vmem>>, vector<2x128xf32>
    tpu.vector_store %arg2[%c0_7, %c0_8], %20 {strides = array<i32>} : memref<2x128xf32, #tpu.memory_space<vmem>>, vector<2x128xf32>,
    return
  }
  func.func @transform_0(%arg0: i32) -> (i32, i32) {
    %c0_i32 = arith.constant 0 : i32
    %c0_i32_0 = arith.constant 0 : i32
    return %arg0, %c0_i32 : i32, i32
  }
  func.func @transform_1(%arg0: i32) -> (i32, i32) {
    %c0_i32 = arith.constant 0 : i32
    %c0_i32_0 = arith.constant 0 : i32
    %c0_i32_1 = arith.constant 0 : i32
    return %c0_i32, %c0_i32_0 : i32, i32
  }
}

module attributes {stable_mosaic.version = 11 : i64} {
  func.func @_bn_apply_kernel(%arg0: i32, %arg1: memref<32x128xbf16, #tpu.memory_space<vmem>>, %arg2: memref<1x128xf32, #tpu.memory_space<vmem>>, %arg3: memref<1x128xf32, #tpu.memory_space<vmem>>, %arg4: memref<32x128xbf16, #tpu.memory_space<vmem>>) attributes {dimension_semantics = [#tpu.dimension_semantics<parallel>], iteration_bounds = array<i64: 1>, scalar_prefetch = 0 : i64, scratch_operands = 0 : i64, tpu.core_type = #tpu.core_type<tc>, window_params = [{transform_indices = @transform_0, window_bounds = array<i64: 32, 128>}, {pipeline_mode = #tpu.pipeline_mode<synchronous>, transform_indices = @transform_1, window_bounds = array<i64: 1, 128>}, {pipeline_mode = #tpu.pipeline_mode<synchronous>, transform_indices = @transform_2, window_bounds = array<i64: 1, 128>}, {transform_indices = @transform_3, window_bounds = array<i64: 32, 128>}]} {
    %c0 = arith.constant 0 : index
    %c0_0 = arith.constant 0 : index
    %0 = vector.load %arg1[%c0, %c0_0] : memref<32x128xbf16, #tpu.memory_space<vmem>>, vector<32x128xbf16>
    %1 = arith.extf %0 : vector<32x128xbf16> to vector<32x128xf32>
    %c0_1 = arith.constant 0 : index
    %c0_2 = arith.constant 0 : index
    %2 = vector.load %arg2[%c0_1, %c0_2] : memref<1x128xf32, #tpu.memory_space<vmem>>, vector<1x128xf32>
    %3 = vector.broadcast %2 : vector<1x128xf32> to vector<32x128xf32>
    %4 = arith.mulf %1, %3 : vector<32x128xf32>
    %c0_3 = arith.constant 0 : index
    %c0_4 = arith.constant 0 : index
    %5 = vector.load %arg3[%c0_3, %c0_4] : memref<1x128xf32, #tpu.memory_space<vmem>>, vector<1x128xf32>
    %6 = vector.broadcast %5 : vector<1x128xf32> to vector<32x128xf32>
    %7 = arith.addf %4, %6 : vector<32x128xf32>
    %cst = arith.constant 0.000000e+00 : f32
    %8 = vector.broadcast %cst : f32 to vector<32x128xf32>
    %9 = arith.cmpf oge, %7, %8 : vector<32x128xf32>
    %cst_5 = arith.constant 2.000000e-01 : f32
    %10 = vector.broadcast %cst_5 : f32 to vector<32x128xf32>
    %11 = arith.mulf %10, %7 : vector<32x128xf32>
    %12 = arith.select %9, %7, %11 : vector<32x128xi1>, vector<32x128xf32>
    %13 = arith.truncf %12 : vector<32x128xf32> to vector<32x128xbf16>
    %c0_6 = arith.constant 0 : index
    %c0_7 = arith.constant 0 : index
    %14 = vector.load %arg4[%c0_6, %c0_7] : memref<32x128xbf16, #tpu.memory_space<vmem>>, vector<32x128xbf16>
    tpu.vector_store %arg4[%c0_6, %c0_7], %13 {strides = array<i32>} : memref<32x128xbf16, #tpu.memory_space<vmem>>, vector<32x128xbf16>,
    return
  }
  func.func @transform_0(%arg0: i32) -> (i32, i32) {
    %c0_i32 = arith.constant 0 : i32
    %c0_i32_0 = arith.constant 0 : i32
    return %arg0, %c0_i32 : i32, i32
  }
  func.func @transform_1(%arg0: i32) -> (i32, i32) {
    %c0_i32 = arith.constant 0 : i32
    %c0_i32_0 = arith.constant 0 : i32
    %c0_i32_1 = arith.constant 0 : i32
    return %c0_i32, %c0_i32_0 : i32, i32
  }
  func.func @transform_2(%arg0: i32) -> (i32, i32) {
    %c0_i32 = arith.constant 0 : i32
    %c0_i32_0 = arith.constant 0 : i32
    %c0_i32_1 = arith.constant 0 : i32
    return %c0_i32, %c0_i32_0 : i32, i32
  }
  func.func @transform_3(%arg0: i32) -> (i32, i32) {
    %c0_i32 = arith.constant 0 : i32
    %c0_i32_0 = arith.constant 0 : i32
    return %arg0, %c0_i32 : i32, i32
  }
}

module attributes {stable_mosaic.version = 11 : i64} {
  func.func @_matmul_bias_act_kernel(%arg0: i32, %arg1: i32, %arg2: memref<48x1024xbf16, #tpu.memory_space<vmem>>, %arg3: memref<1024x128xbf16, #tpu.memory_space<vmem>>, %arg4: memref<1x128xf32, #tpu.memory_space<vmem>>, %arg5: memref<48x128xf32, #tpu.memory_space<vmem>>) attributes {dimension_semantics = [#tpu.dimension_semantics<parallel>, #tpu.dimension_semantics<parallel>], iteration_bounds = array<i64: 2, 1>, scalar_prefetch = 0 : i64, scratch_operands = 0 : i64, tpu.core_type = #tpu.core_type<tc>, window_params = [{transform_indices = @transform_0, window_bounds = array<i64: 48, 1024>}, {transform_indices = @transform_1, window_bounds = array<i64: 1024, 128>}, {transform_indices = @transform_2, window_bounds = array<i64: 1, 128>}, {transform_indices = @transform_3, window_bounds = array<i64: 48, 128>}]} {
    %c0 = arith.constant 0 : index
    %c0_0 = arith.constant 0 : index
    %0 = vector.load %arg2[%c0, %c0_0] : memref<48x1024xbf16, #tpu.memory_space<vmem>>, vector<48x1024xbf16>
    %c0_1 = arith.constant 0 : index
    %c0_2 = arith.constant 0 : index
    %1 = vector.load %arg3[%c0_1, %c0_2] : memref<1024x128xbf16, #tpu.memory_space<vmem>>, vector<1024x128xbf16>
    %cst = arith.constant dense<0.000000e+00> : vector<48x128xf32>
    %2 = tpu.matmul %0, %1, %cst {dimension_numbers = #tpu.dot_dimension_numbers<[1], [0], [0], [1], [0, 0, 1, 1], [], []>} : vector<48x1024xbf16>, vector<1024x128xbf16>, vector<48x128xf32> -> vector<48x128xf32>
    %c0_3 = arith.constant 0 : index
    %c0_4 = arith.constant 0 : index
    %3 = vector.load %arg4[%c0_3, %c0_4] : memref<1x128xf32, #tpu.memory_space<vmem>>, vector<1x128xf32>
    %4 = vector.broadcast %3 : vector<1x128xf32> to vector<48x128xf32>
    %5 = arith.addf %2, %4 : vector<48x128xf32>
    %c0_5 = arith.constant 0 : index
    %c0_6 = arith.constant 0 : index
    %6 = vector.load %arg5[%c0_5, %c0_6] : memref<48x128xf32, #tpu.memory_space<vmem>>, vector<48x128xf32>
    tpu.vector_store %arg5[%c0_5, %c0_6], %5 {strides = array<i32>} : memref<48x128xf32, #tpu.memory_space<vmem>>, vector<48x128xf32>,
    return
  }
  func.func @transform_0(%arg0: i32, %arg1: i32) -> (i32, i32) {
    %c0_i32 = arith.constant 0 : i32
    %c0_i32_0 = arith.constant 0 : i32
    return %arg0, %c0_i32 : i32, i32
  }
  func.func @transform_1(%arg0: i32, %arg1: i32) -> (i32, i32) {
    %c0_i32 = arith.constant 0 : i32
    %c0_i32_0 = arith.constant 0 : i32
    return %c0_i32, %arg1 : i32, i32
  }
  func.func @transform_2(%arg0: i32, %arg1: i32) -> (i32, i32) {
    %c0_i32 = arith.constant 0 : i32
    %c0_i32_0 = arith.constant 0 : i32
    return %c0_i32, %arg1 : i32, i32
  }
  func.func @transform_3(%arg0: i32, %arg1: i32) -> (i32, i32) {
    %c0_i32 = arith.constant 0 : i32
    return %arg0, %arg1 : i32, i32
  }
}

</mosaic_0001>

<llo_original>
// kernel: nlayer_discriminator_forward.11
$region0: #{nlayer_discriminator_forward.11}
  #allocation0 [shape = 'u32[]', space=smem, size = 0x4, offset = 0x4, fixed_abs, tag = 'smem constant byte address 0x4 - core index']
  #allocation1 [shape = 'u32[144,128]{1,0:T(1,128)}', space=vmem, size = 0x12000, scoped, tag = 'internal scratch']
  %s0 = inlined_call_operand.vmem [shape: bf16[162,64], index: 0, kind: input, shape index: {}]
  %s1 = inlined_call_operand.vmem [shape: bf16[64,128], index: 1, kind: input, shape index: {}]
  %s2 = inlined_call_operand.vmem [shape: f32[1,128], index: 2, kind: input, shape index: {}]
  %s3 = inlined_call_operand.vmem [shape: bf16[162,128], index: 3, kind: output, shape index: {}]
  %s4 = sld [smem:[#allocation0]]
  $region89: #{nlayer_discriminator_forward.11} parent=0
    _
  %s6 = ssub.s32 1, %s4
  %s7 = scalar_select 0, %s6, %s4
  $region1: #{nlayer_discriminator_forward.11} parent=0
    #allocation2 [shape = 'u8[81920]{0}', space=vmem, size = 0x14000, scoped, tag = 'output window, operand 0']
    loop: start=0, step=1, limit=4
    $region2: #{nlayer_discriminator_forward.11} parent=1 // loop_pre_header
      _
    $region3: #{nlayer_discriminator_forward.11} parent=1 // loop_header
      %s9 = sphi 0, %s13
      %p10 = scmp.ge.s32.totalorder %s9, 4
      %s16 = sphi 0, %s28
      %s17 = sphi 0, %s24
      %s18 = sphi 0, %s16
      %s19 = sphi 0, %s17
      %s20 = sphi 0, %s18
      %s21 = sphi 0, %s19
      %s31 = sphi 0, %s33
      %s34 = sphi 0, %s31
      %s35 = sphi 0, %s34
      %s51 = sphi 0, %s35
      %s57 = sphi 0, %s59
      %s60 = sphi 0, %s57
      %s61 = sphi 0, %s60
      %s77 = sphi 0, %s61
      %s83 = sphi 0, %s85
      %s86 = sphi 0, %s83
      %s87 = sphi 0, %s86
      %s103 = sphi 0, %s87
      %s111 = sphi 0, %s113
      %s114 = sphi 0, %s111
      %s115 = sphi 0, %s114
      %s131 = sphi 0, %s115
    $region4: #{nlayer_discriminator_forward.11} parent=1 // loop_header_branch
      %12 = sbr.rel (%p10) target = $region8
    $region5: #{nlayer_discriminator_forward.11} parent=1 // loop_body
      %s14 = ssub.s32 %s9, 1
      %s15 = ssub.s32 %s9, 2
      %s22 = sadd.s32 1, %s17
      %p23 = scmp.ge.s32.totalorder %s22, 1
      %s24 = scalar_select %p23, 0, %s22
      %s25 = sadd.s32 1, %s16
      %s26 = scalar_select %p23, %s25, %s16
      %p27 = scmp.ge.s32.totalorder %s26, 2
      %s28 = scalar_select %p27, 0, %s26
      %s29 = ssub.s32 %s16, %s28
      %p30 = scmp.eq.s32.totalorder %s29, 0
      %s32 = sadd.s32 %s31, 1
      %s33 = scalar_select %p30, %s31, %s32
      %p36 = pneg %p30
      %p37 = scmp.eq.s32.totalorder %s9, 1
      %p38 = por %p36, %p37
      %p39 = scmp.ne.s32.totalorder %s31, %s34
      %p40 = scmp.eq.s32.totalorder %s9, 0
      %p41 = por %p39, %p40
      %p42 = scmp.ne.s32.totalorder %s31, %s34
      %p43 = scmp.eq.s32.totalorder %s14, 1
      %p44 = por %p42, %p43
      %p45 = scmp.ne.s32.totalorder %s34, %s35
      %p46 = scmp.eq.s32.totalorder %s14, 0
      %p47 = por %p45, %p46
      %p48 = scmp.ne.s32.totalorder %s34, %s35
      %p49 = scmp.eq.s32.totalorder %s15, 1
      %p50 = por %p48, %p49
      %p52 = scmp.ne.s32.totalorder %s35, %s51
      %p53 = scmp.eq.s32.totalorder %s15, 0
      %p54 = por %p52, %p53
      %s55 = ssub.s32 %s17, %s24
      %p56 = scmp.eq.s32.totalorder %s55, 0
      %s58 = sadd.s32 %s57, 1
      %s59 = scalar_select %p56, %s57, %s58
      %p62 = pneg %p56
      %p63 = scmp.eq.s32.totalorder %s9, 1
      %p64 = por %p62, %p63
      %p65 = scmp.ne.s32.totalorder %s57, %s60
      %p66 = scmp.eq.s32.totalorder %s9, 0
      %p67 = por %p65, %p66
      %p68 = scmp.ne.s32.totalorder %s57, %s60
      %p69 = scmp.eq.s32.totalorder %s14, 1
      %p70 = por %p68, %p69
      %p71 = scmp.ne.s32.totalorder %s60, %s61
      %p72 = scmp.eq.s32.totalorder %s14, 0
      %p73 = por %p71, %p72
      %p74 = scmp.ne.s32.totalorder %s60, %s61
      %p75 = scmp.eq.s32.totalorder %s15, 1
      %p76 = por %p74, %p75
      %p78 = scmp.ne.s32.totalorder %s61, %s77
      %p79 = scmp.eq.s32.totalorder %s15, 0
      %p80 = por %p78, %p79
      %s81 = ssub.s32 %s17, %s24
      %p82 = scmp.eq.s32.totalorder %s81, 0
      %s84 = sadd.s32 %s83, 1
      %s85 = scalar_select %p82, %s83, %s84
      %p88 = pneg %p82
      %p89 = scmp.eq.s32.totalorder %s9, 1
      %p90 = por %p88, %p89
      %p91 = scmp.ne.s32.totalorder %s83, %s86
      %p92 = scmp.eq.s32.totalorder %s9, 0
      %p93 = por %p91, %p92
      %p94 = scmp.ne.s32.totalorder %s83, %s86
      %p95 = scmp.eq.s32.totalorder %s14, 1
      %p96 = por %p94, %p95
      %p97 = scmp.ne.s32.totalorder %s86, %s87
      %p98 = scmp.eq.s32.totalorder %s14, 0
      %p99 = por %p97, %p98
      %p100 = scmp.ne.s32.totalorder %s86, %s87
      %p101 = scmp.eq.s32.totalorder %s15, 1
      %p102 = por %p100, %p101
      %p104 = scmp.ne.s32.totalorder %s87, %s103
      %p105 = scmp.eq.s32.totalorder %s15, 0
      %p106 = por %p104, %p105
      %s107 = ssub.s32 %s16, %s28
      %s108 = ssub.s32 %s17, %s24
      %s109 = sor.u32 %s107, %s108
      %p110 = scmp.eq.s32.totalorder %s109, 0
      %s112 = sadd.s32 %s111, 1
      %s113 = scalar_select %p110, %s111, %s112
      %p116 = pneg %p110
      %p117 = scmp.eq.s32.totalorder %s9, 1
      %p118 = por %p116, %p117
      %p119 = scmp.ne.s32.totalorder %s111, %s114
      %p120 = scmp.eq.s32.totalorder %s9, 0
      %p121 = por %p119, %p120
      %p122 = scmp.ne.s32.totalorder %s111, %s114
      %p123 = scmp.eq.s32.totalorder %s14, 1
      %p124 = por %p122, %p123
      %p125 = scmp.ne.s32.totalorder %s114, %s115
      %p126 = scmp.eq.s32.totalorder %s14, 0
      %p127 = por %p125, %p126
      %p128 = scmp.ne.s32.totalorder %s114, %s115
      %p129 = scmp.eq.s32.totalorder %s15, 1
      %p130 = por %p128, %p129
      %p132 = scmp.ne.s32.totalorder %s115, %s131
      %p133 = scmp.eq.s32.totalorder %s15, 0
      %p134 = por %p132, %p133
      %p135 = scmp.le.s32.totalorder 1, %s9
      %p136 = scmp.lt.s32.totalorder %s9, 3
      %p137 = pnand %p135, %p136
      %p138 = pneg %p137
      // Predicated region
      $region9: #{nlayer_discriminator_forward.11} parent=5 // pred_check
        _
      $region10: #{nlayer_discriminator_forward.11} parent=5 // pred_check_branch
        %140 = sbr.rel (%p137) target = $region12
      $region11: #{nlayer_discriminator_forward.11} parent=5 // pred_region
        %s141 = ssub.s32 %s9, 1
        // Predicated region
        $region13: #{nlayer_discriminator_forward.11} parent=11 // pred_check
          %p142 = pneg %p73
        $region14: #{nlayer_discriminator_forward.11} parent=11 // pred_check_branch
          %144 = sbr.rel (%p142) target = $region16
        $region15: #{nlayer_discriminator_forward.11} parent=11 // pred_region
          %p145 = scmp.lt.s32.totalorder %s19, 0
          %s146 = scalar_select %p145, %s19, 0
          %s147 = smul.addr %s146, 4
          %s148 = scalar_lea.vmem %s1, %s147
        $region16: #{nlayer_discriminator_forward.11} parent=11 // pred_fallthru
          _
        // Predicated region
        $region17: #{nlayer_discriminator_forward.11} parent=11 // pred_check
          %p149 = pneg %p99
        $region18: #{nlayer_discriminator_forward.11} parent=11 // pred_check_branch
          %151 = sbr.rel (%p149) target = $region20
        $region19: #{nlayer_discriminator_forward.11} parent=11 // pred_region
          %p152 = scmp.lt.s32.totalorder %s19, 0
          %s153 = scalar_select %p152, %s19, 0
          %s154 = scalar_lea.vmem %s2, %s153
        $region20: #{nlayer_discriminator_forward.11} parent=11 // pred_fallthru
          _
      $region12: #{nlayer_discriminator_forward.11} parent=5 // pred_fallthru
        _
      %p155 = scmp.lt.s32.totalorder %s9, 2
      // Predicated region
      $region21: #{nlayer_discriminator_forward.11} parent=5 // pred_check
        %p156 = pneg %p155
      $region22: #{nlayer_discriminator_forward.11} parent=5 // pred_check_branch
        %158 = sbr.rel (%p156) target = $region24
      $region23: #{nlayer_discriminator_forward.11} parent=5 // pred_region
        // Predicated region
        $region25: #{nlayer_discriminator_forward.11} parent=23 // pred_check
          %p159 = pneg %p41
        $region26: #{nlayer_discriminator_forward.11} parent=23 // pred_check_branch
          %161 = sbr.rel (%p159) target = $region28
        $region27: #{nlayer_discriminator_forward.11} parent=23 // pred_region
          %s162 = smul.u32 20, %s16
          %s163 = ssub.s32 21, %s162
          %p164 = scmp.lt.s32.totalorder %s163, 20
          %s165 = scalar_select %p164, %s163, 20
          %s166 = smul.u32 64, %s165
          %p167 = scmp.lt.s32.totalorder %s162, 20
          %s168 = scalar_select %p167, %s162, 20
          %s169 = smul.addr %s168, 4
          %s170 = scalar_lea.vmem %s0, %s169
          %s171 = smul.u32 20, %s16
          %s172 = ssub.s32 21, %s171
          %p173 = scmp.lt.s32.totalorder %s172, 20
          %s174 = scalar_select %p173, %s172, 20
          %s175 = smul.u32 64, %s174
        $region28: #{nlayer_discriminator_forward.11} parent=23 // pred_fallthru
          _
      $region24: #{nlayer_discriminator_forward.11} parent=5 // pred_fallthru
        _
      %p176 = scmp.le.s32.totalorder 1, %s9
      %p177 = scmp.lt.s32.totalorder %s9, 3
      %p178 = pnand %p176, %p177
      %p179 = pneg %p178
      // Predicated region
      $region29: #{nlayer_discriminator_forward.11} parent=5 // pred_check
        _
      $region30: #{nlayer_discriminator_forward.11} parent=5 // pred_check_branch
        %181 = sbr.rel (%p178) target = $region32
      $region31: #{nlayer_discriminator_forward.11} parent=5 // pred_region
        %s182 = ssub.s32 %s9, 1
        %s183 = smul.u32 20, %s18
        %s184 = ssub.s32 21, %s183
        %p185 = scmp.lt.s32.totalorder %s184, 20
        %s186 = scalar_select %p185, %s184, 20
        %s187 = smul.u32 64, %s186
        %p188 = scmp.lt.s32.totalorder %s183, 20
        %s189 = scalar_select %p188, %s183, 20
        %s190 = smul.addr %s189, 4
        %s191 = scalar_lea.vmem %s0, %s190
        %p192 = pneg %p47
        %p193 = pneg %p44
        %p194 = scmp.lt.s32.totalorder %s19, 0
        %s195 = scalar_select %p194, %s19, 0
        %s196 = smul.addr %s195, 4
        %s197 = scalar_lea.vmem %s1, %s196
        %p198 = pneg %p73
        %p199 = pneg %p70
        %p200 = scmp.lt.s32.totalorder %s19, 0
        %s201 = scalar_select %p200, %s19, 0
        %s202 = scalar_lea.vmem %s2, %s201
        %p203 = pneg %p99
        %p204 = pneg %p96
        %p205 = pneg %p127
        %p206 = pneg %p124
        %s207 = sand.u32 %s114, 1
        %s208 = sand.u32 %s114, 1
        %s209 = smul.addr %s208, 80
        %s210 = scalar_lea.vmem [#allocation2], %s209
        %s211 = smul.u32 20, %s18
        %s212 = ssub.s32 21, %s211
        %p213 = scmp.lt.s32.totalorder %s212, 20
        %s214 = scalar_select %p213, %s212, 20
        %s215 = smul.u32 64, %s214
        %p216 = scmp.lt.s32.totalorder %s211, 20
        %s217 = scalar_select %p216, %s211, 20
        %s218 = smul.addr %s217, 4
        %s219 = scalar_lea.vmem %s0, %s218
        %s220 = smul.u32 20, %s18
        %s221 = ssub.s32 21, %s220
        %p222 = scmp.lt.s32.totalorder %s221, 20
        %s223 = scalar_select %p222, %s221, 20
        %s224 = smul.u32 64, %s223
        %p225 = scmp.lt.s32.totalorder %s19, 0
        %s226 = scalar_select %p225, %s19, 0
        %s227 = smul.addr %s226, 4
        %s228 = scalar_lea.vmem %s1, %s227
        %p229 = scmp.lt.s32.totalorder %s19, 0
        %s230 = scalar_select %p229, %s19, 0
        %s231 = scalar_lea.vmem %s2, %s230
        %s232 = smul.u32 20, %s18
        %s233 = ssub.s32 21, %s232
        %p234 = scmp.lt.s32.totalorder %s233, 20
        %s235 = scalar_select %p234, %s233, 20
        %s236 = smul.u32 64, %s235
        %v238 = vld [vmem:[%s219] sm:$0xf]
        %v239 = vld [vmem:[%s219 + $0x4] sm:$0xf]
        %v240 = vld [vmem:[%s219 + $0x8] sm:$0xf]
        %v241 = vld [vmem:[%s219 + $0xc] sm:$0xf]
        %v242 = vld [vmem:[%s219 + $0x10] sm:$0xf]
        %v243 = vld [vmem:[%s219 + $0x14] sm:$0xf]
        %v244 = vld [vmem:[%s219 + $0x18] sm:$0xf]
        %v245 = vld [vmem:[%s219 + $0x1c] sm:$0xf]
        %v246 = vld [vmem:[%s219 + $0x20] sm:$0xf]
        %v247 = vld [vmem:[%s219 + $0x24] sm:$0xf]
        %v248 = vld [vmem:[%s219 + $0x28] sm:$0xf]
        %v249 = vld [vmem:[%s219 + $0x2c] sm:$0xf]
        %v250 = vld [vmem:[%s219 + $0x30] sm:$0xf]
        %v251 = vld [vmem:[%s219 + $0x34] sm:$0xf]
        %v252 = vld [vmem:[%s219 + $0x38] sm:$0xf]
        %v253 = vld [vmem:[%s219 + $0x3c] sm:$0xf]
        %v254 = vld [vmem:[%s219 + $0x40] sm:$0xf]
        %v255 = vld [vmem:[%s219 + $0x44] sm:$0xf]
        %v256 = vld [vmem:[%s219 + $0x48] sm:$0xf]
        %v257 = vld [vmem:[%s219 + $0x4c] sm:$0xf]
        %v258 = vld [vmem:[%s228] sm:$0xf]
        %v259 = vld [vmem:[%s228 + $0x4] sm:$0xf]
        %v260 = vld [vmem:[%s228 + $0x8] sm:$0xf]
        %v261 = vld [vmem:[%s228 + $0xc] sm:$0xf]
        %v262 = vld [vmem:[%s228 + $0x10] sm:$0xf]
        %v263 = vld [vmem:[%s228 + $0x14] sm:$0xf]
        %v264 = vld [vmem:[%s228 + $0x18] sm:$0xf]
        %v265 = vld [vmem:[%s228 + $0x1c] sm:$0xf]
        %v266 = vld [vmem:[%s231] sm:$0x1]
        %v268 = vlaneseq
        %v269 = vshrl.u32 %v268, 7
        %v270 = vsub.s32 0, %v269
        %v271 = vrot.slane %v266, %v270
        %v293 = vunpack.c.l.b16 %v238
        %v294 = vunpack.c.l.b16 %v239
        %v295 = vunpack.c.l.b16 %v240
        %v296 = vunpack.c.l.b16 %v241
        %v297 = vunpack.c.l.b16 %v242
        %v298 = vunpack.c.l.b16 %v243
        %v299 = vunpack.c.l.b16 %v244
        %v300 = vunpack.c.l.b16 %v245
        %v301 = vunpack.c.l.b16 %v246
        %v302 = vunpack.c.l.b16 %v247
        %v303 = vunpack.c.l.b16 %v248
        %v304 = vunpack.c.l.b16 %v249
        %v305 = vunpack.c.l.b16 %v250
        %v306 = vunpack.c.l.b16 %v251
        %v307 = vunpack.c.l.b16 %v252
        %v308 = vunpack.c.l.b16 %v253
        %v309 = vunpack.c.l.b16 %v254
        %v310 = vunpack.c.l.b16 %v255
        %v311 = vunpack.c.l.b16 %v256
        %v312 = vunpack.c.l.b16 %v257
        %v313 = vpack.c.b16 %v294, %v293
        %v314 = vpack.c.b16 %v296, %v295
        %v315 = vpack.c.b16 %v298, %v297
        %v316 = vpack.c.b16 %v300, %v299
        %v317 = vpack.c.b16 %v302, %v301
        %v318 = vpack.c.b16 %v304, %v303
        %v319 = vpack.c.b16 %v306, %v305
        %v320 = vpack.c.b16 %v308, %v307
        %v321 = vpack.c.b16 %v310, %v309
        %v322 = vpack.c.b16 %v312, %v311
        %v331 = vunpack.c.l.b16 %v258
        %v332 = vunpack.c.l.b16 %v259
        %v333 = vunpack.c.l.b16 %v260
        %v334 = vunpack.c.l.b16 %v261
        %v335 = vunpack.c.l.b16 %v262
        %v336 = vunpack.c.l.b16 %v263
        %v337 = vunpack.c.l.b16 %v264
        %v338 = vunpack.c.l.b16 %v265
        %v339 = vpack.c.b16 %v332, %v331
        %v340 = vpack.c.b16 %v334, %v333
        %v341 = vpack.c.b16 %v336, %v335
        %v342 = vpack.c.b16 %v338, %v337
        %vm347 = vcmask 523264
        %v349 = vsel %vm347, %v313, 0
        %v352 = vsel %vm347, %v314, 0
        %v355 = vsel %vm347, %v315, 0
        %v358 = vsel %vm347, %v316, 0
        %v361 = vsel %vm347, %v317, 0
        %v364 = vsel %vm347, %v318, 0
        %v367 = vsel %vm347, %v319, 0
        %v370 = vsel %vm347, %v320, 0
        %v373 = vsel %vm347, %v321, 0
        %v376 = vsel %vm347, %v322, 0
        %378 = vmatprep.subr.bf16.mxu0 0
        %379 = vmatpush1.bf16.msra.mxu0 %v339
        %380 = vmatprep.subr.bf16.mxu0 0
        %381 = vmatpush1.bf16.msra.mxu0 %v340
        %382 = vmatprep.subr.bf16.mxu0 0
        %383 = vmatpush1.bf16.msra.mxu0 %v341
        %384 = vmatprep.subr.bf16.mxu0 0
        %385 = vmatpush1.bf16.msra.mxu0 %v342
        %386 = vmatprep.subr.bf16.mxu0 0
        %387 = vmatpush1.bf16.msra.mxu0 0
        %388 = vmatprep.subr.bf16.mxu0 0
        %389 = vmatpush1.bf16.msra.mxu0 0
        %390 = vmatprep.subr.bf16.mxu0 0
        %391 = vmatpush1.bf16.msra.mxu0 0
        %392 = vmatprep.subr.bf16.mxu0 0
        %393 = vmatpush1.bf16.msra.mxu0 0
        %394 = vmatprep.subr.bf16.mxu0 0
        %395 = vmatpush1.bf16.msra.mxu0 0
        %396 = vmatprep.subr.bf16.mxu0 0
        %397 = vmatpush1.bf16.msra.mxu0 0
        %398 = vmatprep.subr.bf16.mxu0 0
        %399 = vmatpush1.bf16.msra.mxu0 0
        %400 = vmatprep.subr.bf16.mxu0 0
        %401 = vmatpush1.bf16.msra.mxu0 0
        %402 = vmatprep.subr.bf16.mxu0 0
        %403 = vmatpush1.bf16.msra.mxu0 0
        %404 = vmatprep.subr.bf16.mxu0 0
        %405 = vmatpush1.bf16.msra.mxu0 0
        %406 = vmatprep.subr.bf16.mxu0 0
        %407 = vmatpush1.bf16.msra.mxu0 0
        %408 = vmatprep.subr.bf16.mxu0 0
        %409 = vmatpush1.bf16.msra.mxu0 0
        %410 = vmatprep.mubr.bf16.mxu0 0
        %411 = vmatmul.mubr.bf16.gmra.mrb[0].mxu0 %v349
        %v412 = vpop.f32.mrb[0].mxu0
        %v413 = vadd.f32 %v271, %v412
        %v414 = vpop.f32.mrb[0].mxu0
        %v415 = vpop.f32.mrb[0].mxu0
        %v416 = vadd.f32 %v271, %v415
        %v417 = vpop.f32.mrb[0].mxu0
        %418 = vmatprep.mubr.bf16.mxu0 0
        %419 = vmatmul.mubr.bf16.gmra.mrb[0].mxu0 %v352
        %v420 = vpop.f32.mrb[0].mxu0
        %v421 = vadd.f32 %v271, %v420
        %v422 = vpop.f32.mrb[0].mxu0
        %v423 = vpop.f32.mrb[0].mxu0
        %v424 = vadd.f32 %v271, %v423
        %v425 = vpop.f32.mrb[0].mxu0
        %426 = vmatprep.mubr.bf16.mxu0 0
        %427 = vmatmul.mubr.bf16.gmra.mrb[0].mxu0 %v355
        %v428 = vpop.f32.mrb[0].mxu0
        %v429 = vadd.f32 %v271, %v428
        %v430 = vpop.f32.mrb[0].mxu0
        %v431 = vpop.f32.mrb[0].mxu0
        %v432 = vadd.f32 %v271, %v431
        %v433 = vpop.f32.mrb[0].mxu0
        %434 = vmatprep.mubr.bf16.mxu0 0
        %435 = vmatmul.mubr.bf16.gmra.mrb[0].mxu0 %v358
        %v436 = vpop.f32.mrb[0].mxu0
        %v437 = vadd.f32 %v271, %v436
        %v438 = vpop.f32.mrb[0].mxu0
        %v439 = vpop.f32.mrb[0].mxu0
        %v440 = vadd.f32 %v271, %v439
        %v441 = vpop.f32.mrb[0].mxu0
        %442 = vmatprep.mubr.bf16.mxu0 0
        %443 = vmatmul.mubr.bf16.gmra.mrb[0].mxu0 %v361
        %v444 = vpop.f32.mrb[0].mxu0
        %v445 = vadd.f32 %v271, %v444
        %v446 = vpop.f32.mrb[0].mxu0
        %v447 = vpop.f32.mrb[0].mxu0
        %v448 = vadd.f32 %v271, %v447
        %v449 = vpop.f32.mrb[0].mxu0
        %450 = vmatprep.mubr.bf16.mxu0 0
        %451 = vmatmul.mubr.bf16.gmra.mrb[0].mxu0 %v364
        %v452 = vpop.f32.mrb[0].mxu0
        %v453 = vadd.f32 %v271, %v452
        %v454 = vpop.f32.mrb[0].mxu0
        %v455 = vpop.f32.mrb[0].mxu0
        %v456 = vadd.f32 %v271, %v455
        %v457 = vpop.f32.mrb[0].mxu0
        %458 = vmatprep.mubr.bf16.mxu0 0
        %459 = vmatmul.mubr.bf16.gmra.mrb[0].mxu0 %v367
        %v460 = vpop.f32.mrb[0].mxu0
        %v461 = vadd.f32 %v271, %v460
        %v462 = vpop.f32.mrb[0].mxu0
        %v463 = vpop.f32.mrb[0].mxu0
        %v464 = vadd.f32 %v271, %v463
        %v465 = vpop.f32.mrb[0].mxu0
        %466 = vmatprep.mubr.bf16.mxu0 0
        %467 = vmatmul.mubr.bf16.gmra.mrb[0].mxu0 %v370
        %v468 = vpop.f32.mrb[0].mxu0
        %v469 = vadd.f32 %v271, %v468
        %v470 = vpop.f32.mrb[0].mxu0
        %v471 = vpop.f32.mrb[0].mxu0
        %v472 = vadd.f32 %v271, %v471
        %v473 = vpop.f32.mrb[0].mxu0
        %474 = vmatprep.mubr.bf16.mxu0 0
        %475 = vmatmul.mubr.bf16.gmra.mrb[0].mxu0 %v373
        %v476 = vpop.f32.mrb[0].mxu0
        %v477 = vadd.f32 %v271, %v476
        %v478 = vpop.f32.mrb[0].mxu0
        %v479 = vpop.f32.mrb[0].mxu0
        %v480 = vadd.f32 %v271, %v479
        %v481 = vpop.f32.mrb[0].mxu0
        %482 = vmatprep.mubr.bf16.mxu0 0
        %483 = vmatmul.mubr.bf16.gmra.mrb[0].mxu0 %v376
        %v484 = vpop.f32.mrb[0].mxu0
        %v485 = vadd.f32 %v271, %v484
        %v486 = vpop.f32.mrb[0].mxu0
        %v487 = vpop.f32.mrb[0].mxu0
        %v488 = vadd.f32 %v271, %v487
        %v489 = vpop.f32.mrb[0].mxu0
        %490 = vdwg.mxu0
        %vm491 = vcmp.ge.f32.partialorder %v413, 0.0
        %vm492 = vcmp.ge.f32.partialorder %v416, 0.0
        %vm493 = vcmp.ge.f32.partialorder %v421, 0.0
        %vm494 = vcmp.ge.f32.partialorder %v424, 0.0
        %vm495 = vcmp.ge.f32.partialorder %v429, 0.0
        %vm496 = vcmp.ge.f32.partialorder %v432, 0.0
        %vm497 = vcmp.ge.f32.partialorder %v437, 0.0
        %vm498 = vcmp.ge.f32.partialorder %v440, 0.0
        %vm499 = vcmp.ge.f32.partialorder %v445, 0.0
        %vm500 = vcmp.ge.f32.partialorder %v448, 0.0
        %vm501 = vcmp.ge.f32.partialorder %v453, 0.0
        %vm502 = vcmp.ge.f32.partialorder %v456, 0.0
        %vm503 = vcmp.ge.f32.partialorder %v461, 0.0
        %vm504 = vcmp.ge.f32.partialorder %v464, 0.0
        %vm505 = vcmp.ge.f32.partialorder %v469, 0.0
        %vm506 = vcmp.ge.f32.partialorder %v472, 0.0
        %vm507 = vcmp.ge.f32.partialorder %v477, 0.0
        %vm508 = vcmp.ge.f32.partialorder %v480, 0.0
        %vm509 = vcmp.ge.f32.partialorder %v485, 0.0
        %vm510 = vcmp.ge.f32.partialorder %v488, 0.0
        %v511 = vmul.f32 %v413, 0.2
        %v512 = vmul.f32 %v416, 0.2
        %v513 = vmul.f32 %v421, 0.2
        %v514 = vmul.f32 %v424, 0.2
        %v515 = vmul.f32 %v429, 0.2
        %v516 = vmul.f32 %v432, 0.2
        %v517 = vmul.f32 %v437, 0.2
        %v518 = vmul.f32 %v440, 0.2
        %v519 = vmul.f32 %v445, 0.2
        %v520 = vmul.f32 %v448, 0.2
        %v521 = vmul.f32 %v453, 0.2
        %v522 = vmul.f32 %v456, 0.2
        %v523 = vmul.f32 %v461, 0.2
        %v524 = vmul.f32 %v464, 0.2
        %v525 = vmul.f32 %v469, 0.2
        %v526 = vmul.f32 %v472, 0.2
        %v527 = vmul.f32 %v477, 0.2
        %v528 = vmul.f32 %v480, 0.2
        %v529 = vmul.f32 %v485, 0.2
        %v530 = vmul.f32 %v488, 0.2
        %v531 = vsel %vm491, %v413, %v511
        %v532 = vsel %vm492, %v416, %v512
        %v533 = vsel %vm493, %v421, %v513
        %v534 = vsel %vm494, %v424, %v514
        %v535 = vsel %vm495, %v429, %v515
        %v536 = vsel %vm496, %v432, %v516
        %v537 = vsel %vm497, %v437, %v517
        %v538 = vsel %vm498, %v440, %v518
        %v539 = vsel %vm499, %v445, %v519
        %v540 = vsel %vm500, %v448, %v520
        %v541 = vsel %vm501, %v453, %v521
        %v542 = vsel %vm502, %v456, %v522
        %v543 = vsel %vm503, %v461, %v523
        %v544 = vsel %vm504, %v464, %v524
        %v545 = vsel %vm505, %v469, %v525
        %v546 = vsel %vm506, %v472, %v526
        %v547 = vsel %vm507, %v477, %v527
        %v548 = vsel %vm508, %v480, %v528
        %v549 = vsel %vm509, %v485, %v529
        %v550 = vsel %vm510, %v488, %v530
        %v551 = vpack.c.bf16 %v532, %v531
        %v552 = vpack.c.bf16 %v534, %v533
        %v553 = vpack.c.bf16 %v536, %v535
        %v554 = vpack.c.bf16 %v538, %v537
        %v555 = vpack.c.bf16 %v540, %v539
        %v556 = vpack.c.bf16 %v542, %v541
        %v557 = vpack.c.bf16 %v544, %v543
        %v558 = vpack.c.bf16 %v546, %v545
        %v559 = vpack.c.bf16 %v548, %v547
        %v560 = vpack.c.bf16 %v550, %v549
        %v571 = vunpack.c.l.b16 %v551
        %v572 = vunpack.c.h.b16 %v551
        %v573 = vunpack.c.l.b16 %v552
        %v574 = vunpack.c.h.b16 %v552
        %v575 = vunpack.c.l.b16 %v553
        %v576 = vunpack.c.h.b16 %v553
        %v577 = vunpack.c.l.b16 %v554
        %v578 = vunpack.c.h.b16 %v554
        %v579 = vunpack.c.l.b16 %v555
        %v580 = vunpack.c.h.b16 %v555
        %v581 = vunpack.c.l.b16 %v556
        %v582 = vunpack.c.h.b16 %v556
        %v583 = vunpack.c.l.b16 %v557
        %v584 = vunpack.c.h.b16 %v557
        %v585 = vunpack.c.l.b16 %v558
        %v586 = vunpack.c.h.b16 %v558
        %v587 = vunpack.c.l.b16 %v559
        %v588 = vunpack.c.h.b16 %v559
        %v589 = vunpack.c.l.b16 %v560
        %v590 = vunpack.c.h.b16 %v560
        %v591 = vpack.c.b16 %v571, %v571
        %v592 = vpack.c.b16 %v572, %v572
        %v593 = vpack.c.b16 %v573, %v573
        %v594 = vpack.c.b16 %v574, %v574
        %v595 = vpack.c.b16 %v575, %v575
        %v596 = vpack.c.b16 %v576, %v576
        %v597 = vpack.c.b16 %v577, %v577
        %v598 = vpack.c.b16 %v578, %v578
        %v599 = vpack.c.b16 %v579, %v579
        %v600 = vpack.c.b16 %v580, %v580
        %v601 = vpack.c.b16 %v581, %v581
        %v602 = vpack.c.b16 %v582, %v582
        %v603 = vpack.c.b16 %v583, %v583
        %v604 = vpack.c.b16 %v584, %v584
        %v605 = vpack.c.b16 %v585, %v585
        %v606 = vpack.c.b16 %v586, %v586
        %v607 = vpack.c.b16 %v587, %v587
        %v608 = vpack.c.b16 %v588, %v588
        %v609 = vpack.c.b16 %v589, %v589
        %v610 = vpack.c.b16 %v590, %v590
        %631 = vst [vmem:[%s210] sm:$0xf] %v591
        %632 = vst [vmem:[%s210 + $0x4] sm:$0xf] %v592
        %633 = vst [vmem:[%s210 + $0x8] sm:$0xf] %v593
        %634 = vst [vmem:[%s210 + $0xc] sm:$0xf] %v594
        %635 = vst [vmem:[%s210 + $0x10] sm:$0xf] %v595
        %636 = vst [vmem:[%s210 + $0x14] sm:$0xf] %v596
        %637 = vst [vmem:[%s210 + $0x18] sm:$0xf] %v597
        %638 = vst [vmem:[%s210 + $0x1c] sm:$0xf] %v598
        %639 = vst [vmem:[%s210 + $0x20] sm:$0xf] %v599
        %640 = vst [vmem:[%s210 + $0x24] sm:$0xf] %v600
        %641 = vst [vmem:[%s210 + $0x28] sm:$0xf] %v601
        %642 = vst [vmem:[%s210 + $0x2c] sm:$0xf] %v602
        %643 = vst [vmem:[%s210 + $0x30] sm:$0xf] %v603
        %644 = vst [vmem:[%s210 + $0x34] sm:$0xf] %v604
        %645 = vst [vmem:[%s210 + $0x38] sm:$0xf] %v605
        %646 = vst [vmem:[%s210 + $0x3c] sm:$0xf] %v606
        %647 = vst [vmem:[%s210 + $0x40] sm:$0xf] %v607
        %648 = vst [vmem:[%s210 + $0x44] sm:$0xf] %v608
        %649 = vst [vmem:[%s210 + $0x48] sm:$0xf] %v609
        %650 = vst [vmem:[%s210 + $0x4c] sm:$0xf] %v610
        %s651 = sand.u32 %s114, 1
        %s652 = sand.u32 %s114, 1
        %s653 = smul.addr %s652, 80
        %s654 = scalar_lea.vmem [#allocation2], %s653
        // Predicated region
        $region33: #{nlayer_discriminator_forward.11} parent=31 // pred_check
          %p655 = pneg %p124
        $region34: #{nlayer_discriminator_forward.11} parent=31 // pred_check_branch
          %657 = sbr.rel (%p655) target = $region36
        $region35: #{nlayer_discriminator_forward.11} parent=31 // pred_region
          %s658 = smul.u32 20, %s18
          %s659 = ssub.s32 21, %s658
          %p660 = scmp.lt.s32.totalorder %s659, 20
          %s661 = scalar_select %p660, %s659, 20
          %s662 = smul.u32 64, %s661
          %p663 = scmp.ne.s32.totalorder 0, %s662
          %s664 = sadd.s32 %s19, %s658
          %s665 = smul.addr %s664, 4
          %s666 = scalar_lea.vmem %s3, %s665
          // Predicated region
          $region37: #{nlayer_discriminator_forward.11} parent=35 // pred_check
            %p667 = pneg %p663
          $region38: #{nlayer_discriminator_forward.11} parent=35 // pred_check_branch
            %669 = sbr.rel (%p667) target = $region40
          $region39: #{nlayer_discriminator_forward.11} parent=35 // pred_region
            // Predicated region
            $region41: #{nlayer_discriminator_forward.11} parent=39 // pred_check
              _
            $region42: #{nlayer_discriminator_forward.11} parent=39 // pred_check_branch
              %671 = sbr.rel target = $region44
            $region43: #{nlayer_discriminator_forward.11} parent=39 // pred_region
              // Predicated region
              $region63: #{nlayer_discriminator_forward.11} parent=43 // pred_check
                _
              $region64: #{nlayer_discriminator_forward.11} parent=43 // pred_check_branch
                %759 = sbr.rel (0) target = $region66
              $region65: #{nlayer_discriminator_forward.11} parent=43 // pred_region
                %s761 = sdiv.u32.pop %s661, 20
                %s762 = srem.u32.pop %s661, 20
                // While loop
                $region67: #{nlayer_discriminator_forward.11} parent=65 // loop_pre_header
                  _
                $region68: #{nlayer_discriminator_forward.11} parent=65 // loop_header
                  %s764 = sphi 0, %s766
                  %p765 = scmp.ge.s32.totalorder %s764, %s761
                  %s769 = sphi 0, %s814
                  %s770 = sphi %s654, %s817
                  %s771 = sphi %s666, %s818
                $region69: #{nlayer_discriminator_forward.11} parent=65 // loop_header_branch
                  %768 = sbr.rel (%p765) target = $region73
                $region70: #{nlayer_discriminator_forward.11} parent=65 // loop_body
                  %v772 = vld [vmem:[%s770] sm:$0xf]
                  %773 = vst [vmem:[%s771] sm:$0xf] %v772
                  %v774 = vld [vmem:[%s770 + $0x4] sm:$0xf]
                  %775 = vst [vmem:[%s771 + $0x4] sm:$0xf] %v774
                  %v776 = vld [vmem:[%s770 + $0x8] sm:$0xf]
                  %777 = vst [vmem:[%s771 + $0x8] sm:$0xf] %v776
                  %v778 = vld [vmem:[%s770 + $0xc] sm:$0xf]
                  %779 = vst [vmem:[%s771 + $0xc] sm:$0xf] %v778
                  %v780 = vld [vmem:[%s770 + $0x10] sm:$0xf]
                  %781 = vst [vmem:[%s771 + $0x10] sm:$0xf] %v780
                  %v782 = vld [vmem:[%s770 + $0x14] sm:$0xf]
                  %783 = vst [vmem:[%s771 + $0x14] sm:$0xf] %v782
                  %v784 = vld [vmem:[%s770 + $0x18] sm:$0xf]
                  %785 = vst [vmem:[%s771 + $0x18] sm:$0xf] %v784
                  %v786 = vld [vmem:[%s770 + $0x1c] sm:$0xf]
                  %787 = vst [vmem:[%s771 + $0x1c] sm:$0xf] %v786
                  %v788 = vld [vmem:[%s770 + $0x20] sm:$0xf]
                  %789 = vst [vmem:[%s771 + $0x20] sm:$0xf] %v788
                  %v790 = vld [vmem:[%s770 + $0x24] sm:$0xf]
                  %791 = vst [vmem:[%s771 + $0x24] sm:$0xf] %v790
                  %v792 = vld [vmem:[%s770 + $0x28] sm:$0xf]
                  %793 = vst [vmem:[%s771 + $0x28] sm:$0xf] %v792
                  %v794 = vld [vmem:[%s770 + $0x2c] sm:$0xf]
                  %795 = vst [vmem:[%s771 + $0x2c] sm:$0xf] %v794
                  %v796 = vld [vmem:[%s770 + $0x30] sm:$0xf]
                  %797 = vst [vmem:[%s771 + $0x30] sm:$0xf] %v796
                  %v798 = vld [vmem:[%s770 + $0x34] sm:$0xf]
                  %799 = vst [vmem:[%s771 + $0x34] sm:$0xf] %v798
                  %v800 = vld [vmem:[%s770 + $0x38] sm:$0xf]
                  %801 = vst [vmem:[%s771 + $0x38] sm:$0xf] %v800
                  %v802 = vld [vmem:[%s770 + $0x3c] sm:$0xf]
                  %803 = vst [vmem:[%s771 + $0x3c] sm:$0xf] %v802
                  %v804 = vld [vmem:[%s770 + $0x40] sm:$0xf]
                  %805 = vst [vmem:[%s771 + $0x40] sm:$0xf] %v804
                  %v806 = vld [vmem:[%s770 + $0x44] sm:$0xf]
                  %807 = vst [vmem:[%s771 + $0x44] sm:$0xf] %v806
                  %v808 = vld [vmem:[%s770 + $0x48] sm:$0xf]
                  %809 = vst [vmem:[%s771 + $0x48] sm:$0xf] %v808
                  %v810 = vld [vmem:[%s770 + $0x4c] sm:$0xf]
                  %811 = vst [vmem:[%s771 + $0x4c] sm:$0xf] %v810
                  %s812 = sadd.s32 1, %s769
                  %p813 = scmp.ge.s32.totalorder %s812, %s761
                  %s814 = scalar_select %p813, 0, %s812
                  %s815 = smul.u32 %s814, 80
                  %s816 = smul.u32 %s814, 80
                  %s817 = scalar_lea.vmem %s654, %s815 [#allocation2]
                  %s818 = scalar_lea.vmem %s666, %s816
                $region71: #{nlayer_discriminator_forward.11} parent=65 // loop_footer
                  %s766 = sadd.s32 %s764, 1
                $region72: #{nlayer_discriminator_forward.11} parent=65 // loop_footer_branch
                  %763 = sbr.rel target = $region68
                $region73: #{nlayer_discriminator_forward.11} parent=65 // loop_exit
                  _
                %s819 = sdiv.u32.pop %s661, 20
                %s820 = srem.u32.pop %s661, 20
                %s821 = smul.u32 %s819, 20
                %s822 = smul.u32 4, %s821
                %s823 = scalar_lea.vmem %s654, %s822 [#allocation2]
                %s824 = smul.u32 4, %s821
                %s825 = scalar_lea.vmem %s666, %s824
                // While loop
                $region74: #{nlayer_discriminator_forward.11} parent=65 // loop_pre_header
                  _
                $region75: #{nlayer_discriminator_forward.11} parent=65 // loop_header
                  %s827 = sphi 0, %s829
                  %p828 = scmp.ge.s32.totalorder %s827, %s820
                  %s832 = sphi 0, %s839
                  %s833 = sphi %s823, %s842
                  %s834 = sphi %s825, %s843
                $region76: #{nlayer_discriminator_forward.11} parent=65 // loop_header_branch
                  %831 = sbr.rel (%p828) target = $region80
                $region77: #{nlayer_discriminator_forward.11} parent=65 // loop_body
                  %v835 = vld [vmem:[%s833] sm:$0xf]
                  %836 = vst [vmem:[%s834] sm:$0xf] %v835
                  %s837 = sadd.s32 1, %s832
                  %p838 = scmp.ge.s32.totalorder %s837, %s820
                  %s839 = scalar_select %p838, 0, %s837
                  %s840 = smul.u32 %s839, 4
                  %s841 = smul.u32 %s839, 4
                  %s842 = scalar_lea.vmem %s823, %s840 [#allocation2]
                  %s843 = scalar_lea.vmem %s825, %s841
                $region78: #{nlayer_discriminator_forward.11} parent=65 // loop_footer
                  %s829 = sadd.s32 %s827, 1
                $region79: #{nlayer_discriminator_forward.11} parent=65 // loop_footer_branch
                  %826 = sbr.rel target = $region75
                $region80: #{nlayer_discriminator_forward.11} parent=65 // loop_exit
                  _
              $region66: #{nlayer_discriminator_forward.11} parent=43 // pred_fallthru
                _
            $region44: #{nlayer_discriminator_forward.11} parent=39 // pred_fallthru
              _
            // Predicated region
            $region45: #{nlayer_discriminator_forward.11} parent=39 // pred_check
              _
            $region46: #{nlayer_discriminator_forward.11} parent=39 // pred_check_branch
              %673 = sbr.rel (0) target = $region48
            $region47: #{nlayer_discriminator_forward.11} parent=39 // pred_region
              %s675 = sdiv.u32.pop %s661, 20
              %s676 = srem.u32.pop %s661, 20
              // While loop
              $region49: #{nlayer_discriminator_forward.11} parent=47 // loop_pre_header
                _
              $region50: #{nlayer_discriminator_forward.11} parent=47 // loop_header
                %s678 = sphi 0, %s680
                %p679 = scmp.ge.s32.totalorder %s678, %s675
                %s683 = sphi 0, %s728
                %s684 = sphi %s654, %s731
                %s685 = sphi %s666, %s732
              $region51: #{nlayer_discriminator_forward.11} parent=47 // loop_header_branch
                %682 = sbr.rel (%p679) target = $region55
              $region52: #{nlayer_discriminator_forward.11} parent=47 // loop_body
                %v686 = vld [vmem:[%s684] sm:$0xf]
                %687 = vst [vmem:[%s685] sm:$0xf] %v686
                %v688 = vld [vmem:[%s684 + $0x4] sm:$0xf]
                %689 = vst [vmem:[%s685 + $0x4] sm:$0xf] %v688
                %v690 = vld [vmem:[%s684 + $0x8] sm:$0xf]
                %691 = vst [vmem:[%s685 + $0x8] sm:$0xf] %v690
                %v692 = vld [vmem:[%s684 + $0xc] sm:$0xf]
                %693 = vst [vmem:[%s685 + $0xc] sm:$0xf] %v692
                %v694 = vld [vmem:[%s684 + $0x10] sm:$0xf]
                %695 = vst [vmem:[%s685 + $0x10] sm:$0xf] %v694
                %v696 = vld [vmem:[%s684 + $0x14] sm:$0xf]
                %697 = vst [vmem:[%s685 + $0x14] sm:$0xf] %v696
                %v698 = vld [vmem:[%s684 + $0x18] sm:$0xf]
                %699 = vst [vmem:[%s685 + $0x18] sm:$0xf] %v698
                %v700 = vld [vmem:[%s684 + $0x1c] sm:$0xf]
                %701 = vst [vmem:[%s685 + $0x1c] sm:$0xf] %v700
                %v702 = vld [vmem:[%s684 + $0x20] sm:$0xf]
                %703 = vst [vmem:[%s685 + $0x20] sm:$0xf] %v702
                %v704 = vld [vmem:[%s684 + $0x24] sm:$0xf]
                %705 = vst [vmem:[%s685 + $0x24] sm:$0xf] %v704
                %v706 = vld [vmem:[%s684 + $0x28] sm:$0xf]
                %707 = vst [vmem:[%s685 + $0x28] sm:$0xf] %v706
                %v708 = vld [vmem:[%s684 + $0x2c] sm:$0xf]
                %709 = vst [vmem:[%s685 + $0x2c] sm:$0xf] %v708
                %v710 = vld [vmem:[%s684 + $0x30] sm:$0xf]
                %711 = vst [vmem:[%s685 + $0x30] sm:$0xf] %v710
                %v712 = vld [vmem:[%s684 + $0x34] sm:$0xf]
                %713 = vst [vmem:[%s685 + $0x34] sm:$0xf] %v712
                %v714 = vld [vmem:[%s684 + $0x38] sm:$0xf]
                %715 = vst [vmem:[%s685 + $0x38] sm:$0xf] %v714
                %v716 = vld [vmem:[%s684 + $0x3c] sm:$0xf]
                %717 = vst [vmem:[%s685 + $0x3c] sm:$0xf] %v716
                %v718 = vld [vmem:[%s684 + $0x40] sm:$0xf]
                %719 = vst [vmem:[%s685 + $0x40] sm:$0xf] %v718
                %v720 = vld [vmem:[%s684 + $0x44] sm:$0xf]
                %721 = vst [vmem:[%s685 + $0x44] sm:$0xf] %v720
                %v722 = vld [vmem:[%s684 + $0x48] sm:$0xf]
                %723 = vst [vmem:[%s685 + $0x48] sm:$0xf] %v722
                %v724 = vld [vmem:[%s684 + $0x4c] sm:$0xf]
                %725 = vst [vmem:[%s685 + $0x4c] sm:$0xf] %v724
                %s726 = sadd.s32 1, %s683
                %p727 = scmp.ge.s32.totalorder %s726, %s675
                %s728 = scalar_select %p727, 0, %s726
                %s729 = smul.u32 %s728, 80
                %s730 = smul.u32 %s728, 80
                %s731 = scalar_lea.vmem %s654, %s729 [#allocation2]
                %s732 = scalar_lea.vmem %s666, %s730
              $region53: #{nlayer_discriminator_forward.11} parent=47 // loop_footer
                %s680 = sadd.s32 %s678, 1
              $region54: #{nlayer_discriminator_forward.11} parent=47 // loop_footer_branch
                %677 = sbr.rel target = $region50
              $region55: #{nlayer_discriminator_forward.11} parent=47 // loop_exit
                _
              %s733 = sdiv.u32.pop %s661, 20
              %s734 = srem.u32.pop %s661, 20
              %s735 = smul.u32 %s733, 20
              %s736 = smul.u32 4, %s735
              %s737 = scalar_lea.vmem %s654, %s736 [#allocation2]
              %s738 = smul.u32 4, %s735
              %s739 = scalar_lea.vmem %s666, %s738
              // While loop
              $region56: #{nlayer_discriminator_forward.11} parent=47 // loop_pre_header
                _
              $region57: #{nlayer_discriminator_forward.11} parent=47 // loop_header
                %s741 = sphi 0, %s743
                %p742 = scmp.ge.s32.totalorder %s741, %s734
                %s746 = sphi 0, %s753
                %s747 = sphi %s737, %s756
                %s748 = sphi %s739, %s757
              $region58: #{nlayer_discriminator_forward.11} parent=47 // loop_header_branch
                %745 = sbr.rel (%p742) target = $region62
              $region59: #{nlayer_discriminator_forward.11} parent=47 // loop_body
                %v749 = vld [vmem:[%s747] sm:$0xf]
                %750 = vst [vmem:[%s748] sm:$0xf] %v749
                %s751 = sadd.s32 1, %s746
                %p752 = scmp.ge.s32.totalorder %s751, %s734
                %s753 = scalar_select %p752, 0, %s751
                %s754 = smul.u32 %s753, 4
                %s755 = smul.u32 %s753, 4
                %s756 = scalar_lea.vmem %s737, %s754 [#allocation2]
                %s757 = scalar_lea.vmem %s739, %s755
              $region60: #{nlayer_discriminator_forward.11} parent=47 // loop_footer
                %s743 = sadd.s32 %s741, 1
              $region61: #{nlayer_discriminator_forward.11} parent=47 // loop_footer_branch
                %740 = sbr.rel target = $region57
              $region62: #{nlayer_discriminator_forward.11} parent=47 // loop_exit
                _
            $region48: #{nlayer_discriminator_forward.11} parent=39 // pred_fallthru
              _
          $region40: #{nlayer_discriminator_forward.11} parent=35 // pred_fallthru
            _
          %844 = vnop
        $region36: #{nlayer_discriminator_forward.11} parent=31 // pred_fallthru
          _
      $region32: #{nlayer_discriminator_forward.11} parent=5 // pred_fallthru
        _
      %p845 = scmp.le.s32.totalorder 2, %s9
      // Predicated region
      $region81: #{nlayer_discriminator_forward.11} parent=5 // pred_check
        %p846 = pneg %p845
      $region82: #{nlayer_discriminator_forward.11} parent=5 // pred_check_branch
        %848 = sbr.rel (%p846) target = $region84
      $region83: #{nlayer_discriminator_forward.11} parent=5 // pred_region
        %s849 = ssub.s32 %s9, 2
        // Predicated region
        $region85: #{nlayer_discriminator_forward.11} parent=83 // pred_check
          %p850 = pneg %p130
        $region86: #{nlayer_discriminator_forward.11} parent=83 // pred_check_branch
          %852 = sbr.rel (%p850) target = $region88
        $region87: #{nlayer_discriminator_forward.11} parent=83 // pred_region
          %s853 = sand.u32 %s115, 1
          %s854 = sand.u32 %s115, 1
          %s855 = smul.addr %s854, 80
          %s856 = scalar_lea.vmem [#allocation2], %s855
        $region88: #{nlayer_discriminator_forward.11} parent=83 // pred_fallthru
          _
      $region84: #{nlayer_discriminator_forward.11} parent=5 // pred_fallthru
        _
    $region6: #{nlayer_discriminator_forward.11} parent=1 // loop_footer
      %s13 = sadd.s32 1, %s9
    $region7: #{nlayer_discriminator_forward.11} parent=1 // loop_footer_branch
      %8 = sbr.rel target = $region3
    $region8: #{nlayer_discriminator_forward.11} parent=1 // loop_exit
      _

// kernel: nlayer_discriminator_forward.13
$region0: #{nlayer_discriminator_forward.13}
  #allocation0 [shape = 'u32[]', space=smem, size = 0x4, offset = 0x4, fixed_abs, tag = 'smem constant byte address 0x4 - core index']
  #allocation1 [shape = 'u32[144,128]{1,0:T(1,128)}', space=vmem, size = 0x12000, scoped, tag = 'internal scratch']
  %s0 = inlined_call_operand.vmem [shape: bf16[50,128], index: 0, kind: input, shape index: {}]
  %s1 = inlined_call_operand.vmem [shape: f32[2,128], index: 1, kind: output, shape index: {}]
  %s2 = sld [smem:[#allocation0]]
  $region41: #{nlayer_discriminator_forward.13} parent=0
    _
  %s4 = ssub.s32 1, %s2
  %s5 = scalar_select 0, %s4, %s2
  loop: start=0, step=1, limit=4
  $region2: #{nlayer_discriminator_forward.13} parent=0 // loop_pre_header
    _
  $region3: #{nlayer_discriminator_forward.13} parent=0 // loop_header
    %s7 = sphi 0, %s11
    %p8 = scmp.ge.s32.totalorder %s7, 4
    %s17 = sphi 0, %s19
    %s20 = sphi 0, %s17
    %s21 = sphi 0, %s20
    %s37 = sphi 0, %s21
    %s41 = sphi 0, %s41
    %s43 = sphi 0, %s41
    %s44 = sphi 0, %s43
    %s58 = sphi 0, %s44
  $region4: #{nlayer_discriminator_forward.13} parent=0 // loop_header_branch
    %10 = sbr.rel (%p8) target = $region8
  $region5: #{nlayer_discriminator_forward.13} parent=0 // loop_body
    %s12 = ssub.s32 %s7, 1
    %s13 = ssub.s32 %s7, 2
    %s14 = sadd.s32 %s7, 1
    %s15 = ssub.s32 %s7, %s14
    %p16 = scmp.eq.s32.totalorder %s15, 0
    %s18 = sadd.s32 %s17, 1
    %s19 = scalar_select %p16, %s17, %s18
    %p22 = pneg %p16
    %p23 = scmp.eq.s32.totalorder %s7, 1
    %p24 = por %p22, %p23
    %p25 = scmp.ne.s32.totalorder %s17, %s20
    %p26 = scmp.eq.s32.totalorder %s7, 0
    %p27 = por %p25, %p26
    %p28 = scmp.ne.s32.totalorder %s17, %s20
    %p29 = scmp.eq.s32.totalorder %s12, 1
    %p30 = por %p28, %p29
    %p31 = scmp.ne.s32.totalorder %s20, %s21
    %p32 = scmp.eq.s32.totalorder %s12, 0
    %p33 = por %p31, %p32
    %p34 = scmp.ne.s32.totalorder %s20, %s21
    %p35 = scmp.eq.s32.totalorder %s13, 1
    %p36 = por %p34, %p35
    %p38 = scmp.ne.s32.totalorder %s21, %s37
    %p39 = scmp.eq.s32.totalorder %s13, 0
    %p40 = por %p38, %p39
    %s42 = sadd.s32 %s41, 1
    %p45 = scmp.eq.s32.totalorder %s7, 1
    %p46 = scmp.ne.s32.totalorder %s41, %s43
    %p47 = scmp.eq.s32.totalorder %s7, 0
    %p48 = por %p46, %p47
    %p49 = scmp.ne.s32.totalorder %s41, %s43
    %p50 = scmp.eq.s32.totalorder %s12, 1
    %p51 = por %p49, %p50
    %p52 = scmp.ne.s32.totalorder %s43, %s44
    %p53 = scmp.eq.s32.totalorder %s12, 0
    %p54 = por %p52, %p53
    %p55 = scmp.ne.s32.totalorder %s43, %s44
    %p56 = scmp.eq.s32.totalorder %s13, 1
    %p57 = por %p55, %p56
    %p59 = scmp.ne.s32.totalorder %s44, %s58
    %p60 = scmp.eq.s32.totalorder %s13, 0
    %p61 = por %p59, %p60
    %p62 = scmp.le.s32.totalorder 1, %s7
    %p63 = scmp.lt.s32.totalorder %s7, 3
    %p64 = pnand %p62, %p63
    %p65 = pneg %p64
    // Predicated region
    $region9: #{nlayer_discriminator_forward.13} parent=5 // pred_check
      _
    $region10: #{nlayer_discriminator_forward.13} parent=5 // pred_check_branch
      %67 = sbr.rel (%p64) target = $region12
    $region11: #{nlayer_discriminator_forward.13} parent=5 // pred_region
      %s68 = ssub.s32 %s7, 1
    $region12: #{nlayer_discriminator_forward.13} parent=5 // pred_fallthru
      _
    %p69 = scmp.lt.s32.totalorder %s7, 2
    // Predicated region
    $region13: #{nlayer_discriminator_forward.13} parent=5 // pred_check
      %p70 = pneg %p69
    $region14: #{nlayer_discriminator_forward.13} parent=5 // pred_check_branch
      %72 = sbr.rel (%p70) target = $region16
    $region15: #{nlayer_discriminator_forward.13} parent=5 // pred_region
      // Predicated region
      $region17: #{nlayer_discriminator_forward.13} parent=15 // pred_check
        %p73 = pneg %p27
      $region18: #{nlayer_discriminator_forward.13} parent=15 // pred_check_branch
        %75 = sbr.rel (%p73) target = $region20
      $region19: #{nlayer_discriminator_forward.13} parent=15 // pred_region
        %s76 = smul.u32 6, %s7
        %s77 = ssub.s32 7, %s76
        %p78 = scmp.lt.s32.totalorder %s77, 6
        %s79 = scalar_select %p78, %s77, 6
        %s80 = smul.u32 64, %s79
        %p81 = scmp.lt.s32.totalorder %s76, 6
        %s82 = scalar_select %p81, %s76, 6
        %s83 = smul.addr %s82, 4
        %s84 = scalar_lea.vmem %s0, %s83
        %s85 = smul.u32 6, %s7
        %s86 = ssub.s32 7, %s85
        %p87 = scmp.lt.s32.totalorder %s86, 6
        %s88 = scalar_select %p87, %s86, 6
        %s89 = smul.u32 64, %s88
      $region20: #{nlayer_discriminator_forward.13} parent=15 // pred_fallthru
        _
    $region16: #{nlayer_discriminator_forward.13} parent=5 // pred_fallthru
      _
    %p90 = scmp.le.s32.totalorder 1, %s7
    %p91 = scmp.lt.s32.totalorder %s7, 3
    %p92 = pnand %p90, %p91
    %p93 = pneg %p92
    // Predicated region
    $region21: #{nlayer_discriminator_forward.13} parent=5 // pred_check
      _
    $region22: #{nlayer_discriminator_forward.13} parent=5 // pred_check_branch
      %95 = sbr.rel (%p92) target = $region24
    $region23: #{nlayer_discriminator_forward.13} parent=5 // pred_region
      %s96 = ssub.s32 %s7, 1
      %s97 = smul.u32 6, %s12
      %s98 = ssub.s32 7, %s97
      %p99 = scmp.lt.s32.totalorder %s98, 6
      %s100 = scalar_select %p99, %s98, 6
      %s101 = smul.u32 64, %s100
      %p102 = scmp.lt.s32.totalorder %s97, 6
      %s103 = scalar_select %p102, %s97, 6
      %s104 = smul.addr %s103, 4
      %s105 = scalar_lea.vmem %s0, %s104
      %p106 = pneg %p33
      %p107 = pneg %p30
      %p108 = pneg %p54
      %p109 = pneg %p51
      %s110 = smul.u32 6, %s12
      %s111 = ssub.s32 7, %s110
      %p112 = scmp.lt.s32.totalorder %s111, 6
      %s113 = scalar_select %p112, %s111, 6
      %s114 = smul.u32 64, %s113
      %p115 = scmp.lt.s32.totalorder %s110, 6
      %s116 = scalar_select %p115, %s110, 6
      %s117 = smul.addr %s116, 4
      %s118 = scalar_lea.vmem %s0, %s117
      %s119 = smul.u32 6, %s12
      %s120 = ssub.s32 7, %s119
      %p121 = scmp.lt.s32.totalorder %s120, 6
      %s122 = scalar_select %p121, %s120, 6
      %s123 = smul.u32 64, %s122
      %p124 = scmp.eq.s32.totalorder %s12, 0
      // Predicated region
      $region25: #{nlayer_discriminator_forward.13} parent=23 // pred_check
        %p125 = pneg %p124
      $region26: #{nlayer_discriminator_forward.13} parent=23 // pred_check_branch
        %127 = sbr.rel (%p125) target = $region28
      $region27: #{nlayer_discriminator_forward.13} parent=23 // pred_region
        %128 = vst [vmem:[%s1] sm:$0x3] 0.0
      $region28: #{nlayer_discriminator_forward.13} parent=23 // pred_fallthru
        _
      %v129 = vld [vmem:[%s118] sm:$0xf]
      %v130 = vld [vmem:[%s118 + $0x4] sm:$0xf]
      %v131 = vld [vmem:[%s118 + $0x8] sm:$0xf]
      %v132 = vld [vmem:[%s118 + $0xc] sm:$0xf]
      %v133 = vld [vmem:[%s118 + $0x10] sm:$0xf]
      %v134 = vld [vmem:[%s118 + $0x14] sm:$0xf]
      %v135 = vunpack.c.l.bf16 %v129
      %v136 = vunpack.c.l.bf16 %v130
      %v137 = vunpack.c.l.bf16 %v131
      %v138 = vunpack.c.l.bf16 %v132
      %v139 = vunpack.c.l.bf16 %v133
      %v140 = vunpack.c.l.bf16 %v134
      %v141 = vlaneseq
      %v142 = vshrl.u32 %v141, 7
      %v143 = vadd.s32 %v142, 8
      %v144 = vadd.s32 %v142, 16
      %v145 = vadd.s32 %v142, 24
      %v146 = vadd.s32 %v142, 32
      %v147 = vadd.s32 %v142, 40
      %s148 = smul.u32 %s12, 48
      %v149 = vstv %s148
      %v150 = vadd.s32 %v142, %v149
      %v151 = vadd.s32 %v143, %v149
      %v152 = vadd.s32 %v144, %v149
      %v153 = vadd.s32 %v145, %v149
      %v154 = vadd.s32 %v146, %v149
      %v155 = vadd.s32 %v147, %v149
      %vm156 = vcmp.lt.s32.totalorder %v150, 50
      %vm157 = vcmp.lt.s32.totalorder %v151, 50
      %vm158 = vcmp.lt.s32.totalorder %v152, 50
      %vm159 = vcmp.lt.s32.totalorder %v153, 50
      %vm160 = vcmp.lt.s32.totalorder %v154, 50
      %vm161 = vcmp.lt.s32.totalorder %v155, 50
      %v162 = vsel %vm156, %v135, 0.0
      %v163 = vsel %vm157, %v136, 0.0
      %v164 = vsel %vm158, %v137, 0.0
      %v165 = vsel %vm159, %v138, 0.0
      %v166 = vsel %vm160, %v139, 0.0
      %v167 = vsel %vm161, %v140, 0.0
      %v168 = vadd.f32 %v162, %v163
      %v169 = vadd.f32 %v168, %v164
      %v170 = vadd.f32 %v169, %v165
      %v171 = vadd.f32 %v170, %v166
      %v172 = vadd.f32 %v171, %v167
      %v173 = vrot.slane %v172, 4
      %v174 = vadd.f32 %v172, %v173
      %v175 = vrot.slane %v174, 2
      %v176 = vadd.f32 %v174, %v175
      %v177 = vrot.slane %v176, 1
      %v178 = vadd.f32 %v176, %v177
      %v179 = vmul.f32 %v162, %v162
      %v180 = vmul.f32 %v163, %v163
      %v181 = vmul.f32 %v164, %v164
      %v182 = vmul.f32 %v165, %v165
      %v183 = vmul.f32 %v166, %v166
      %v184 = vmul.f32 %v167, %v167
      %v185 = vadd.f32 %v179, %v180
      %v186 = vadd.f32 %v185, %v181
      %v187 = vadd.f32 %v186, %v182
      %v188 = vadd.f32 %v187, %v183
      %v189 = vadd.f32 %v188, %v184
      %v190 = vrot.slane %v189, 4
      %v191 = vadd.f32 %v189, %v190
      %v192 = vrot.slane %v191, 2
      %v193 = vadd.f32 %v191, %v192
      %v194 = vrot.slane %v193, 1
      %v195 = vadd.f32 %v193, %v194
      %v196 = vld [vmem:[%s1] sm:$0x3]
      %vm197 = vcmask 1040384
      %v198 = vsel %vm197, %v178, %v195
      %v199 = vadd.f32 %v196, %v198
      %200 = vst [vmem:[%s1] sm:$0x3] %v199
      // Predicated region
      $region29: #{nlayer_discriminator_forward.13} parent=23 // pred_check
        %p201 = pneg %p51
      $region30: #{nlayer_discriminator_forward.13} parent=23 // pred_check_branch
        %203 = sbr.rel (%p201) target = $region32
      $region31: #{nlayer_discriminator_forward.13} parent=23 // pred_region
        _
      $region32: #{nlayer_discriminator_forward.13} parent=23 // pred_fallthru
        _
      // Predicated region
      $region33: #{nlayer_discriminator_forward.13} parent=23 // pred_check
        %p204 = pneg %p51
      $region34: #{nlayer_discriminator_forward.13} parent=23 // pred_check_branch
        %206 = sbr.rel (%p204) target = $region36
      $region35: #{nlayer_discriminator_forward.13} parent=23 // pred_region
        _
      $region36: #{nlayer_discriminator_forward.13} parent=23 // pred_fallthru
        _
    $region24: #{nlayer_discriminator_forward.13} parent=5 // pred_fallthru
      _
    %p207 = scmp.le.s32.totalorder 2, %s7
    // Predicated region
    $region37: #{nlayer_discriminator_forward.13} parent=5 // pred_check
      %p208 = pneg %p207
    $region38: #{nlayer_discriminator_forward.13} parent=5 // pred_check_branch
      %210 = sbr.rel (%p208) target = $region40
    $region39: #{nlayer_discriminator_forward.13} parent=5 // pred_region
      %s211 = ssub.s32 %s7, 2
    $region40: #{nlayer_discriminator_forward.13} parent=5 // pred_fallthru
      _
  $region6: #{nlayer_discriminator_forward.13} parent=0 // loop_footer
    %s11 = sadd.s32 1, %s7
  $region7: #{nlayer_discriminator_forward.13} parent=0 // loop_footer_branch
    %6 = sbr.rel target = $region3
  $region8: #{nlayer_discriminator_forward.13} parent=0 // loop_exit
    _

// kernel: nlayer_discriminator_forward.12
$region0: #{nlayer_discriminator_forward.12}
  #allocation0 [shape = 'u32[]', space=smem, size = 0x4, offset = 0x4, fixed_abs, tag = 'smem constant byte address 0x4 - core index']
  #allocation1 [shape = 'u32[144,128]{1,0:T(1,128)}', space=vmem, size = 0x12000, scoped, tag = 'internal scratch']
  %s0 = inlined_call_operand.vmem [shape: bf16[50,128], index: 0, kind: input, shape index: {}]
  %s1 = inlined_call_operand.vmem [shape: bf16[128,128], index: 1, kind: input, shape index: {}]
  %s2 = inlined_call_operand.vmem [shape: f32[1,128], index: 2, kind: input, shape index: {}]
  %s3 = inlined_call_operand.vmem [shape: bf16[50,128], index: 3, kind: output, shape index: {}]
  %s4 = sld [smem:[#allocation0]]
  $region89: #{nlayer_discriminator_forward.12} parent=0
    _
  %s6 = ssub.s32 1, %s4
  %s7 = scalar_select 0, %s6, %s4
  $region1: #{nlayer_discriminator_forward.12} parent=0
    #allocation2 [shape = 'u8[24576]{0}', space=vmem, size = 0x6000, scoped, tag = 'output window, operand 0']
    loop: start=0, step=1, limit=4
    $region2: #{nlayer_discriminator_forward.12} parent=1 // loop_pre_header
      _
    $region3: #{nlayer_discriminator_forward.12} parent=1 // loop_header
      %s9 = sphi 0, %s13
      %p10 = scmp.ge.s32.totalorder %s9, 4
      %s16 = sphi 0, %s28
      %s17 = sphi 0, %s24
      %s18 = sphi 0, %s16
      %s19 = sphi 0, %s17
      %s20 = sphi 0, %s18
      %s21 = sphi 0, %s19
      %s31 = sphi 0, %s33
      %s34 = sphi 0, %s31
      %s35 = sphi 0, %s34
      %s51 = sphi 0, %s35
      %s57 = sphi 0, %s59
      %s60 = sphi 0, %s57
      %s61 = sphi 0, %s60
      %s77 = sphi 0, %s61
      %s83 = sphi 0, %s85
      %s86 = sphi 0, %s83
      %s87 = sphi 0, %s86
      %s103 = sphi 0, %s87
      %s111 = sphi 0, %s113
      %s114 = sphi 0, %s111
      %s115 = sphi 0, %s114
      %s131 = sphi 0, %s115
    $region4: #{nlayer_discriminator_forward.12} parent=1 // loop_header_branch
      %12 = sbr.rel (%p10) target = $region8
    $region5: #{nlayer_discriminator_forward.12} parent=1 // loop_body
      %s14 = ssub.s32 %s9, 1
      %s15 = ssub.s32 %s9, 2
      %s22 = sadd.s32 1, %s17
      %p23 = scmp.ge.s32.totalorder %s22, 1
      %s24 = scalar_select %p23, 0, %s22
      %s25 = sadd.s32 1, %s16
      %s26 = scalar_select %p23, %s25, %s16
      %p27 = scmp.ge.s32.totalorder %s26, 2
      %s28 = scalar_select %p27, 0, %s26
      %s29 = ssub.s32 %s16, %s28
      %p30 = scmp.eq.s32.totalorder %s29, 0
      %s32 = sadd.s32 %s31, 1
      %s33 = scalar_select %p30, %s31, %s32
      %p36 = pneg %p30
      %p37 = scmp.eq.s32.totalorder %s9, 1
      %p38 = por %p36, %p37
      %p39 = scmp.ne.s32.totalorder %s31, %s34
      %p40 = scmp.eq.s32.totalorder %s9, 0
      %p41 = por %p39, %p40
      %p42 = scmp.ne.s32.totalorder %s31, %s34
      %p43 = scmp.eq.s32.totalorder %s14, 1
      %p44 = por %p42, %p43
      %p45 = scmp.ne.s32.totalorder %s34, %s35
      %p46 = scmp.eq.s32.totalorder %s14, 0
      %p47 = por %p45, %p46
      %p48 = scmp.ne.s32.totalorder %s34, %s35
      %p49 = scmp.eq.s32.totalorder %s15, 1
      %p50 = por %p48, %p49
      %p52 = scmp.ne.s32.totalorder %s35, %s51
      %p53 = scmp.eq.s32.totalorder %s15, 0
      %p54 = por %p52, %p53
      %s55 = ssub.s32 %s17, %s24
      %p56 = scmp.eq.s32.totalorder %s55, 0
      %s58 = sadd.s32 %s57, 1
      %s59 = scalar_select %p56, %s57, %s58
      %p62 = pneg %p56
      %p63 = scmp.eq.s32.totalorder %s9, 1
      %p64 = por %p62, %p63
      %p65 = scmp.ne.s32.totalorder %s57, %s60
      %p66 = scmp.eq.s32.totalorder %s9, 0
      %p67 = por %p65, %p66
      %p68 = scmp.ne.s32.totalorder %s57, %s60
      %p69 = scmp.eq.s32.totalorder %s14, 1
      %p70 = por %p68, %p69
      %p71 = scmp.ne.s32.totalorder %s60, %s61
      %p72 = scmp.eq.s32.totalorder %s14, 0
      %p73 = por %p71, %p72
      %p74 = scmp.ne.s32.totalorder %s60, %s61
      %p75 = scmp.eq.s32.totalorder %s15, 1
      %p76 = por %p74, %p75
      %p78 = scmp.ne.s32.totalorder %s61, %s77
      %p79 = scmp.eq.s32.totalorder %s15, 0
      %p80 = por %p78, %p79
      %s81 = ssub.s32 %s17, %s24
      %p82 = scmp.eq.s32.totalorder %s81, 0
      %s84 = sadd.s32 %s83, 1
      %s85 = scalar_select %p82, %s83, %s84
      %p88 = pneg %p82
      %p89 = scmp.eq.s32.totalorder %s9, 1
      %p90 = por %p88, %p89
      %p91 = scmp.ne.s32.totalorder %s83, %s86
      %p92 = scmp.eq.s32.totalorder %s9, 0
      %p93 = por %p91, %p92
      %p94 = scmp.ne.s32.totalorder %s83, %s86
      %p95 = scmp.eq.s32.totalorder %s14, 1
      %p96 = por %p94, %p95
      %p97 = scmp.ne.s32.totalorder %s86, %s87
      %p98 = scmp.eq.s32.totalorder %s14, 0
      %p99 = por %p97, %p98
      %p100 = scmp.ne.s32.totalorder %s86, %s87
      %p101 = scmp.eq.s32.totalorder %s15, 1
      %p102 = por %p100, %p101
      %p104 = scmp.ne.s32.totalorder %s87, %s103
      %p105 = scmp.eq.s32.totalorder %s15, 0
      %p106 = por %p104, %p105
      %s107 = ssub.s32 %s16, %s28
      %s108 = ssub.s32 %s17, %s24
      %s109 = sor.u32 %s107, %s108
      %p110 = scmp.eq.s32.totalorder %s109, 0
      %s112 = sadd.s32 %s111, 1
      %s113 = scalar_select %p110, %s111, %s112
      %p116 = pneg %p110
      %p117 = scmp.eq.s32.totalorder %s9, 1
      %p118 = por %p116, %p117
      %p119 = scmp.ne.s32.totalorder %s111, %s114
      %p120 = scmp.eq.s32.totalorder %s9, 0
      %p121 = por %p119, %p120
      %p122 = scmp.ne.s32.totalorder %s111, %s114
      %p123 = scmp.eq.s32.totalorder %s14, 1
      %p124 = por %p122, %p123
      %p125 = scmp.ne.s32.totalorder %s114, %s115
      %p126 = scmp.eq.s32.totalorder %s14, 0
      %p127 = por %p125, %p126
      %p128 = scmp.ne.s32.totalorder %s114, %s115
      %p129 = scmp.eq.s32.totalorder %s15, 1
      %p130 = por %p128, %p129
      %p132 = scmp.ne.s32.totalorder %s115, %s131
      %p133 = scmp.eq.s32.totalorder %s15, 0
      %p134 = por %p132, %p133
      %p135 = scmp.le.s32.totalorder 1, %s9
      %p136 = scmp.lt.s32.totalorder %s9, 3
      %p137 = pnand %p135, %p136
      %p138 = pneg %p137
      // Predicated region
      $region9: #{nlayer_discriminator_forward.12} parent=5 // pred_check
        _
      $region10: #{nlayer_discriminator_forward.12} parent=5 // pred_check_branch
        %140 = sbr.rel (%p137) target = $region12
      $region11: #{nlayer_discriminator_forward.12} parent=5 // pred_region
        %s141 = ssub.s32 %s9, 1
        // Predicated region
        $region13: #{nlayer_discriminator_forward.12} parent=11 // pred_check
          %p142 = pneg %p73
        $region14: #{nlayer_discriminator_forward.12} parent=11 // pred_check_branch
          %144 = sbr.rel (%p142) target = $region16
        $region15: #{nlayer_discriminator_forward.12} parent=11 // pred_region
          %p145 = scmp.lt.s32.totalorder %s19, 0
          %s146 = scalar_select %p145, %s19, 0
          %s147 = smul.addr %s146, 4
          %s148 = scalar_lea.vmem %s1, %s147
        $region16: #{nlayer_discriminator_forward.12} parent=11 // pred_fallthru
          _
        // Predicated region
        $region17: #{nlayer_discriminator_forward.12} parent=11 // pred_check
          %p149 = pneg %p99
        $region18: #{nlayer_discriminator_forward.12} parent=11 // pred_check_branch
          %151 = sbr.rel (%p149) target = $region20
        $region19: #{nlayer_discriminator_forward.12} parent=11 // pred_region
          %p152 = scmp.lt.s32.totalorder %s19, 0
          %s153 = scalar_select %p152, %s19, 0
          %s154 = scalar_lea.vmem %s2, %s153
        $region20: #{nlayer_discriminator_forward.12} parent=11 // pred_fallthru
          _
      $region12: #{nlayer_discriminator_forward.12} parent=5 // pred_fallthru
        _
      %p155 = scmp.lt.s32.totalorder %s9, 2
      // Predicated region
      $region21: #{nlayer_discriminator_forward.12} parent=5 // pred_check
        %p156 = pneg %p155
      $region22: #{nlayer_discriminator_forward.12} parent=5 // pred_check_branch
        %158 = sbr.rel (%p156) target = $region24
      $region23: #{nlayer_discriminator_forward.12} parent=5 // pred_region
        // Predicated region
        $region25: #{nlayer_discriminator_forward.12} parent=23 // pred_check
          %p159 = pneg %p41
        $region26: #{nlayer_discriminator_forward.12} parent=23 // pred_check_branch
          %161 = sbr.rel (%p159) target = $region28
        $region27: #{nlayer_discriminator_forward.12} parent=23 // pred_region
          %s162 = smul.u32 6, %s16
          %s163 = ssub.s32 7, %s162
          %p164 = scmp.lt.s32.totalorder %s163, 6
          %s165 = scalar_select %p164, %s163, 6
          %s166 = smul.u32 64, %s165
          %p167 = scmp.lt.s32.totalorder %s162, 6
          %s168 = scalar_select %p167, %s162, 6
          %s169 = smul.addr %s168, 4
          %s170 = scalar_lea.vmem %s0, %s169
          %s171 = smul.u32 6, %s16
          %s172 = ssub.s32 7, %s171
          %p173 = scmp.lt.s32.totalorder %s172, 6
          %s174 = scalar_select %p173, %s172, 6
          %s175 = smul.u32 64, %s174
        $region28: #{nlayer_discriminator_forward.12} parent=23 // pred_fallthru
          _
      $region24: #{nlayer_discriminator_forward.12} parent=5 // pred_fallthru
        _
      %p176 = scmp.le.s32.totalorder 1, %s9
      %p177 = scmp.lt.s32.totalorder %s9, 3
      %p178 = pnand %p176, %p177
      %p179 = pneg %p178
      // Predicated region
      $region29: #{nlayer_discriminator_forward.12} parent=5 // pred_check
        _
      $region30: #{nlayer_discriminator_forward.12} parent=5 // pred_check_branch
        %181 = sbr.rel (%p178) target = $region32
      $region31: #{nlayer_discriminator_forward.12} parent=5 // pred_region
        %s182 = ssub.s32 %s9, 1
        %s183 = smul.u32 6, %s18
        %s184 = ssub.s32 7, %s183
        %p185 = scmp.lt.s32.totalorder %s184, 6
        %s186 = scalar_select %p185, %s184, 6
        %s187 = smul.u32 64, %s186
        %p188 = scmp.lt.s32.totalorder %s183, 6
        %s189 = scalar_select %p188, %s183, 6
        %s190 = smul.addr %s189, 4
        %s191 = scalar_lea.vmem %s0, %s190
        %p192 = pneg %p47
        %p193 = pneg %p44
        %p194 = scmp.lt.s32.totalorder %s19, 0
        %s195 = scalar_select %p194, %s19, 0
        %s196 = smul.addr %s195, 4
        %s197 = scalar_lea.vmem %s1, %s196
        %p198 = pneg %p73
        %p199 = pneg %p70
        %p200 = scmp.lt.s32.totalorder %s19, 0
        %s201 = scalar_select %p200, %s19, 0
        %s202 = scalar_lea.vmem %s2, %s201
        %p203 = pneg %p99
        %p204 = pneg %p96
        %p205 = pneg %p127
        %p206 = pneg %p124
        %s207 = sand.u32 %s114, 1
        %s208 = sand.u32 %s114, 1
        %s209 = smul.addr %s208, 24
        %s210 = scalar_lea.vmem [#allocation2], %s209
        %s211 = smul.u32 6, %s18
        %s212 = ssub.s32 7, %s211
        %p213 = scmp.lt.s32.totalorder %s212, 6
        %s214 = scalar_select %p213, %s212, 6
        %s215 = smul.u32 64, %s214
        %p216 = scmp.lt.s32.totalorder %s211, 6
        %s217 = scalar_select %p216, %s211, 6
        %s218 = smul.addr %s217, 4
        %s219 = scalar_lea.vmem %s0, %s218
        %s220 = smul.u32 6, %s18
        %s221 = ssub.s32 7, %s220
        %p222 = scmp.lt.s32.totalorder %s221, 6
        %s223 = scalar_select %p222, %s221, 6
        %s224 = smul.u32 64, %s223
        %p225 = scmp.lt.s32.totalorder %s19, 0
        %s226 = scalar_select %p225, %s19, 0
        %s227 = smul.addr %s226, 4
        %s228 = scalar_lea.vmem %s1, %s227
        %p229 = scmp.lt.s32.totalorder %s19, 0
        %s230 = scalar_select %p229, %s19, 0
        %s231 = scalar_lea.vmem %s2, %s230
        %s232 = smul.u32 6, %s18
        %s233 = ssub.s32 7, %s232
        %p234 = scmp.lt.s32.totalorder %s233, 6
        %s235 = scalar_select %p234, %s233, 6
        %s236 = smul.u32 64, %s235
        %v238 = vld [vmem:[%s219] sm:$0xf]
        %v239 = vld [vmem:[%s219 + $0x4] sm:$0xf]
        %v240 = vld [vmem:[%s219 + $0x8] sm:$0xf]
        %v241 = vld [vmem:[%s219 + $0xc] sm:$0xf]
        %v242 = vld [vmem:[%s219 + $0x10] sm:$0xf]
        %v243 = vld [vmem:[%s219 + $0x14] sm:$0xf]
        %v244 = vld [vmem:[%s228] sm:$0xf]
        %v245 = vld [vmem:[%s228 + $0x4] sm:$0xf]
        %v246 = vld [vmem:[%s228 + $0x8] sm:$0xf]
        %v247 = vld [vmem:[%s228 + $0xc] sm:$0xf]
        %v248 = vld [vmem:[%s228 + $0x10] sm:$0xf]
        %v249 = vld [vmem:[%s228 + $0x14] sm:$0xf]
        %v250 = vld [vmem:[%s228 + $0x18] sm:$0xf]
        %v251 = vld [vmem:[%s228 + $0x1c] sm:$0xf]
        %v252 = vld [vmem:[%s228 + $0x20] sm:$0xf]
        %v253 = vld [vmem:[%s228 + $0x24] sm:$0xf]
        %v254 = vld [vmem:[%s228 + $0x28] sm:$0xf]
        %v255 = vld [vmem:[%s228 + $0x2c] sm:$0xf]
        %v256 = vld [vmem:[%s228 + $0x30] sm:$0xf]
        %v257 = vld [vmem:[%s228 + $0x34] sm:$0xf]
        %v258 = vld [vmem:[%s228 + $0x38] sm:$0xf]
        %v259 = vld [vmem:[%s228 + $0x3c] sm:$0xf]
        %v260 = vld [vmem:[%s231] sm:$0x1]
        %v262 = vlaneseq
        %v263 = vshrl.u32 %v262, 7
        %v264 = vsub.s32 0, %v263
        %v265 = vrot.slane %v260, %v264
        %v273 = vunpack.c.l.b16 %v238
        %v274 = vunpack.c.l.b16 %v239
        %v275 = vunpack.c.l.b16 %v240
        %v276 = vunpack.c.l.b16 %v241
        %v277 = vunpack.c.l.b16 %v242
        %v278 = vunpack.c.l.b16 %v243
        %v279 = vpack.c.b16 %v274, %v273
        %v280 = vpack.c.b16 %v276, %v275
        %v281 = vpack.c.b16 %v278, %v277
        %v301 = vunpack.c.l.b16 %v244
        %v302 = vunpack.c.l.b16 %v245
        %v303 = vunpack.c.l.b16 %v246
        %v304 = vunpack.c.l.b16 %v247
        %v305 = vunpack.c.l.b16 %v248
        %v306 = vunpack.c.l.b16 %v249
        %v307 = vunpack.c.l.b16 %v250
        %v308 = vunpack.c.l.b16 %v251
        %v309 = vunpack.c.l.b16 %v252
        %v310 = vunpack.c.l.b16 %v253
        %v311 = vunpack.c.l.b16 %v254
        %v312 = vunpack.c.l.b16 %v255
        %v313 = vunpack.c.l.b16 %v256
        %v314 = vunpack.c.l.b16 %v257
        %v315 = vunpack.c.l.b16 %v258
        %v316 = vunpack.c.l.b16 %v259
        %v317 = vpack.c.b16 %v302, %v301
        %v318 = vpack.c.b16 %v304, %v303
        %v319 = vpack.c.b16 %v306, %v305
        %v320 = vpack.c.b16 %v308, %v307
        %v321 = vpack.c.b16 %v310, %v309
        %v322 = vpack.c.b16 %v312, %v311
        %v323 = vpack.c.b16 %v314, %v313
        %v324 = vpack.c.b16 %v316, %v315
        %333 = vmatprep.subr.bf16.mxu0 0
        %334 = vmatpush1.bf16.msra.mxu0 %v317
        %335 = vmatprep.subr.bf16.mxu0 0
        %336 = vmatpush1.bf16.msra.mxu0 %v318
        %337 = vmatprep.subr.bf16.mxu0 0
        %338 = vmatpush1.bf16.msra.mxu0 %v319
        %339 = vmatprep.subr.bf16.mxu0 0
        %340 = vmatpush1.bf16.msra.mxu0 %v320
        %341 = vmatprep.subr.bf16.mxu0 0
        %342 = vmatpush1.bf16.msra.mxu0 %v321
        %343 = vmatprep.subr.bf16.mxu0 0
        %344 = vmatpush1.bf16.msra.mxu0 %v322
        %345 = vmatprep.subr.bf16.mxu0 0
        %346 = vmatpush1.bf16.msra.mxu0 %v323
        %347 = vmatprep.subr.bf16.mxu0 0
        %348 = vmatpush1.bf16.msra.mxu0 %v324
        %349 = vmatprep.subr.bf16.mxu0 0
        %350 = vmatpush1.bf16.msra.mxu0 0
        %351 = vmatprep.subr.bf16.mxu0 0
        %352 = vmatpush1.bf16.msra.mxu0 0
        %353 = vmatprep.subr.bf16.mxu0 0
        %354 = vmatpush1.bf16.msra.mxu0 0
        %355 = vmatprep.subr.bf16.mxu0 0
        %356 = vmatpush1.bf16.msra.mxu0 0
        %357 = vmatprep.subr.bf16.mxu0 0
        %358 = vmatpush1.bf16.msra.mxu0 0
        %359 = vmatprep.subr.bf16.mxu0 0
        %360 = vmatpush1.bf16.msra.mxu0 0
        %361 = vmatprep.subr.bf16.mxu0 0
        %362 = vmatpush1.bf16.msra.mxu0 0
        %363 = vmatprep.subr.bf16.mxu0 0
        %364 = vmatpush1.bf16.msra.mxu0 0
        %365 = vmatprep.mubr.bf16.mxu0 0
        %366 = vmatmul.mubr.bf16.gmra.mrb[0].mxu0 %v279
        %v367 = vpop.f32.mrb[0].mxu0
        %v368 = vadd.f32 %v265, %v367
        %v369 = vpop.f32.mrb[0].mxu0
        %v370 = vpop.f32.mrb[0].mxu0
        %v371 = vadd.f32 %v265, %v370
        %v372 = vpop.f32.mrb[0].mxu0
        %373 = vmatprep.mubr.bf16.mxu0 0
        %374 = vmatmul.mubr.bf16.gmra.mrb[0].mxu0 %v280
        %v375 = vpop.f32.mrb[0].mxu0
        %v376 = vadd.f32 %v265, %v375
        %v377 = vpop.f32.mrb[0].mxu0
        %v378 = vpop.f32.mrb[0].mxu0
        %v379 = vadd.f32 %v265, %v378
        %v380 = vpop.f32.mrb[0].mxu0
        %381 = vmatprep.mubr.bf16.mxu0 0
        %382 = vmatmul.mubr.bf16.gmra.mrb[0].mxu0 %v281
        %v383 = vpop.f32.mrb[0].mxu0
        %v384 = vadd.f32 %v265, %v383
        %v385 = vpop.f32.mrb[0].mxu0
        %v386 = vpop.f32.mrb[0].mxu0
        %v387 = vadd.f32 %v265, %v386
        %v388 = vpop.f32.mrb[0].mxu0
        %389 = vdwg.mxu0
        %v390 = vpack.c.bf16 %v371, %v368
        %v391 = vpack.c.bf16 %v379, %v376
        %v392 = vpack.c.bf16 %v387, %v384
        %v396 = vunpack.c.l.b16 %v390
        %v397 = vunpack.c.h.b16 %v390
        %v398 = vunpack.c.l.b16 %v391
        %v399 = vunpack.c.h.b16 %v391
        %v400 = vunpack.c.l.b16 %v392
        %v401 = vunpack.c.h.b16 %v392
        %v402 = vpack.c.b16 %v396, %v396
        %v403 = vpack.c.b16 %v397, %v397
        %v404 = vpack.c.b16 %v398, %v398
        %v405 = vpack.c.b16 %v399, %v399
        %v406 = vpack.c.b16 %v400, %v400
        %v407 = vpack.c.b16 %v401, %v401
        %414 = vst [vmem:[%s210] sm:$0xf] %v402
        %415 = vst [vmem:[%s210 + $0x4] sm:$0xf] %v403
        %416 = vst [vmem:[%s210 + $0x8] sm:$0xf] %v404
        %417 = vst [vmem:[%s210 + $0xc] sm:$0xf] %v405
        %418 = vst [vmem:[%s210 + $0x10] sm:$0xf] %v406
        %419 = vst [vmem:[%s210 + $0x14] sm:$0xf] %v407
        %s420 = sand.u32 %s114, 1
        %s421 = sand.u32 %s114, 1
        %s422 = smul.addr %s421, 24
        %s423 = scalar_lea.vmem [#allocation2], %s422
        // Predicated region
        $region33: #{nlayer_discriminator_forward.12} parent=31 // pred_check
          %p424 = pneg %p124
        $region34: #{nlayer_discriminator_forward.12} parent=31 // pred_check_branch
          %426 = sbr.rel (%p424) target = $region36
        $region35: #{nlayer_discriminator_forward.12} parent=31 // pred_region
          %s427 = smul.u32 6, %s18
          %s428 = ssub.s32 7, %s427
          %p429 = scmp.lt.s32.totalorder %s428, 6
          %s430 = scalar_select %p429, %s428, 6
          %s431 = smul.u32 64, %s430
          %p432 = scmp.ne.s32.totalorder 0, %s431
          %s433 = sadd.s32 %s19, %s427
          %s434 = smul.addr %s433, 4
          %s435 = scalar_lea.vmem %s3, %s434
          // Predicated region
          $region37: #{nlayer_discriminator_forward.12} parent=35 // pred_check
            %p436 = pneg %p432
          $region38: #{nlayer_discriminator_forward.12} parent=35 // pred_check_branch
            %438 = sbr.rel (%p436) target = $region40
          $region39: #{nlayer_discriminator_forward.12} parent=35 // pred_region
            // Predicated region
            $region41: #{nlayer_discriminator_forward.12} parent=39 // pred_check
              _
            $region42: #{nlayer_discriminator_forward.12} parent=39 // pred_check_branch
              %440 = sbr.rel target = $region44
            $region43: #{nlayer_discriminator_forward.12} parent=39 // pred_region
              // Predicated region
              $region63: #{nlayer_discriminator_forward.12} parent=43 // pred_check
                _
              $region64: #{nlayer_discriminator_forward.12} parent=43 // pred_check_branch
                %500 = sbr.rel (0) target = $region66
              $region65: #{nlayer_discriminator_forward.12} parent=43 // pred_region
                %s502 = sdiv.u32.pop %s430, 6
                %s503 = srem.u32.pop %s430, 6
                // While loop
                $region67: #{nlayer_discriminator_forward.12} parent=65 // loop_pre_header
                  _
                $region68: #{nlayer_discriminator_forward.12} parent=65 // loop_header
                  %s505 = sphi 0, %s507
                  %p506 = scmp.ge.s32.totalorder %s505, %s502
                  %s510 = sphi 0, %s527
                  %s511 = sphi %s423, %s530
                  %s512 = sphi %s435, %s531
                $region69: #{nlayer_discriminator_forward.12} parent=65 // loop_header_branch
                  %509 = sbr.rel (%p506) target = $region73
                $region70: #{nlayer_discriminator_forward.12} parent=65 // loop_body
                  %v513 = vld [vmem:[%s511] sm:$0xf]
                  %514 = vst [vmem:[%s512] sm:$0xf] %v513
                  %v515 = vld [vmem:[%s511 + $0x4] sm:$0xf]
                  %516 = vst [vmem:[%s512 + $0x4] sm:$0xf] %v515
                  %v517 = vld [vmem:[%s511 + $0x8] sm:$0xf]
                  %518 = vst [vmem:[%s512 + $0x8] sm:$0xf] %v517
                  %v519 = vld [vmem:[%s511 + $0xc] sm:$0xf]
                  %520 = vst [vmem:[%s512 + $0xc] sm:$0xf] %v519
                  %v521 = vld [vmem:[%s511 + $0x10] sm:$0xf]
                  %522 = vst [vmem:[%s512 + $0x10] sm:$0xf] %v521
                  %v523 = vld [vmem:[%s511 + $0x14] sm:$0xf]
                  %524 = vst [vmem:[%s512 + $0x14] sm:$0xf] %v523
                  %s525 = sadd.s32 1, %s510
                  %p526 = scmp.ge.s32.totalorder %s525, %s502
                  %s527 = scalar_select %p526, 0, %s525
                  %s528 = smul.u32 %s527, 24
                  %s529 = smul.u32 %s527, 24
                  %s530 = scalar_lea.vmem %s423, %s528 [#allocation2]
                  %s531 = scalar_lea.vmem %s435, %s529
                $region71: #{nlayer_discriminator_forward.12} parent=65 // loop_footer
                  %s507 = sadd.s32 %s505, 1
                $region72: #{nlayer_discriminator_forward.12} parent=65 // loop_footer_branch
                  %504 = sbr.rel target = $region68
                $region73: #{nlayer_discriminator_forward.12} parent=65 // loop_exit
                  _
                %s532 = sdiv.u32.pop %s430, 6
                %s533 = srem.u32.pop %s430, 6
                %s534 = smul.u32 %s532, 6
                %s535 = smul.u32 4, %s534
                %s536 = scalar_lea.vmem %s423, %s535 [#allocation2]
                %s537 = smul.u32 4, %s534
                %s538 = scalar_lea.vmem %s435, %s537
                // While loop
                $region74: #{nlayer_discriminator_forward.12} parent=65 // loop_pre_header
                  _
                $region75: #{nlayer_discriminator_forward.12} parent=65 // loop_header
                  %s540 = sphi 0, %s542
                  %p541 = scmp.ge.s32.totalorder %s540, %s533
                  %s545 = sphi 0, %s552
                  %s546 = sphi %s536, %s555
                  %s547 = sphi %s538, %s556
                $region76: #{nlayer_discriminator_forward.12} parent=65 // loop_header_branch
                  %544 = sbr.rel (%p541) target = $region80
                $region77: #{nlayer_discriminator_forward.12} parent=65 // loop_body
                  %v548 = vld [vmem:[%s546] sm:$0xf]
                  %549 = vst [vmem:[%s547] sm:$0xf] %v548
                  %s550 = sadd.s32 1, %s545
                  %p551 = scmp.ge.s32.totalorder %s550, %s533
                  %s552 = scalar_select %p551, 0, %s550
                  %s553 = smul.u32 %s552, 4
                  %s554 = smul.u32 %s552, 4
                  %s555 = scalar_lea.vmem %s536, %s553 [#allocation2]
                  %s556 = scalar_lea.vmem %s538, %s554
                $region78: #{nlayer_discriminator_forward.12} parent=65 // loop_footer
                  %s542 = sadd.s32 %s540, 1
                $region79: #{nlayer_discriminator_forward.12} parent=65 // loop_footer_branch
                  %539 = sbr.rel target = $region75
                $region80: #{nlayer_discriminator_forward.12} parent=65 // loop_exit
                  _
              $region66: #{nlayer_discriminator_forward.12} parent=43 // pred_fallthru
                _
            $region44: #{nlayer_discriminator_forward.12} parent=39 // pred_fallthru
              _
            // Predicated region
            $region45: #{nlayer_discriminator_forward.12} parent=39 // pred_check
              _
            $region46: #{nlayer_discriminator_forward.12} parent=39 // pred_check_branch
              %442 = sbr.rel (0) target = $region48
            $region47: #{nlayer_discriminator_forward.12} parent=39 // pred_region
              %s444 = sdiv.u32.pop %s430, 6
              %s445 = srem.u32.pop %s430, 6
              // While loop
              $region49: #{nlayer_discriminator_forward.12} parent=47 // loop_pre_header
                _
              $region50: #{nlayer_discriminator_forward.12} parent=47 // loop_header
                %s447 = sphi 0, %s449
                %p448 = scmp.ge.s32.totalorder %s447, %s444
                %s452 = sphi 0, %s469
                %s453 = sphi %s423, %s472
                %s454 = sphi %s435, %s473
              $region51: #{nlayer_discriminator_forward.12} parent=47 // loop_header_branch
                %451 = sbr.rel (%p448) target = $region55
              $region52: #{nlayer_discriminator_forward.12} parent=47 // loop_body
                %v455 = vld [vmem:[%s453] sm:$0xf]
                %456 = vst [vmem:[%s454] sm:$0xf] %v455
                %v457 = vld [vmem:[%s453 + $0x4] sm:$0xf]
                %458 = vst [vmem:[%s454 + $0x4] sm:$0xf] %v457
                %v459 = vld [vmem:[%s453 + $0x8] sm:$0xf]
                %460 = vst [vmem:[%s454 + $0x8] sm:$0xf] %v459
                %v461 = vld [vmem:[%s453 + $0xc] sm:$0xf]
                %462 = vst [vmem:[%s454 + $0xc] sm:$0xf] %v461
                %v463 = vld [vmem:[%s453 + $0x10] sm:$0xf]
                %464 = vst [vmem:[%s454 + $0x10] sm:$0xf] %v463
                %v465 = vld [vmem:[%s453 + $0x14] sm:$0xf]
                %466 = vst [vmem:[%s454 + $0x14] sm:$0xf] %v465
                %s467 = sadd.s32 1, %s452
                %p468 = scmp.ge.s32.totalorder %s467, %s444
                %s469 = scalar_select %p468, 0, %s467
                %s470 = smul.u32 %s469, 24
                %s471 = smul.u32 %s469, 24
                %s472 = scalar_lea.vmem %s423, %s470 [#allocation2]
                %s473 = scalar_lea.vmem %s435, %s471
              $region53: #{nlayer_discriminator_forward.12} parent=47 // loop_footer
                %s449 = sadd.s32 %s447, 1
              $region54: #{nlayer_discriminator_forward.12} parent=47 // loop_footer_branch
                %446 = sbr.rel target = $region50
              $region55: #{nlayer_discriminator_forward.12} parent=47 // loop_exit
                _
              %s474 = sdiv.u32.pop %s430, 6
              %s475 = srem.u32.pop %s430, 6
              %s476 = smul.u32 %s474, 6
              %s477 = smul.u32 4, %s476
              %s478 = scalar_lea.vmem %s423, %s477 [#allocation2]
              %s479 = smul.u32 4, %s476
              %s480 = scalar_lea.vmem %s435, %s479
              // While loop
              $region56: #{nlayer_discriminator_forward.12} parent=47 // loop_pre_header
                _
              $region57: #{nlayer_discriminator_forward.12} parent=47 // loop_header
                %s482 = sphi 0, %s484
                %p483 = scmp.ge.s32.totalorder %s482, %s475
                %s487 = sphi 0, %s494
                %s488 = sphi %s478, %s497
                %s489 = sphi %s480, %s498
              $region58: #{nlayer_discriminator_forward.12} parent=47 // loop_header_branch
                %486 = sbr.rel (%p483) target = $region62
              $region59: #{nlayer_discriminator_forward.12} parent=47 // loop_body
                %v490 = vld [vmem:[%s488] sm:$0xf]
                %491 = vst [vmem:[%s489] sm:$0xf] %v490
                %s492 = sadd.s32 1, %s487
                %p493 = scmp.ge.s32.totalorder %s492, %s475
                %s494 = scalar_select %p493, 0, %s492
                %s495 = smul.u32 %s494, 4
                %s496 = smul.u32 %s494, 4
                %s497 = scalar_lea.vmem %s478, %s495 [#allocation2]
                %s498 = scalar_lea.vmem %s480, %s496
              $region60: #{nlayer_discriminator_forward.12} parent=47 // loop_footer
                %s484 = sadd.s32 %s482, 1
              $region61: #{nlayer_discriminator_forward.12} parent=47 // loop_footer_branch
                %481 = sbr.rel target = $region57
              $region62: #{nlayer_discriminator_forward.12} parent=47 // loop_exit
                _
            $region48: #{nlayer_discriminator_forward.12} parent=39 // pred_fallthru
              _
          $region40: #{nlayer_discriminator_forward.12} parent=35 // pred_fallthru
            _
          %557 = vnop
        $region36: #{nlayer_discriminator_forward.12} parent=31 // pred_fallthru
          _
      $region32: #{nlayer_discriminator_forward.12} parent=5 // pred_fallthru
        _
      %p558 = scmp.le.s32.totalorder 2, %s9
      // Predicated region
      $region81: #{nlayer_discriminator_forward.12} parent=5 // pred_check
        %p559 = pneg %p558
      $region82: #{nlayer_discriminator_forward.12} parent=5 // pred_check_branch
        %561 = sbr.rel (%p559) target = $region84
      $region83: #{nlayer_discriminator_forward.12} parent=5 // pred_region
        %s562 = ssub.s32 %s9, 2
        // Predicated region
        $region85: #{nlayer_discriminator_forward.12} parent=83 // pred_check
          %p563 = pneg %p130
        $region86: #{nlayer_discriminator_forward.12} parent=83 // pred_check_branch
          %565 = sbr.rel (%p563) target = $region88
        $region87: #{nlayer_discriminator_forward.12} parent=83 // pred_region
          %s566 = sand.u32 %s115, 1
          %s567 = sand.u32 %s115, 1
          %s568 = smul.addr %s567, 24
          %s569 = scalar_lea.vmem [#allocation2], %s568
        $region88: #{nlayer_discriminator_forward.12} parent=83 // pred_fallthru
          _
      $region84: #{nlayer_discriminator_forward.12} parent=5 // pred_fallthru
        _
    $region6: #{nlayer_discriminator_forward.12} parent=1 // loop_footer
      %s13 = sadd.s32 1, %s9
    $region7: #{nlayer_discriminator_forward.12} parent=1 // loop_footer_branch
      %8 = sbr.rel target = $region3
    $region8: #{nlayer_discriminator_forward.12} parent=1 // loop_exit
      _

// kernel: nlayer_discriminator_forward.14
$region0: #{nlayer_discriminator_forward.14}
  #allocation0 [shape = 'u32[]', space=smem, size = 0x4, offset = 0x4, fixed_abs, tag = 'smem constant byte address 0x4 - core index']
  #allocation1 [shape = 'u32[144,128]{1,0:T(1,128)}', space=vmem, size = 0x12000, scoped, tag = 'internal scratch']
  %s0 = inlined_call_operand.vmem [shape: bf16[50,128], index: 0, kind: input, shape index: {}]
  %s1 = inlined_call_operand.vmem [shape: f32[1,128], index: 1, kind: input, shape index: {}]
  %s2 = inlined_call_operand.vmem [shape: f32[1,128], index: 2, kind: input, shape index: {}]
  %s3 = inlined_call_operand.vmem [shape: bf16[50,128], index: 3, kind: output, shape index: {}]
  %s4 = sld [smem:[#allocation0]]
  $region89: #{nlayer_discriminator_forward.14} parent=0
    _
  %s6 = ssub.s32 1, %s4
  %s7 = scalar_select 0, %s6, %s4
  $region1: #{nlayer_discriminator_forward.14} parent=0
    #allocation2 [shape = 'u8[24576]{0}', space=vmem, size = 0x6000, scoped, tag = 'output window, operand 0']
    loop: start=0, step=1, limit=4
    $region2: #{nlayer_discriminator_forward.14} parent=1 // loop_pre_header
      _
    $region3: #{nlayer_discriminator_forward.14} parent=1 // loop_header
      %s9 = sphi 0, %s13
      %p10 = scmp.ge.s32.totalorder %s9, 4
      %s19 = sphi 0, %s21
      %s22 = sphi 0, %s19
      %s23 = sphi 0, %s22
      %s39 = sphi 0, %s23
      %s43 = sphi 0, %s43
      %s45 = sphi 0, %s43
      %s46 = sphi 0, %s45
      %s60 = sphi 0, %s46
      %s64 = sphi 0, %s64
      %s66 = sphi 0, %s64
      %s67 = sphi 0, %s66
      %s81 = sphi 0, %s67
      %s87 = sphi 0, %s89
      %s90 = sphi 0, %s87
      %s91 = sphi 0, %s90
      %s107 = sphi 0, %s91
    $region4: #{nlayer_discriminator_forward.14} parent=1 // loop_header_branch
      %12 = sbr.rel (%p10) target = $region8
    $region5: #{nlayer_discriminator_forward.14} parent=1 // loop_body
      %s14 = ssub.s32 %s9, 1
      %s15 = ssub.s32 %s9, 2
      %s16 = sadd.s32 %s9, 1
      %s17 = ssub.s32 %s9, %s16
      %p18 = scmp.eq.s32.totalorder %s17, 0
      %s20 = sadd.s32 %s19, 1
      %s21 = scalar_select %p18, %s19, %s20
      %p24 = pneg %p18
      %p25 = scmp.eq.s32.totalorder %s9, 1
      %p26 = por %p24, %p25
      %p27 = scmp.ne.s32.totalorder %s19, %s22
      %p28 = scmp.eq.s32.totalorder %s9, 0
      %p29 = por %p27, %p28
      %p30 = scmp.ne.s32.totalorder %s19, %s22
      %p31 = scmp.eq.s32.totalorder %s14, 1
      %p32 = por %p30, %p31
      %p33 = scmp.ne.s32.totalorder %s22, %s23
      %p34 = scmp.eq.s32.totalorder %s14, 0
      %p35 = por %p33, %p34
      %p36 = scmp.ne.s32.totalorder %s22, %s23
      %p37 = scmp.eq.s32.totalorder %s15, 1
      %p38 = por %p36, %p37
      %p40 = scmp.ne.s32.totalorder %s23, %s39
      %p41 = scmp.eq.s32.totalorder %s15, 0
      %p42 = por %p40, %p41
      %s44 = sadd.s32 %s43, 1
      %p47 = scmp.eq.s32.totalorder %s9, 1
      %p48 = scmp.ne.s32.totalorder %s43, %s45
      %p49 = scmp.eq.s32.totalorder %s9, 0
      %p50 = por %p48, %p49
      %p51 = scmp.ne.s32.totalorder %s43, %s45
      %p52 = scmp.eq.s32.totalorder %s14, 1
      %p53 = por %p51, %p52
      %p54 = scmp.ne.s32.totalorder %s45, %s46
      %p55 = scmp.eq.s32.totalorder %s14, 0
      %p56 = por %p54, %p55
      %p57 = scmp.ne.s32.totalorder %s45, %s46
      %p58 = scmp.eq.s32.totalorder %s15, 1
      %p59 = por %p57, %p58
      %p61 = scmp.ne.s32.totalorder %s46, %s60
      %p62 = scmp.eq.s32.totalorder %s15, 0
      %p63 = por %p61, %p62
      %s65 = sadd.s32 %s64, 1
      %p68 = scmp.eq.s32.totalorder %s9, 1
      %p69 = scmp.ne.s32.totalorder %s64, %s66
      %p70 = scmp.eq.s32.totalorder %s9, 0
      %p71 = por %p69, %p70
      %p72 = scmp.ne.s32.totalorder %s64, %s66
      %p73 = scmp.eq.s32.totalorder %s14, 1
      %p74 = por %p72, %p73
      %p75 = scmp.ne.s32.totalorder %s66, %s67
      %p76 = scmp.eq.s32.totalorder %s14, 0
      %p77 = por %p75, %p76
      %p78 = scmp.ne.s32.totalorder %s66, %s67
      %p79 = scmp.eq.s32.totalorder %s15, 1
      %p80 = por %p78, %p79
      %p82 = scmp.ne.s32.totalorder %s67, %s81
      %p83 = scmp.eq.s32.totalorder %s15, 0
      %p84 = por %p82, %p83
      %s85 = ssub.s32 %s9, %s16
      %p86 = scmp.eq.s32.totalorder %s85, 0
      %s88 = sadd.s32 %s87, 1
      %s89 = scalar_select %p86, %s87, %s88
      %p92 = pneg %p86
      %p93 = scmp.eq.s32.totalorder %s9, 1
      %p94 = por %p92, %p93
      %p95 = scmp.ne.s32.totalorder %s87, %s90
      %p96 = scmp.eq.s32.totalorder %s9, 0
      %p97 = por %p95, %p96
      %p98 = scmp.ne.s32.totalorder %s87, %s90
      %p99 = scmp.eq.s32.totalorder %s14, 1
      %p100 = por %p98, %p99
      %p101 = scmp.ne.s32.totalorder %s90, %s91
      %p102 = scmp.eq.s32.totalorder %s14, 0
      %p103 = por %p101, %p102
      %p104 = scmp.ne.s32.totalorder %s90, %s91
      %p105 = scmp.eq.s32.totalorder %s15, 1
      %p106 = por %p104, %p105
      %p108 = scmp.ne.s32.totalorder %s91, %s107
      %p109 = scmp.eq.s32.totalorder %s15, 0
      %p110 = por %p108, %p109
      %p111 = scmp.le.s32.totalorder 1, %s9
      %p112 = scmp.lt.s32.totalorder %s9, 3
      %p113 = pnand %p111, %p112
      %p114 = pneg %p113
      // Predicated region
      $region9: #{nlayer_discriminator_forward.14} parent=5 // pred_check
        _
      $region10: #{nlayer_discriminator_forward.14} parent=5 // pred_check_branch
        %116 = sbr.rel (%p113) target = $region12
      $region11: #{nlayer_discriminator_forward.14} parent=5 // pred_region
        %s117 = ssub.s32 %s9, 1
        // Predicated region
        $region13: #{nlayer_discriminator_forward.14} parent=11 // pred_check
          %p118 = pneg %p56
        $region14: #{nlayer_discriminator_forward.14} parent=11 // pred_check_branch
          %120 = sbr.rel (%p118) target = $region16
        $region15: #{nlayer_discriminator_forward.14} parent=11 // pred_region
          _
        $region16: #{nlayer_discriminator_forward.14} parent=11 // pred_fallthru
          _
        // Predicated region
        $region17: #{nlayer_discriminator_forward.14} parent=11 // pred_check
          %p121 = pneg %p77
        $region18: #{nlayer_discriminator_forward.14} parent=11 // pred_check_branch
          %123 = sbr.rel (%p121) target = $region20
        $region19: #{nlayer_discriminator_forward.14} parent=11 // pred_region
          _
        $region20: #{nlayer_discriminator_forward.14} parent=11 // pred_fallthru
          _
      $region12: #{nlayer_discriminator_forward.14} parent=5 // pred_fallthru
        _
      %p124 = scmp.lt.s32.totalorder %s9, 2
      // Predicated region
      $region21: #{nlayer_discriminator_forward.14} parent=5 // pred_check
        %p125 = pneg %p124
      $region22: #{nlayer_discriminator_forward.14} parent=5 // pred_check_branch
        %127 = sbr.rel (%p125) target = $region24
      $region23: #{nlayer_discriminator_forward.14} parent=5 // pred_region
        // Predicated region
        $region25: #{nlayer_discriminator_forward.14} parent=23 // pred_check
          %p128 = pneg %p29
        $region26: #{nlayer_discriminator_forward.14} parent=23 // pred_check_branch
          %130 = sbr.rel (%p128) target = $region28
        $region27: #{nlayer_discriminator_forward.14} parent=23 // pred_region
          %s131 = smul.u32 6, %s9
          %s132 = ssub.s32 7, %s131
          %p133 = scmp.lt.s32.totalorder %s132, 6
          %s134 = scalar_select %p133, %s132, 6
          %s135 = smul.u32 64, %s134
          %p136 = scmp.lt.s32.totalorder %s131, 6
          %s137 = scalar_select %p136, %s131, 6
          %s138 = smul.addr %s137, 4
          %s139 = scalar_lea.vmem %s0, %s138
          %s140 = smul.u32 6, %s9
          %s141 = ssub.s32 7, %s140
          %p142 = scmp.lt.s32.totalorder %s141, 6
          %s143 = scalar_select %p142, %s141, 6
          %s144 = smul.u32 64, %s143
        $region28: #{nlayer_discriminator_forward.14} parent=23 // pred_fallthru
          _
      $region24: #{nlayer_discriminator_forward.14} parent=5 // pred_fallthru
        _
      %p145 = scmp.le.s32.totalorder 1, %s9
      %p146 = scmp.lt.s32.totalorder %s9, 3
      %p147 = pnand %p145, %p146
      %p148 = pneg %p147
      // Predicated region
      $region29: #{nlayer_discriminator_forward.14} parent=5 // pred_check
        _
      $region30: #{nlayer_discriminator_forward.14} parent=5 // pred_check_branch
        %150 = sbr.rel (%p147) target = $region32
      $region31: #{nlayer_discriminator_forward.14} parent=5 // pred_region
        %s151 = ssub.s32 %s9, 1
        %s152 = smul.u32 6, %s14
        %s153 = ssub.s32 7, %s152
        %p154 = scmp.lt.s32.totalorder %s153, 6
        %s155 = scalar_select %p154, %s153, 6
        %s156 = smul.u32 64, %s155
        %p157 = scmp.lt.s32.totalorder %s152, 6
        %s158 = scalar_select %p157, %s152, 6
        %s159 = smul.addr %s158, 4
        %s160 = scalar_lea.vmem %s0, %s159
        %p161 = pneg %p35
        %p162 = pneg %p32
        %p163 = pneg %p56
        %p164 = pneg %p53
        %p165 = pneg %p77
        %p166 = pneg %p74
        %p167 = pneg %p103
        %p168 = pneg %p100
        %s169 = sand.u32 %s90, 1
        %s170 = sand.u32 %s90, 1
        %s171 = smul.addr %s170, 24
        %s172 = scalar_lea.vmem [#allocation2], %s171
        %s173 = smul.u32 6, %s14
        %s174 = ssub.s32 7, %s173
        %p175 = scmp.lt.s32.totalorder %s174, 6
        %s176 = scalar_select %p175, %s174, 6
        %s177 = smul.u32 64, %s176
        %p178 = scmp.lt.s32.totalorder %s173, 6
        %s179 = scalar_select %p178, %s173, 6
        %s180 = smul.addr %s179, 4
        %s181 = scalar_lea.vmem %s0, %s180
        %s182 = smul.u32 6, %s14
        %s183 = ssub.s32 7, %s182
        %p184 = scmp.lt.s32.totalorder %s183, 6
        %s185 = scalar_select %p184, %s183, 6
        %s186 = smul.u32 64, %s185
        %s187 = smul.u32 6, %s14
        %s188 = ssub.s32 7, %s187
        %p189 = scmp.lt.s32.totalorder %s188, 6
        %s190 = scalar_select %p189, %s188, 6
        %s191 = smul.u32 64, %s190
        %v192 = vld [vmem:[%s181] sm:$0xf]
        %v193 = vld [vmem:[%s181 + $0x4] sm:$0xf]
        %v194 = vld [vmem:[%s181 + $0x8] sm:$0xf]
        %v195 = vld [vmem:[%s181 + $0xc] sm:$0xf]
        %v196 = vld [vmem:[%s181 + $0x10] sm:$0xf]
        %v197 = vld [vmem:[%s181 + $0x14] sm:$0xf]
        %v198 = vunpack.c.l.bf16 %v192
        %v199 = vunpack.c.l.bf16 %v193
        %v200 = vunpack.c.l.bf16 %v194
        %v201 = vunpack.c.l.bf16 %v195
        %v202 = vunpack.c.l.bf16 %v196
        %v203 = vunpack.c.l.bf16 %v197
        %v204 = vld [vmem:[%s1] sm:$0x1]
        %v206 = vlaneseq
        %v207 = vshrl.u32 %v206, 7
        %v208 = vsub.s32 0, %v207
        %v209 = vrot.slane %v204, %v208
        %v211 = vmul.f32 %v198, %v209
        %v212 = vmul.f32 %v199, %v209
        %v213 = vmul.f32 %v200, %v209
        %v214 = vmul.f32 %v201, %v209
        %v215 = vmul.f32 %v202, %v209
        %v216 = vmul.f32 %v203, %v209
        %v217 = vld [vmem:[%s2] sm:$0x1]
        %v219 = vlaneseq
        %v220 = vshrl.u32 %v219, 7
        %v221 = vsub.s32 0, %v220
        %v222 = vrot.slane %v217, %v221
        %v224 = vadd.f32 %v211, %v222
        %v225 = vadd.f32 %v212, %v222
        %v226 = vadd.f32 %v213, %v222
        %v227 = vadd.f32 %v214, %v222
        %v228 = vadd.f32 %v215, %v222
        %v229 = vadd.f32 %v216, %v222
        %vm230 = vcmp.ge.f32.partialorder %v224, 0.0
        %vm231 = vcmp.ge.f32.partialorder %v225, 0.0
        %vm232 = vcmp.ge.f32.partialorder %v226, 0.0
        %vm233 = vcmp.ge.f32.partialorder %v227, 0.0
        %vm234 = vcmp.ge.f32.partialorder %v228, 0.0
        %vm235 = vcmp.ge.f32.partialorder %v229, 0.0
        %v236 = vmul.f32 %v224, 0.2
        %v237 = vmul.f32 %v225, 0.2
        %v238 = vmul.f32 %v226, 0.2
        %v239 = vmul.f32 %v227, 0.2
        %v240 = vmul.f32 %v228, 0.2
        %v241 = vmul.f32 %v229, 0.2
        %v242 = vsel %vm230, %v224, %v236
        %v243 = vsel %vm231, %v225, %v237
        %v244 = vsel %vm232, %v226, %v238
        %v245 = vsel %vm233, %v227, %v239
        %v246 = vsel %vm234, %v228, %v240
        %v247 = vsel %vm235, %v229, %v241
        %v248 = vpack.c.bf16 %v243, %v242
        %v249 = vpack.c.bf16 %v245, %v244
        %v250 = vpack.c.bf16 %v247, %v246
        %v254 = vunpack.c.l.b16 %v248
        %v255 = vunpack.c.h.b16 %v248
        %v256 = vunpack.c.l.b16 %v249
        %v257 = vunpack.c.h.b16 %v249
        %v258 = vunpack.c.l.b16 %v250
        %v259 = vunpack.c.h.b16 %v250
        %v260 = vpack.c.b16 %v254, %v254
        %v261 = vpack.c.b16 %v255, %v255
        %v262 = vpack.c.b16 %v256, %v256
        %v263 = vpack.c.b16 %v257, %v257
        %v264 = vpack.c.b16 %v258, %v258
        %v265 = vpack.c.b16 %v259, %v259
        %272 = vst [vmem:[%s172] sm:$0xf] %v260
        %273 = vst [vmem:[%s172 + $0x4] sm:$0xf] %v261
        %274 = vst [vmem:[%s172 + $0x8] sm:$0xf] %v262
        %275 = vst [vmem:[%s172 + $0xc] sm:$0xf] %v263
        %276 = vst [vmem:[%s172 + $0x10] sm:$0xf] %v264
        %277 = vst [vmem:[%s172 + $0x14] sm:$0xf] %v265
        %s278 = sand.u32 %s90, 1
        %s279 = sand.u32 %s90, 1
        %s280 = smul.addr %s279, 24
        %s281 = scalar_lea.vmem [#allocation2], %s280
        // Predicated region
        $region33: #{nlayer_discriminator_forward.14} parent=31 // pred_check
          %p282 = pneg %p100
        $region34: #{nlayer_discriminator_forward.14} parent=31 // pred_check_branch
          %284 = sbr.rel (%p282) target = $region36
        $region35: #{nlayer_discriminator_forward.14} parent=31 // pred_region
          %s285 = smul.u32 6, %s14
          %s286 = ssub.s32 7, %s285
          %p287 = scmp.lt.s32.totalorder %s286, 6
          %s288 = scalar_select %p287, %s286, 6
          %s289 = smul.u32 64, %s288
          %p290 = scmp.ne.s32.totalorder 0, %s289
          %s291 = smul.addr %s285, 4
          %s292 = scalar_lea.vmem %s3, %s291
          // Predicated region
          $region37: #{nlayer_discriminator_forward.14} parent=35 // pred_check
            %p293 = pneg %p290
          $region38: #{nlayer_discriminator_forward.14} parent=35 // pred_check_branch
            %295 = sbr.rel (%p293) target = $region40
          $region39: #{nlayer_discriminator_forward.14} parent=35 // pred_region
            // Predicated region
            $region41: #{nlayer_discriminator_forward.14} parent=39 // pred_check
              _
            $region42: #{nlayer_discriminator_forward.14} parent=39 // pred_check_branch
              %297 = sbr.rel target = $region44
            $region43: #{nlayer_discriminator_forward.14} parent=39 // pred_region
              // Predicated region
              $region63: #{nlayer_discriminator_forward.14} parent=43 // pred_check
                _
              $region64: #{nlayer_discriminator_forward.14} parent=43 // pred_check_branch
                %357 = sbr.rel (0) target = $region66
              $region65: #{nlayer_discriminator_forward.14} parent=43 // pred_region
                %s359 = sdiv.u32.pop %s288, 6
                %s360 = srem.u32.pop %s288, 6
                // While loop
                $region67: #{nlayer_discriminator_forward.14} parent=65 // loop_pre_header
                  _
                $region68: #{nlayer_discriminator_forward.14} parent=65 // loop_header
                  %s362 = sphi 0, %s364
                  %p363 = scmp.ge.s32.totalorder %s362, %s359
                  %s367 = sphi 0, %s384
                  %s368 = sphi %s281, %s387
                  %s369 = sphi %s292, %s388
                $region69: #{nlayer_discriminator_forward.14} parent=65 // loop_header_branch
                  %366 = sbr.rel (%p363) target = $region73
                $region70: #{nlayer_discriminator_forward.14} parent=65 // loop_body
                  %v370 = vld [vmem:[%s368] sm:$0xf]
                  %371 = vst [vmem:[%s369] sm:$0xf] %v370
                  %v372 = vld [vmem:[%s368 + $0x4] sm:$0xf]
                  %373 = vst [vmem:[%s369 + $0x4] sm:$0xf] %v372
                  %v374 = vld [vmem:[%s368 + $0x8] sm:$0xf]
                  %375 = vst [vmem:[%s369 + $0x8] sm:$0xf] %v374
                  %v376 = vld [vmem:[%s368 + $0xc] sm:$0xf]
                  %377 = vst [vmem:[%s369 + $0xc] sm:$0xf] %v376
                  %v378 = vld [vmem:[%s368 + $0x10] sm:$0xf]
                  %379 = vst [vmem:[%s369 + $0x10] sm:$0xf] %v378
                  %v380 = vld [vmem:[%s368 + $0x14] sm:$0xf]
                  %381 = vst [vmem:[%s369 + $0x14] sm:$0xf] %v380
                  %s382 = sadd.s32 1, %s367
                  %p383 = scmp.ge.s32.totalorder %s382, %s359
                  %s384 = scalar_select %p383, 0, %s382
                  %s385 = smul.u32 %s384, 24
                  %s386 = smul.u32 %s384, 24
                  %s387 = scalar_lea.vmem %s281, %s385 [#allocation2]
                  %s388 = scalar_lea.vmem %s292, %s386
                $region71: #{nlayer_discriminator_forward.14} parent=65 // loop_footer
                  %s364 = sadd.s32 %s362, 1
                $region72: #{nlayer_discriminator_forward.14} parent=65 // loop_footer_branch
                  %361 = sbr.rel target = $region68
                $region73: #{nlayer_discriminator_forward.14} parent=65 // loop_exit
                  _
                %s389 = sdiv.u32.pop %s288, 6
                %s390 = srem.u32.pop %s288, 6
                %s391 = smul.u32 %s389, 6
                %s392 = smul.u32 4, %s391
                %s393 = scalar_lea.vmem %s281, %s392 [#allocation2]
                %s394 = smul.u32 4, %s391
                %s395 = scalar_lea.vmem %s292, %s394
                // While loop
                $region74: #{nlayer_discriminator_forward.14} parent=65 // loop_pre_header
                  _
                $region75: #{nlayer_discriminator_forward.14} parent=65 // loop_header
                  %s397 = sphi 0, %s399
                  %p398 = scmp.ge.s32.totalorder %s397, %s390
                  %s402 = sphi 0, %s409
                  %s403 = sphi %s393, %s412
                  %s404 = sphi %s395, %s413
                $region76: #{nlayer_discriminator_forward.14} parent=65 // loop_header_branch
                  %401 = sbr.rel (%p398) target = $region80
                $region77: #{nlayer_discriminator_forward.14} parent=65 // loop_body
                  %v405 = vld [vmem:[%s403] sm:$0xf]
                  %406 = vst [vmem:[%s404] sm:$0xf] %v405
                  %s407 = sadd.s32 1, %s402
                  %p408 = scmp.ge.s32.totalorder %s407, %s390
                  %s409 = scalar_select %p408, 0, %s407
                  %s410 = smul.u32 %s409, 4
                  %s411 = smul.u32 %s409, 4
                  %s412 = scalar_lea.vmem %s393, %s410 [#allocation2]
                  %s413 = scalar_lea.vmem %s395, %s411
                $region78: #{nlayer_discriminator_forward.14} parent=65 // loop_footer
                  %s399 = sadd.s32 %s397, 1
                $region79: #{nlayer_discriminator_forward.14} parent=65 // loop_footer_branch
                  %396 = sbr.rel target = $region75
                $region80: #{nlayer_discriminator_forward.14} parent=65 // loop_exit
                  _
              $region66: #{nlayer_discriminator_forward.14} parent=43 // pred_fallthru
                _
            $region44: #{nlayer_discriminator_forward.14} parent=39 // pred_fallthru
              _
            // Predicated region
            $region45: #{nlayer_discriminator_forward.14} parent=39 // pred_check
              _
            $region46: #{nlayer_discriminator_forward.14} parent=39 // pred_check_branch
              %299 = sbr.rel (0) target = $region48
            $region47: #{nlayer_discriminator_forward.14} parent=39 // pred_region
              %s301 = sdiv.u32.pop %s288, 6
              %s302 = srem.u32.pop %s288, 6
              // While loop
              $region49: #{nlayer_discriminator_forward.14} parent=47 // loop_pre_header
                _
              $region50: #{nlayer_discriminator_forward.14} parent=47 // loop_header
                %s304 = sphi 0, %s306
                %p305 = scmp.ge.s32.totalorder %s304, %s301
                %s309 = sphi 0, %s326
                %s310 = sphi %s281, %s329
                %s311 = sphi %s292, %s330
              $region51: #{nlayer_discriminator_forward.14} parent=47 // loop_header_branch
                %308 = sbr.rel (%p305) target = $region55
              $region52: #{nlayer_discriminator_forward.14} parent=47 // loop_body
                %v312 = vld [vmem:[%s310] sm:$0xf]
                %313 = vst [vmem:[%s311] sm:$0xf] %v312
                %v314 = vld [vmem:[%s310 + $0x4] sm:$0xf]
                %315 = vst [vmem:[%s311 + $0x4] sm:$0xf] %v314
                %v316 = vld [vmem:[%s310 + $0x8] sm:$0xf]
                %317 = vst [vmem:[%s311 + $0x8] sm:$0xf] %v316
                %v318 = vld [vmem:[%s310 + $0xc] sm:$0xf]
                %319 = vst [vmem:[%s311 + $0xc] sm:$0xf] %v318
                %v320 = vld [vmem:[%s310 + $0x10] sm:$0xf]
                %321 = vst [vmem:[%s311 + $0x10] sm:$0xf] %v320
                %v322 = vld [vmem:[%s310 + $0x14] sm:$0xf]
                %323 = vst [vmem:[%s311 + $0x14] sm:$0xf] %v322
                %s324 = sadd.s32 1, %s309
                %p325 = scmp.ge.s32.totalorder %s324, %s301
                %s326 = scalar_select %p325, 0, %s324
                %s327 = smul.u32 %s326, 24
                %s328 = smul.u32 %s326, 24
                %s329 = scalar_lea.vmem %s281, %s327 [#allocation2]
                %s330 = scalar_lea.vmem %s292, %s328
              $region53: #{nlayer_discriminator_forward.14} parent=47 // loop_footer
                %s306 = sadd.s32 %s304, 1
              $region54: #{nlayer_discriminator_forward.14} parent=47 // loop_footer_branch
                %303 = sbr.rel target = $region50
              $region55: #{nlayer_discriminator_forward.14} parent=47 // loop_exit
                _
              %s331 = sdiv.u32.pop %s288, 6
              %s332 = srem.u32.pop %s288, 6
              %s333 = smul.u32 %s331, 6
              %s334 = smul.u32 4, %s333
              %s335 = scalar_lea.vmem %s281, %s334 [#allocation2]
              %s336 = smul.u32 4, %s333
              %s337 = scalar_lea.vmem %s292, %s336
              // While loop
              $region56: #{nlayer_discriminator_forward.14} parent=47 // loop_pre_header
                _
              $region57: #{nlayer_discriminator_forward.14} parent=47 // loop_header
                %s339 = sphi 0, %s341
                %p340 = scmp.ge.s32.totalorder %s339, %s332
                %s344 = sphi 0, %s351
                %s345 = sphi %s335, %s354
                %s346 = sphi %s337, %s355
              $region58: #{nlayer_discriminator_forward.14} parent=47 // loop_header_branch
                %343 = sbr.rel (%p340) target = $region62
              $region59: #{nlayer_discriminator_forward.14} parent=47 // loop_body
                %v347 = vld [vmem:[%s345] sm:$0xf]
                %348 = vst [vmem:[%s346] sm:$0xf] %v347
                %s349 = sadd.s32 1, %s344
                %p350 = scmp.ge.s32.totalorder %s349, %s332
                %s351 = scalar_select %p350, 0, %s349
                %s352 = smul.u32 %s351, 4
                %s353 = smul.u32 %s351, 4
                %s354 = scalar_lea.vmem %s335, %s352 [#allocation2]
                %s355 = scalar_lea.vmem %s337, %s353
              $region60: #{nlayer_discriminator_forward.14} parent=47 // loop_footer
                %s341 = sadd.s32 %s339, 1
              $region61: #{nlayer_discriminator_forward.14} parent=47 // loop_footer_branch
                %338 = sbr.rel target = $region57
              $region62: #{nlayer_discriminator_forward.14} parent=47 // loop_exit
                _
            $region48: #{nlayer_discriminator_forward.14} parent=39 // pred_fallthru
              _
          $region40: #{nlayer_discriminator_forward.14} parent=35 // pred_fallthru
            _
          %414 = vnop
        $region36: #{nlayer_discriminator_forward.14} parent=31 // pred_fallthru
          _
      $region32: #{nlayer_discriminator_forward.14} parent=5 // pred_fallthru
        _
      %p415 = scmp.le.s32.totalorder 2, %s9
      // Predicated region
      $region81: #{nlayer_discriminator_forward.14} parent=5 // pred_check
        %p416 = pneg %p415
      $region82: #{nlayer_discriminator_forward.14} parent=5 // pred_check_branch
        %418 = sbr.rel (%p416) target = $region84
      $region83: #{nlayer_discriminator_forward.14} parent=5 // pred_region
        %s419 = ssub.s32 %s9, 2
        // Predicated region
        $region85: #{nlayer_discriminator_forward.14} parent=83 // pred_check
          %p420 = pneg %p106
        $region86: #{nlayer_discriminator_forward.14} parent=83 // pred_check_branch
          %422 = sbr.rel (%p420) target = $region88
        $region87: #{nlayer_discriminator_forward.14} parent=83 // pred_region
          %s423 = sand.u32 %s91, 1
          %s424 = sand.u32 %s91, 1
          %s425 = smul.addr %s424, 24
          %s426 = scalar_lea.vmem [#allocation2], %s425
        $region88: #{nlayer_discriminator_forward.14} parent=83 // pred_fallthru
          _
      $region84: #{nlayer_discriminator_forward.14} parent=5 // pred_fallthru
        _
    $region6: #{nlayer_discriminator_forward.14} parent=1 // loop_footer
      %s13 = sadd.s32 1, %s9
    $region7: #{nlayer_discriminator_forward.14} parent=1 // loop_footer_branch
      %8 = sbr.rel target = $region3
    $region8: #{nlayer_discriminator_forward.14} parent=1 // loop_exit
      _

// kernel: nlayer_discriminator_forward.15
$region0: #{nlayer_discriminator_forward.15}
  #allocation0 [shape = 'u32[]', space=smem, size = 0x4, offset = 0x4, fixed_abs, tag = 'smem constant byte address 0x4 - core index']
  #allocation1 [shape = 'u32[144,128]{1,0:T(1,128)}', space=vmem, size = 0x12000, scoped, tag = 'internal scratch']
  %s0 = inlined_call_operand.vmem [shape: bf16[18,256], index: 0, kind: input, shape index: {}]
  %s1 = inlined_call_operand.vmem [shape: bf16[256,128], index: 1, kind: input, shape index: {}]
  %s2 = inlined_call_operand.vmem [shape: f32[1,128], index: 2, kind: input, shape index: {}]
  %s3 = inlined_call_operand.vmem [shape: bf16[18,128], index: 3, kind: output, shape index: {}]
  %s4 = sld [smem:[#allocation0]]
  $region89: #{nlayer_discriminator_forward.15} parent=0
    _
  %s6 = ssub.s32 1, %s4
  %s7 = scalar_select 0, %s6, %s4
  $region1: #{nlayer_discriminator_forward.15} parent=0
    #allocation2 [shape = 'u8[8192]{0}', space=vmem, size = 0x2000, scoped, tag = 'output window, operand 0']
    loop: start=0, step=1, limit=4
    $region2: #{nlayer_discriminator_forward.15} parent=1 // loop_pre_header
      _
    $region3: #{nlayer_discriminator_forward.15} parent=1 // loop_header
      %s9 = sphi 0, %s13
      %p10 = scmp.ge.s32.totalorder %s9, 4
      %s16 = sphi 0, %s28
      %s17 = sphi 0, %s24
      %s18 = sphi 0, %s16
      %s19 = sphi 0, %s17
      %s20 = sphi 0, %s18
      %s21 = sphi 0, %s19
      %s31 = sphi 0, %s33
      %s34 = sphi 0, %s31
      %s35 = sphi 0, %s34
      %s51 = sphi 0, %s35
      %s57 = sphi 0, %s59
      %s60 = sphi 0, %s57
      %s61 = sphi 0, %s60
      %s77 = sphi 0, %s61
      %s83 = sphi 0, %s85
      %s86 = sphi 0, %s83
      %s87 = sphi 0, %s86
      %s103 = sphi 0, %s87
      %s111 = sphi 0, %s113
      %s114 = sphi 0, %s111
      %s115 = sphi 0, %s114
      %s131 = sphi 0, %s115
    $region4: #{nlayer_discriminator_forward.15} parent=1 // loop_header_branch
      %12 = sbr.rel (%p10) target = $region8
    $region5: #{nlayer_discriminator_forward.15} parent=1 // loop_body
      %s14 = ssub.s32 %s9, 1
      %s15 = ssub.s32 %s9, 2
      %s22 = sadd.s32 1, %s17
      %p23 = scmp.ge.s32.totalorder %s22, 1
      %s24 = scalar_select %p23, 0, %s22
      %s25 = sadd.s32 1, %s16
      %s26 = scalar_select %p23, %s25, %s16
      %p27 = scmp.ge.s32.totalorder %s26, 2
      %s28 = scalar_select %p27, 0, %s26
      %s29 = ssub.s32 %s16, %s28
      %p30 = scmp.eq.s32.totalorder %s29, 0
      %s32 = sadd.s32 %s31, 1
      %s33 = scalar_select %p30, %s31, %s32
      %p36 = pneg %p30
      %p37 = scmp.eq.s32.totalorder %s9, 1
      %p38 = por %p36, %p37
      %p39 = scmp.ne.s32.totalorder %s31, %s34
      %p40 = scmp.eq.s32.totalorder %s9, 0
      %p41 = por %p39, %p40
      %p42 = scmp.ne.s32.totalorder %s31, %s34
      %p43 = scmp.eq.s32.totalorder %s14, 1
      %p44 = por %p42, %p43
      %p45 = scmp.ne.s32.totalorder %s34, %s35
      %p46 = scmp.eq.s32.totalorder %s14, 0
      %p47 = por %p45, %p46
      %p48 = scmp.ne.s32.totalorder %s34, %s35
      %p49 = scmp.eq.s32.totalorder %s15, 1
      %p50 = por %p48, %p49
      %p52 = scmp.ne.s32.totalorder %s35, %s51
      %p53 = scmp.eq.s32.totalorder %s15, 0
      %p54 = por %p52, %p53
      %s55 = ssub.s32 %s17, %s24
      %p56 = scmp.eq.s32.totalorder %s55, 0
      %s58 = sadd.s32 %s57, 1
      %s59 = scalar_select %p56, %s57, %s58
      %p62 = pneg %p56
      %p63 = scmp.eq.s32.totalorder %s9, 1
      %p64 = por %p62, %p63
      %p65 = scmp.ne.s32.totalorder %s57, %s60
      %p66 = scmp.eq.s32.totalorder %s9, 0
      %p67 = por %p65, %p66
      %p68 = scmp.ne.s32.totalorder %s57, %s60
      %p69 = scmp.eq.s32.totalorder %s14, 1
      %p70 = por %p68, %p69
      %p71 = scmp.ne.s32.totalorder %s60, %s61
      %p72 = scmp.eq.s32.totalorder %s14, 0
      %p73 = por %p71, %p72
      %p74 = scmp.ne.s32.totalorder %s60, %s61
      %p75 = scmp.eq.s32.totalorder %s15, 1
      %p76 = por %p74, %p75
      %p78 = scmp.ne.s32.totalorder %s61, %s77
      %p79 = scmp.eq.s32.totalorder %s15, 0
      %p80 = por %p78, %p79
      %s81 = ssub.s32 %s17, %s24
      %p82 = scmp.eq.s32.totalorder %s81, 0
      %s84 = sadd.s32 %s83, 1
      %s85 = scalar_select %p82, %s83, %s84
      %p88 = pneg %p82
      %p89 = scmp.eq.s32.totalorder %s9, 1
      %p90 = por %p88, %p89
      %p91 = scmp.ne.s32.totalorder %s83, %s86
      %p92 = scmp.eq.s32.totalorder %s9, 0
      %p93 = por %p91, %p92
      %p94 = scmp.ne.s32.totalorder %s83, %s86
      %p95 = scmp.eq.s32.totalorder %s14, 1
      %p96 = por %p94, %p95
      %p97 = scmp.ne.s32.totalorder %s86, %s87
      %p98 = scmp.eq.s32.totalorder %s14, 0
      %p99 = por %p97, %p98
      %p100 = scmp.ne.s32.totalorder %s86, %s87
      %p101 = scmp.eq.s32.totalorder %s15, 1
      %p102 = por %p100, %p101
      %p104 = scmp.ne.s32.totalorder %s87, %s103
      %p105 = scmp.eq.s32.totalorder %s15, 0
      %p106 = por %p104, %p105
      %s107 = ssub.s32 %s16, %s28
      %s108 = ssub.s32 %s17, %s24
      %s109 = sor.u32 %s107, %s108
      %p110 = scmp.eq.s32.totalorder %s109, 0
      %s112 = sadd.s32 %s111, 1
      %s113 = scalar_select %p110, %s111, %s112
      %p116 = pneg %p110
      %p117 = scmp.eq.s32.totalorder %s9, 1
      %p118 = por %p116, %p117
      %p119 = scmp.ne.s32.totalorder %s111, %s114
      %p120 = scmp.eq.s32.totalorder %s9, 0
      %p121 = por %p119, %p120
      %p122 = scmp.ne.s32.totalorder %s111, %s114
      %p123 = scmp.eq.s32.totalorder %s14, 1
      %p124 = por %p122, %p123
      %p125 = scmp.ne.s32.totalorder %s114, %s115
      %p126 = scmp.eq.s32.totalorder %s14, 0
      %p127 = por %p125, %p126
      %p128 = scmp.ne.s32.totalorder %s114, %s115
      %p129 = scmp.eq.s32.totalorder %s15, 1
      %p130 = por %p128, %p129
      %p132 = scmp.ne.s32.totalorder %s115, %s131
      %p133 = scmp.eq.s32.totalorder %s15, 0
      %p134 = por %p132, %p133
      %p135 = scmp.le.s32.totalorder 1, %s9
      %p136 = scmp.lt.s32.totalorder %s9, 3
      %p137 = pnand %p135, %p136
      %p138 = pneg %p137
      // Predicated region
      $region9: #{nlayer_discriminator_forward.15} parent=5 // pred_check
        _
      $region10: #{nlayer_discriminator_forward.15} parent=5 // pred_check_branch
        %140 = sbr.rel (%p137) target = $region12
      $region11: #{nlayer_discriminator_forward.15} parent=5 // pred_region
        %s141 = ssub.s32 %s9, 1
        // Predicated region
        $region13: #{nlayer_discriminator_forward.15} parent=11 // pred_check
          %p142 = pneg %p73
        $region14: #{nlayer_discriminator_forward.15} parent=11 // pred_check_branch
          %144 = sbr.rel (%p142) target = $region16
        $region15: #{nlayer_discriminator_forward.15} parent=11 // pred_region
          %p145 = scmp.lt.s32.totalorder %s19, 0
          %s146 = scalar_select %p145, %s19, 0
          %s147 = smul.addr %s146, 4
          %s148 = scalar_lea.vmem %s1, %s147
        $region16: #{nlayer_discriminator_forward.15} parent=11 // pred_fallthru
          _
        // Predicated region
        $region17: #{nlayer_discriminator_forward.15} parent=11 // pred_check
          %p149 = pneg %p99
        $region18: #{nlayer_discriminator_forward.15} parent=11 // pred_check_branch
          %151 = sbr.rel (%p149) target = $region20
        $region19: #{nlayer_discriminator_forward.15} parent=11 // pred_region
          %p152 = scmp.lt.s32.totalorder %s19, 0
          %s153 = scalar_select %p152, %s19, 0
          %s154 = scalar_lea.vmem %s2, %s153
        $region20: #{nlayer_discriminator_forward.15} parent=11 // pred_fallthru
          _
      $region12: #{nlayer_discriminator_forward.15} parent=5 // pred_fallthru
        _
      %p155 = scmp.lt.s32.totalorder %s9, 2
      // Predicated region
      $region21: #{nlayer_discriminator_forward.15} parent=5 // pred_check
        %p156 = pneg %p155
      $region22: #{nlayer_discriminator_forward.15} parent=5 // pred_check_branch
        %158 = sbr.rel (%p156) target = $region24
      $region23: #{nlayer_discriminator_forward.15} parent=5 // pred_region
        // Predicated region
        $region25: #{nlayer_discriminator_forward.15} parent=23 // pred_check
          %p159 = pneg %p41
        $region26: #{nlayer_discriminator_forward.15} parent=23 // pred_check_branch
          %161 = sbr.rel (%p159) target = $region28
        $region27: #{nlayer_discriminator_forward.15} parent=23 // pred_region
          %s162 = smul.u32 2, %s16
          %s163 = ssub.s32 3, %s162
          %p164 = scmp.lt.s32.totalorder %s163, 2
          %s165 = scalar_select %p164, %s163, 2
          %s166 = smul.u32 64, %s165
          %s167 = smul.u32 %s166, 2
          %p168 = scmp.lt.s32.totalorder %s162, 2
          %s169 = scalar_select %p168, %s162, 2
          %s170 = smul.addr %s169, 2
          %s171 = smul.addr %s170, 4
          %s172 = scalar_lea.vmem %s0, %s171
          %s173 = smul.u32 2, %s16
          %s174 = ssub.s32 3, %s173
          %p175 = scmp.lt.s32.totalorder %s174, 2
          %s176 = scalar_select %p175, %s174, 2
          %s177 = smul.u32 64, %s176
          %s178 = smul.u32 %s177, 2
        $region28: #{nlayer_discriminator_forward.15} parent=23 // pred_fallthru
          _
      $region24: #{nlayer_discriminator_forward.15} parent=5 // pred_fallthru
        _
      %p179 = scmp.le.s32.totalorder 1, %s9
      %p180 = scmp.lt.s32.totalorder %s9, 3
      %p181 = pnand %p179, %p180
      %p182 = pneg %p181
      // Predicated region
      $region29: #{nlayer_discriminator_forward.15} parent=5 // pred_check
        _
      $region30: #{nlayer_discriminator_forward.15} parent=5 // pred_check_branch
        %184 = sbr.rel (%p181) target = $region32
      $region31: #{nlayer_discriminator_forward.15} parent=5 // pred_region
        %s185 = ssub.s32 %s9, 1
        %s186 = smul.u32 2, %s18
        %s187 = ssub.s32 3, %s186
        %p188 = scmp.lt.s32.totalorder %s187, 2
        %s189 = scalar_select %p188, %s187, 2
        %s190 = smul.u32 64, %s189
        %s191 = smul.u32 %s190, 2
        %p192 = scmp.lt.s32.totalorder %s186, 2
        %s193 = scalar_select %p192, %s186, 2
        %s194 = smul.addr %s193, 2
        %s195 = smul.addr %s194, 4
        %s196 = scalar_lea.vmem %s0, %s195
        %p197 = pneg %p47
        %p198 = pneg %p44
        %p199 = scmp.lt.s32.totalorder %s19, 0
        %s200 = scalar_select %p199, %s19, 0
        %s201 = smul.addr %s200, 4
        %s202 = scalar_lea.vmem %s1, %s201
        %p203 = pneg %p73
        %p204 = pneg %p70
        %p205 = scmp.lt.s32.totalorder %s19, 0
        %s206 = scalar_select %p205, %s19, 0
        %s207 = scalar_lea.vmem %s2, %s206
        %p208 = pneg %p99
        %p209 = pneg %p96
        %p210 = pneg %p127
        %p211 = pneg %p124
        %s212 = sand.u32 %s114, 1
        %s213 = sand.u32 %s114, 1
        %s214 = smul.addr %s213, 8
        %s215 = scalar_lea.vmem [#allocation2], %s214
        %s216 = smul.u32 2, %s18
        %s217 = ssub.s32 3, %s216
        %p218 = scmp.lt.s32.totalorder %s217, 2
        %s219 = scalar_select %p218, %s217, 2
        %s220 = smul.u32 64, %s219
        %s221 = smul.u32 %s220, 2
        %p222 = scmp.lt.s32.totalorder %s216, 2
        %s223 = scalar_select %p222, %s216, 2
        %s224 = smul.addr %s223, 2
        %s225 = smul.addr %s224, 4
        %s226 = scalar_lea.vmem %s0, %s225
        %s227 = smul.u32 2, %s18
        %s228 = ssub.s32 3, %s227
        %p229 = scmp.lt.s32.totalorder %s228, 2
        %s230 = scalar_select %p229, %s228, 2
        %s231 = smul.u32 64, %s230
        %s232 = smul.u32 %s231, 2
        %p233 = scmp.lt.s32.totalorder %s19, 0
        %s234 = scalar_select %p233, %s19, 0
        %s235 = smul.addr %s234, 4
        %s236 = scalar_lea.vmem %s1, %s235
        %p237 = scmp.lt.s32.totalorder %s19, 0
        %s238 = scalar_select %p237, %s19, 0
        %s239 = scalar_lea.vmem %s2, %s238
        %s240 = smul.u32 2, %s18
        %s241 = ssub.s32 3, %s240
        %p242 = scmp.lt.s32.totalorder %s241, 2
        %s243 = scalar_select %p242, %s241, 2
        %s244 = smul.u32 64, %s243
        %v246 = vld [vmem:[%s226] sm:$0xff]
        %v247 = vld [vmem:[%s226 + $0x8] sm:$0xff]
        %v248 = vld [vmem:[%s236] sm:$0xf]
        %v249 = vld [vmem:[%s236 + $0x4] sm:$0xf]
        %v250 = vld [vmem:[%s236 + $0x8] sm:$0xf]
        %v251 = vld [vmem:[%s236 + $0xc] sm:$0xf]
        %v252 = vld [vmem:[%s236 + $0x10] sm:$0xf]
        %v253 = vld [vmem:[%s236 + $0x14] sm:$0xf]
        %v254 = vld [vmem:[%s236 + $0x18] sm:$0xf]
        %v255 = vld [vmem:[%s236 + $0x1c] sm:$0xf]
        %v256 = vld [vmem:[%s236 + $0x20] sm:$0xf]
        %v257 = vld [vmem:[%s236 + $0x24] sm:$0xf]
        %v258 = vld [vmem:[%s236 + $0x28] sm:$0xf]
        %v259 = vld [vmem:[%s236 + $0x2c] sm:$0xf]
        %v260 = vld [vmem:[%s236 + $0x30] sm:$0xf]
        %v261 = vld [vmem:[%s236 + $0x34] sm:$0xf]
        %v262 = vld [vmem:[%s236 + $0x38] sm:$0xf]
        %v263 = vld [vmem:[%s236 + $0x3c] sm:$0xf]
        %v264 = vld [vmem:[%s236 + $0x40] sm:$0xf]
        %v265 = vld [vmem:[%s236 + $0x44] sm:$0xf]
        %v266 = vld [vmem:[%s236 + $0x48] sm:$0xf]
        %v267 = vld [vmem:[%s236 + $0x4c] sm:$0xf]
        %v268 = vld [vmem:[%s236 + $0x50] sm:$0xf]
        %v269 = vld [vmem:[%s236 + $0x54] sm:$0xf]
        %v270 = vld [vmem:[%s236 + $0x58] sm:$0xf]
        %v271 = vld [vmem:[%s236 + $0x5c] sm:$0xf]
        %v272 = vld [vmem:[%s236 + $0x60] sm:$0xf]
        %v273 = vld [vmem:[%s236 + $0x64] sm:$0xf]
        %v274 = vld [vmem:[%s236 + $0x68] sm:$0xf]
        %v275 = vld [vmem:[%s236 + $0x6c] sm:$0xf]
        %v276 = vld [vmem:[%s236 + $0x70] sm:$0xf]
        %v277 = vld [vmem:[%s236 + $0x74] sm:$0xf]
        %v278 = vld [vmem:[%s236 + $0x78] sm:$0xf]
        %v279 = vld [vmem:[%s236 + $0x7c] sm:$0xf]
        %v280 = vld [vmem:[%s239] sm:$0x1]
        %v282 = vlaneseq
        %v283 = vshrl.u32 %v282, 7
        %v284 = vsub.s32 0, %v283
        %v285 = vrot.slane %v280, %v284
        %v289 = vunpack.c.l.b16 %v246
        %v290 = vunpack.c.h.b16 %v246
        %v291 = vunpack.c.l.b16 %v247
        %v292 = vunpack.c.h.b16 %v247
        %v293 = vpack.c.b16 %v291, %v289
        %v294 = vpack.c.b16 %v292, %v290
        %v329 = vunpack.c.l.b16 %v248
        %v330 = vunpack.c.l.b16 %v249
        %v331 = vunpack.c.l.b16 %v250
        %v332 = vunpack.c.l.b16 %v251
        %v333 = vunpack.c.l.b16 %v252
        %v334 = vunpack.c.l.b16 %v253
        %v335 = vunpack.c.l.b16 %v254
        %v336 = vunpack.c.l.b16 %v255
        %v337 = vunpack.c.l.b16 %v256
        %v338 = vunpack.c.l.b16 %v257
        %v339 = vunpack.c.l.b16 %v258
        %v340 = vunpack.c.l.b16 %v259
        %v341 = vunpack.c.l.b16 %v260
        %v342 = vunpack.c.l.b16 %v261
        %v343 = vunpack.c.l.b16 %v262
        %v344 = vunpack.c.l.b16 %v263
        %v345 = vunpack.c.l.b16 %v264
        %v346 = vunpack.c.l.b16 %v265
        %v347 = vunpack.c.l.b16 %v266
        %v348 = vunpack.c.l.b16 %v267
        %v349 = vunpack.c.l.b16 %v268
        %v350 = vunpack.c.l.b16 %v269
        %v351 = vunpack.c.l.b16 %v270
        %v352 = vunpack.c.l.b16 %v271
        %v353 = vunpack.c.l.b16 %v272
        %v354 = vunpack.c.l.b16 %v273
        %v355 = vunpack.c.l.b16 %v274
        %v356 = vunpack.c.l.b16 %v275
        %v357 = vunpack.c.l.b16 %v276
        %v358 = vunpack.c.l.b16 %v277
        %v359 = vunpack.c.l.b16 %v278
        %v360 = vunpack.c.l.b16 %v279
        %v361 = vpack.c.b16 %v330, %v329
        %v362 = vpack.c.b16 %v332, %v331
        %v363 = vpack.c.b16 %v334, %v333
        %v364 = vpack.c.b16 %v336, %v335
        %v365 = vpack.c.b16 %v338, %v337
        %v366 = vpack.c.b16 %v340, %v339
        %v367 = vpack.c.b16 %v342, %v341
        %v368 = vpack.c.b16 %v344, %v343
        %v369 = vpack.c.b16 %v346, %v345
        %v370 = vpack.c.b16 %v348, %v347
        %v371 = vpack.c.b16 %v350, %v349
        %v372 = vpack.c.b16 %v352, %v351
        %v373 = vpack.c.b16 %v354, %v353
        %v374 = vpack.c.b16 %v356, %v355
        %v375 = vpack.c.b16 %v358, %v357
        %v376 = vpack.c.b16 %v360, %v359
        %393 = vmatprep.subr.bf16.mxu0 0
        %394 = vmatpush1.bf16.msra.mxu0 %v361
        %395 = vmatprep.subr.bf16.mxu0 0
        %396 = vmatpush1.bf16.msra.mxu0 %v362
        %397 = vmatprep.subr.bf16.mxu0 0
        %398 = vmatpush1.bf16.msra.mxu0 %v363
        %399 = vmatprep.subr.bf16.mxu0 0
        %400 = vmatpush1.bf16.msra.mxu0 %v364
        %401 = vmatprep.subr.bf16.mxu0 0
        %402 = vmatpush1.bf16.msra.mxu0 %v365
        %403 = vmatprep.subr.bf16.mxu0 0
        %404 = vmatpush1.bf16.msra.mxu0 %v366
        %405 = vmatprep.subr.bf16.mxu0 0
        %406 = vmatpush1.bf16.msra.mxu0 %v367
        %407 = vmatprep.subr.bf16.mxu0 0
        %408 = vmatpush1.bf16.msra.mxu0 %v368
        %409 = vmatprep.subr.bf16.mxu0 0
        %410 = vmatpush1.bf16.msra.mxu0 %v369
        %411 = vmatprep.subr.bf16.mxu0 0
        %412 = vmatpush1.bf16.msra.mxu0 %v370
        %413 = vmatprep.subr.bf16.mxu0 0
        %414 = vmatpush1.bf16.msra.mxu0 %v371
        %415 = vmatprep.subr.bf16.mxu0 0
        %416 = vmatpush1.bf16.msra.mxu0 %v372
        %417 = vmatprep.subr.bf16.mxu0 0
        %418 = vmatpush1.bf16.msra.mxu0 %v373
        %419 = vmatprep.subr.bf16.mxu0 0
        %420 = vmatpush1.bf16.msra.mxu0 %v374
        %421 = vmatprep.subr.bf16.mxu0 0
        %422 = vmatpush1.bf16.msra.mxu0 %v375
        %423 = vmatprep.subr.bf16.mxu0 0
        %424 = vmatpush1.bf16.msra.mxu0 %v376
        %425 = vmatprep.mubr.bf16.mxu0 %v294
        %426 = vmatmul.mubr.bf16.gmra.mrb[0].mxu0 %v293
        %v427 = vpop.f32.mrb[0].mxu0
        %v428 = vadd.f32 %v285, %v427
        %v429 = vpop.f32.mrb[0].mxu0
        %v430 = vpop.f32.mrb[0].mxu0
        %v431 = vadd.f32 %v285, %v430
        %v432 = vpop.f32.mrb[0].mxu0
        %433 = vdwg.mxu0
        %v434 = vpack.c.bf16 %v431, %v428
        %v436 = vunpack.c.l.b16 %v434
        %v437 = vunpack.c.h.b16 %v434
        %v438 = vpack.c.b16 %v436, %v436
        %v439 = vpack.c.b16 %v437, %v437
        %442 = vst [vmem:[%s215] sm:$0xf] %v438
        %443 = vst [vmem:[%s215 + $0x4] sm:$0xf] %v439
        %s444 = sand.u32 %s114, 1
        %s445 = sand.u32 %s114, 1
        %s446 = smul.addr %s445, 8
        %s447 = scalar_lea.vmem [#allocation2], %s446
        // Predicated region
        $region33: #{nlayer_discriminator_forward.15} parent=31 // pred_check
          %p448 = pneg %p124
        $region34: #{nlayer_discriminator_forward.15} parent=31 // pred_check_branch
          %450 = sbr.rel (%p448) target = $region36
        $region35: #{nlayer_discriminator_forward.15} parent=31 // pred_region
          %s451 = smul.u32 2, %s18
          %s452 = ssub.s32 3, %s451
          %p453 = scmp.lt.s32.totalorder %s452, 2
          %s454 = scalar_select %p453, %s452, 2
          %s455 = smul.u32 64, %s454
          %p456 = scmp.ne.s32.totalorder 0, %s455
          %s457 = sadd.s32 %s19, %s451
          %s458 = smul.addr %s457, 4
          %s459 = scalar_lea.vmem %s3, %s458
          // Predicated region
          $region37: #{nlayer_discriminator_forward.15} parent=35 // pred_check
            %p460 = pneg %p456
          $region38: #{nlayer_discriminator_forward.15} parent=35 // pred_check_branch
            %462 = sbr.rel (%p460) target = $region40
          $region39: #{nlayer_discriminator_forward.15} parent=35 // pred_region
            // Predicated region
            $region41: #{nlayer_discriminator_forward.15} parent=39 // pred_check
              _
            $region42: #{nlayer_discriminator_forward.15} parent=39 // pred_check_branch
              %464 = sbr.rel target = $region44
            $region43: #{nlayer_discriminator_forward.15} parent=39 // pred_region
              // Predicated region
              $region63: #{nlayer_discriminator_forward.15} parent=43 // pred_check
                _
              $region64: #{nlayer_discriminator_forward.15} parent=43 // pred_check_branch
                %515 = sbr.rel (0) target = $region66
              $region65: #{nlayer_discriminator_forward.15} parent=43 // pred_region
                %s517 = sshrl.u32 %s454, 1
                // While loop
                $region67: #{nlayer_discriminator_forward.15} parent=65 // loop_pre_header
                  _
                $region68: #{nlayer_discriminator_forward.15} parent=65 // loop_header
                  %s519 = sphi 0, %s521
                  %p520 = scmp.ge.s32.totalorder %s519, %s517
                  %s524 = sphi 0, %s533
                  %s525 = sphi %s447, %s536
                  %s526 = sphi %s459, %s537
                $region69: #{nlayer_discriminator_forward.15} parent=65 // loop_header_branch
                  %523 = sbr.rel (%p520) target = $region73
                $region70: #{nlayer_discriminator_forward.15} parent=65 // loop_body
                  %v527 = vld [vmem:[%s525] sm:$0xf]
                  %528 = vst [vmem:[%s526] sm:$0xf] %v527
                  %v529 = vld [vmem:[%s525 + $0x4] sm:$0xf]
                  %530 = vst [vmem:[%s526 + $0x4] sm:$0xf] %v529
                  %s531 = sadd.s32 1, %s524
                  %p532 = scmp.ge.s32.totalorder %s531, %s517
                  %s533 = scalar_select %p532, 0, %s531
                  %s534 = smul.u32 %s533, 8
                  %s535 = smul.u32 %s533, 8
                  %s536 = scalar_lea.vmem %s447, %s534 [#allocation2]
                  %s537 = scalar_lea.vmem %s459, %s535
                $region71: #{nlayer_discriminator_forward.15} parent=65 // loop_footer
                  %s521 = sadd.s32 %s519, 1
                $region72: #{nlayer_discriminator_forward.15} parent=65 // loop_footer_branch
                  %518 = sbr.rel target = $region68
                $region73: #{nlayer_discriminator_forward.15} parent=65 // loop_exit
                  _
                %s538 = sshrl.u32 %s454, 1
                %s539 = sand.u32 %s454, 1
                %s540 = smul.u32 %s538, 2
                %s541 = smul.u32 4, %s540
                %s542 = scalar_lea.vmem %s447, %s541 [#allocation2]
                %s543 = smul.u32 4, %s540
                %s544 = scalar_lea.vmem %s459, %s543
                // While loop
                $region74: #{nlayer_discriminator_forward.15} parent=65 // loop_pre_header
                  _
                $region75: #{nlayer_discriminator_forward.15} parent=65 // loop_header
                  %s546 = sphi 0, %s548
                  %p547 = scmp.ge.s32.totalorder %s546, %s539
                  %s551 = sphi 0, %s558
                  %s552 = sphi %s542, %s561
                  %s553 = sphi %s544, %s562
                $region76: #{nlayer_discriminator_forward.15} parent=65 // loop_header_branch
                  %550 = sbr.rel (%p547) target = $region80
                $region77: #{nlayer_discriminator_forward.15} parent=65 // loop_body
                  %v554 = vld [vmem:[%s552] sm:$0xf]
                  %555 = vst [vmem:[%s553] sm:$0xf] %v554
                  %s556 = sadd.s32 1, %s551
                  %p557 = scmp.ge.s32.totalorder %s556, %s539
                  %s558 = scalar_select %p557, 0, %s556
                  %s559 = smul.u32 %s558, 4
                  %s560 = smul.u32 %s558, 4
                  %s561 = scalar_lea.vmem %s542, %s559 [#allocation2]
                  %s562 = scalar_lea.vmem %s544, %s560
                $region78: #{nlayer_discriminator_forward.15} parent=65 // loop_footer
                  %s548 = sadd.s32 %s546, 1
                $region79: #{nlayer_discriminator_forward.15} parent=65 // loop_footer_branch
                  %545 = sbr.rel target = $region75
                $region80: #{nlayer_discriminator_forward.15} parent=65 // loop_exit
                  _
              $region66: #{nlayer_discriminator_forward.15} parent=43 // pred_fallthru
                _
            $region44: #{nlayer_discriminator_forward.15} parent=39 // pred_fallthru
              _
            // Predicated region
            $region45: #{nlayer_discriminator_forward.15} parent=39 // pred_check
              _
            $region46: #{nlayer_discriminator_forward.15} parent=39 // pred_check_branch
              %466 = sbr.rel (0) target = $region48
            $region47: #{nlayer_discriminator_forward.15} parent=39 // pred_region
              %s468 = sshrl.u32 %s454, 1
              // While loop
              $region49: #{nlayer_discriminator_forward.15} parent=47 // loop_pre_header
                _
              $region50: #{nlayer_discriminator_forward.15} parent=47 // loop_header
                %s470 = sphi 0, %s472
                %p471 = scmp.ge.s32.totalorder %s470, %s468
                %s475 = sphi 0, %s484
                %s476 = sphi %s447, %s487
                %s477 = sphi %s459, %s488
              $region51: #{nlayer_discriminator_forward.15} parent=47 // loop_header_branch
                %474 = sbr.rel (%p471) target = $region55
              $region52: #{nlayer_discriminator_forward.15} parent=47 // loop_body
                %v478 = vld [vmem:[%s476] sm:$0xf]
                %479 = vst [vmem:[%s477] sm:$0xf] %v478
                %v480 = vld [vmem:[%s476 + $0x4] sm:$0xf]
                %481 = vst [vmem:[%s477 + $0x4] sm:$0xf] %v480
                %s482 = sadd.s32 1, %s475
                %p483 = scmp.ge.s32.totalorder %s482, %s468
                %s484 = scalar_select %p483, 0, %s482
                %s485 = smul.u32 %s484, 8
                %s486 = smul.u32 %s484, 8
                %s487 = scalar_lea.vmem %s447, %s485 [#allocation2]
                %s488 = scalar_lea.vmem %s459, %s486
              $region53: #{nlayer_discriminator_forward.15} parent=47 // loop_footer
                %s472 = sadd.s32 %s470, 1
              $region54: #{nlayer_discriminator_forward.15} parent=47 // loop_footer_branch
                %469 = sbr.rel target = $region50
              $region55: #{nlayer_discriminator_forward.15} parent=47 // loop_exit
                _
              %s489 = sshrl.u32 %s454, 1
              %s490 = sand.u32 %s454, 1
              %s491 = smul.u32 %s489, 2
              %s492 = smul.u32 4, %s491
              %s493 = scalar_lea.vmem %s447, %s492 [#allocation2]
              %s494 = smul.u32 4, %s491
              %s495 = scalar_lea.vmem %s459, %s494
              // While loop
              $region56: #{nlayer_discriminator_forward.15} parent=47 // loop_pre_header
                _
              $region57: #{nlayer_discriminator_forward.15} parent=47 // loop_header
                %s497 = sphi 0, %s499
                %p498 = scmp.ge.s32.totalorder %s497, %s490
                %s502 = sphi 0, %s509
                %s503 = sphi %s493, %s512
                %s504 = sphi %s495, %s513
              $region58: #{nlayer_discriminator_forward.15} parent=47 // loop_header_branch
                %501 = sbr.rel (%p498) target = $region62
              $region59: #{nlayer_discriminator_forward.15} parent=47 // loop_body
                %v505 = vld [vmem:[%s503] sm:$0xf]
                %506 = vst [vmem:[%s504] sm:$0xf] %v505
                %s507 = sadd.s32 1, %s502
                %p508 = scmp.ge.s32.totalorder %s507, %s490
                %s509 = scalar_select %p508, 0, %s507
                %s510 = smul.u32 %s509, 4
                %s511 = smul.u32 %s509, 4
                %s512 = scalar_lea.vmem %s493, %s510 [#allocation2]
                %s513 = scalar_lea.vmem %s495, %s511
              $region60: #{nlayer_discriminator_forward.15} parent=47 // loop_footer
                %s499 = sadd.s32 %s497, 1
              $region61: #{nlayer_discriminator_forward.15} parent=47 // loop_footer_branch
                %496 = sbr.rel target = $region57
              $region62: #{nlayer_discriminator_forward.15} parent=47 // loop_exit
                _
            $region48: #{nlayer_discriminator_forward.15} parent=39 // pred_fallthru
              _
          $region40: #{nlayer_discriminator_forward.15} parent=35 // pred_fallthru
            _
          %563 = vnop
        $region36: #{nlayer_discriminator_forward.15} parent=31 // pred_fallthru
          _
      $region32: #{nlayer_discriminator_forward.15} parent=5 // pred_fallthru
        _
      %p564 = scmp.le.s32.totalorder 2, %s9
      // Predicated region
      $region81: #{nlayer_discriminator_forward.15} parent=5 // pred_check
        %p565 = pneg %p564
      $region82: #{nlayer_discriminator_forward.15} parent=5 // pred_check_branch
        %567 = sbr.rel (%p565) target = $region84
      $region83: #{nlayer_discriminator_forward.15} parent=5 // pred_region
        %s568 = ssub.s32 %s9, 2
        // Predicated region
        $region85: #{nlayer_discriminator_forward.15} parent=83 // pred_check
          %p569 = pneg %p130
        $region86: #{nlayer_discriminator_forward.15} parent=83 // pred_check_branch
          %571 = sbr.rel (%p569) target = $region88
        $region87: #{nlayer_discriminator_forward.15} parent=83 // pred_region
          %s572 = sand.u32 %s115, 1
          %s573 = sand.u32 %s115, 1
          %s574 = smul.addr %s573, 8
          %s575 = scalar_lea.vmem [#allocation2], %s574
        $region88: #{nlayer_discriminator_forward.15} parent=83 // pred_fallthru
          _
      $region84: #{nlayer_discriminator_forward.15} parent=5 // pred_fallthru
        _
    $region6: #{nlayer_discriminator_forward.15} parent=1 // loop_footer
      %s13 = sadd.s32 1, %s9
    $region7: #{nlayer_discriminator_forward.15} parent=1 // loop_footer_branch
      %8 = sbr.rel target = $region3
    $region8: #{nlayer_discriminator_forward.15} parent=1 // loop_exit
      _

// kernel: nlayer_discriminator_forward.16
$region0: #{nlayer_discriminator_forward.16}
  #allocation0 [shape = 'u32[]', space=smem, size = 0x4, offset = 0x4, fixed_abs, tag = 'smem constant byte address 0x4 - core index']
  #allocation1 [shape = 'u32[144,128]{1,0:T(1,128)}', space=vmem, size = 0x12000, scoped, tag = 'internal scratch']
  %s0 = inlined_call_operand.vmem [shape: bf16[18,128], index: 0, kind: input, shape index: {}]
  %s1 = inlined_call_operand.vmem [shape: f32[2,128], index: 1, kind: output, shape index: {}]
  %s2 = sld [smem:[#allocation0]]
  $region41: #{nlayer_discriminator_forward.16} parent=0
    _
  %s4 = ssub.s32 1, %s2
  %s5 = scalar_select 0, %s4, %s2
  loop: start=0, step=1, limit=4
  $region2: #{nlayer_discriminator_forward.16} parent=0 // loop_pre_header
    _
  $region3: #{nlayer_discriminator_forward.16} parent=0 // loop_header
    %s7 = sphi 0, %s11
    %p8 = scmp.ge.s32.totalorder %s7, 4
    %s17 = sphi 0, %s19
    %s20 = sphi 0, %s17
    %s21 = sphi 0, %s20
    %s37 = sphi 0, %s21
    %s41 = sphi 0, %s41
    %s43 = sphi 0, %s41
    %s44 = sphi 0, %s43
    %s58 = sphi 0, %s44
  $region4: #{nlayer_discriminator_forward.16} parent=0 // loop_header_branch
    %10 = sbr.rel (%p8) target = $region8
  $region5: #{nlayer_discriminator_forward.16} parent=0 // loop_body
    %s12 = ssub.s32 %s7, 1
    %s13 = ssub.s32 %s7, 2
    %s14 = sadd.s32 %s7, 1
    %s15 = ssub.s32 %s7, %s14
    %p16 = scmp.eq.s32.totalorder %s15, 0
    %s18 = sadd.s32 %s17, 1
    %s19 = scalar_select %p16, %s17, %s18
    %p22 = pneg %p16
    %p23 = scmp.eq.s32.totalorder %s7, 1
    %p24 = por %p22, %p23
    %p25 = scmp.ne.s32.totalorder %s17, %s20
    %p26 = scmp.eq.s32.totalorder %s7, 0
    %p27 = por %p25, %p26
    %p28 = scmp.ne.s32.totalorder %s17, %s20
    %p29 = scmp.eq.s32.totalorder %s12, 1
    %p30 = por %p28, %p29
    %p31 = scmp.ne.s32.totalorder %s20, %s21
    %p32 = scmp.eq.s32.totalorder %s12, 0
    %p33 = por %p31, %p32
    %p34 = scmp.ne.s32.totalorder %s20, %s21
    %p35 = scmp.eq.s32.totalorder %s13, 1
    %p36 = por %p34, %p35
    %p38 = scmp.ne.s32.totalorder %s21, %s37
    %p39 = scmp.eq.s32.totalorder %s13, 0
    %p40 = por %p38, %p39
    %s42 = sadd.s32 %s41, 1
    %p45 = scmp.eq.s32.totalorder %s7, 1
    %p46 = scmp.ne.s32.totalorder %s41, %s43
    %p47 = scmp.eq.s32.totalorder %s7, 0
    %p48 = por %p46, %p47
    %p49 = scmp.ne.s32.totalorder %s41, %s43
    %p50 = scmp.eq.s32.totalorder %s12, 1
    %p51 = por %p49, %p50
    %p52 = scmp.ne.s32.totalorder %s43, %s44
    %p53 = scmp.eq.s32.totalorder %s12, 0
    %p54 = por %p52, %p53
    %p55 = scmp.ne.s32.totalorder %s43, %s44
    %p56 = scmp.eq.s32.totalorder %s13, 1
    %p57 = por %p55, %p56
    %p59 = scmp.ne.s32.totalorder %s44, %s58
    %p60 = scmp.eq.s32.totalorder %s13, 0
    %p61 = por %p59, %p60
    %p62 = scmp.le.s32.totalorder 1, %s7
    %p63 = scmp.lt.s32.totalorder %s7, 3
    %p64 = pnand %p62, %p63
    %p65 = pneg %p64
    // Predicated region
    $region9: #{nlayer_discriminator_forward.16} parent=5 // pred_check
      _
    $region10: #{nlayer_discriminator_forward.16} parent=5 // pred_check_branch
      %67 = sbr.rel (%p64) target = $region12
    $region11: #{nlayer_discriminator_forward.16} parent=5 // pred_region
      %s68 = ssub.s32 %s7, 1
    $region12: #{nlayer_discriminator_forward.16} parent=5 // pred_fallthru
      _
    %p69 = scmp.lt.s32.totalorder %s7, 2
    // Predicated region
    $region13: #{nlayer_discriminator_forward.16} parent=5 // pred_check
      %p70 = pneg %p69
    $region14: #{nlayer_discriminator_forward.16} parent=5 // pred_check_branch
      %72 = sbr.rel (%p70) target = $region16
    $region15: #{nlayer_discriminator_forward.16} parent=5 // pred_region
      // Predicated region
      $region17: #{nlayer_discriminator_forward.16} parent=15 // pred_check
        %p73 = pneg %p27
      $region18: #{nlayer_discriminator_forward.16} parent=15 // pred_check_branch
        %75 = sbr.rel (%p73) target = $region20
      $region19: #{nlayer_discriminator_forward.16} parent=15 // pred_region
        %s76 = smul.u32 2, %s7
        %s77 = ssub.s32 3, %s76
        %p78 = scmp.lt.s32.totalorder %s77, 2
        %s79 = scalar_select %p78, %s77, 2
        %s80 = smul.u32 64, %s79
        %p81 = scmp.lt.s32.totalorder %s76, 2
        %s82 = scalar_select %p81, %s76, 2
        %s83 = smul.addr %s82, 4
        %s84 = scalar_lea.vmem %s0, %s83
        %s85 = smul.u32 2, %s7
        %s86 = ssub.s32 3, %s85
        %p87 = scmp.lt.s32.totalorder %s86, 2
        %s88 = scalar_select %p87, %s86, 2
        %s89 = smul.u32 64, %s88
      $region20: #{nlayer_discriminator_forward.16} parent=15 // pred_fallthru
        _
    $region16: #{nlayer_discriminator_forward.16} parent=5 // pred_fallthru
      _
    %p90 = scmp.le.s32.totalorder 1, %s7
    %p91 = scmp.lt.s32.totalorder %s7, 3
    %p92 = pnand %p90, %p91
    %p93 = pneg %p92
    // Predicated region
    $region21: #{nlayer_discriminator_forward.16} parent=5 // pred_check
      _
    $region22: #{nlayer_discriminator_forward.16} parent=5 // pred_check_branch
      %95 = sbr.rel (%p92) target = $region24
    $region23: #{nlayer_discriminator_forward.16} parent=5 // pred_region
      %s96 = ssub.s32 %s7, 1
      %s97 = smul.u32 2, %s12
      %s98 = ssub.s32 3, %s97
      %p99 = scmp.lt.s32.totalorder %s98, 2
      %s100 = scalar_select %p99, %s98, 2
      %s101 = smul.u32 64, %s100
      %p102 = scmp.lt.s32.totalorder %s97, 2
      %s103 = scalar_select %p102, %s97, 2
      %s104 = smul.addr %s103, 4
      %s105 = scalar_lea.vmem %s0, %s104
      %p106 = pneg %p33
      %p107 = pneg %p30
      %p108 = pneg %p54
      %p109 = pneg %p51
      %s110 = smul.u32 2, %s12
      %s111 = ssub.s32 3, %s110
      %p112 = scmp.lt.s32.totalorder %s111, 2
      %s113 = scalar_select %p112, %s111, 2
      %s114 = smul.u32 64, %s113
      %p115 = scmp.lt.s32.totalorder %s110, 2
      %s116 = scalar_select %p115, %s110, 2
      %s117 = smul.addr %s116, 4
      %s118 = scalar_lea.vmem %s0, %s117
      %s119 = smul.u32 2, %s12
      %s120 = ssub.s32 3, %s119
      %p121 = scmp.lt.s32.totalorder %s120, 2
      %s122 = scalar_select %p121, %s120, 2
      %s123 = smul.u32 64, %s122
      %p124 = scmp.eq.s32.totalorder %s12, 0
      // Predicated region
      $region25: #{nlayer_discriminator_forward.16} parent=23 // pred_check
        %p125 = pneg %p124
      $region26: #{nlayer_discriminator_forward.16} parent=23 // pred_check_branch
        %127 = sbr.rel (%p125) target = $region28
      $region27: #{nlayer_discriminator_forward.16} parent=23 // pred_region
        %128 = vst [vmem:[%s1] sm:$0x3] 0.0
      $region28: #{nlayer_discriminator_forward.16} parent=23 // pred_fallthru
        _
      %v129 = vld [vmem:[%s118] sm:$0xf]
      %v130 = vld [vmem:[%s118 + $0x4] sm:$0xf]
      %v131 = vunpack.c.l.bf16 %v129
      %v132 = vunpack.c.l.bf16 %v130
      %v133 = vlaneseq
      %v134 = vshrl.u32 %v133, 7
      %v135 = vadd.s32 %v134, 8
      %s136 = smul.u32 %s12, 16
      %v137 = vstv %s136
      %v138 = vadd.s32 %v134, %v137
      %v139 = vadd.s32 %v135, %v137
      %vm140 = vcmp.lt.s32.totalorder %v138, 18
      %vm141 = vcmp.lt.s32.totalorder %v139, 18
      %v142 = vsel %vm140, %v131, 0.0
      %v143 = vsel %vm141, %v132, 0.0
      %v144 = vadd.f32 %v142, %v143
      %v145 = vrot.slane %v144, 4
      %v146 = vadd.f32 %v144, %v145
      %v147 = vrot.slane %v146, 2
      %v148 = vadd.f32 %v146, %v147
      %v149 = vrot.slane %v148, 1
      %v150 = vadd.f32 %v148, %v149
      %v151 = vmul.f32 %v142, %v142
      %v152 = vmul.f32 %v143, %v143
      %v153 = vadd.f32 %v151, %v152
      %v154 = vrot.slane %v153, 4
      %v155 = vadd.f32 %v153, %v154
      %v156 = vrot.slane %v155, 2
      %v157 = vadd.f32 %v155, %v156
      %v158 = vrot.slane %v157, 1
      %v159 = vadd.f32 %v157, %v158
      %v160 = vld [vmem:[%s1] sm:$0x3]
      %vm161 = vcmask 1040384
      %v162 = vsel %vm161, %v150, %v159
      %v163 = vadd.f32 %v160, %v162
      %164 = vst [vmem:[%s1] sm:$0x3] %v163
      // Predicated region
      $region29: #{nlayer_discriminator_forward.16} parent=23 // pred_check
        %p165 = pneg %p51
      $region30: #{nlayer_discriminator_forward.16} parent=23 // pred_check_branch
        %167 = sbr.rel (%p165) target = $region32
      $region31: #{nlayer_discriminator_forward.16} parent=23 // pred_region
        _
      $region32: #{nlayer_discriminator_forward.16} parent=23 // pred_fallthru
        _
      // Predicated region
      $region33: #{nlayer_discriminator_forward.16} parent=23 // pred_check
        %p168 = pneg %p51
      $region34: #{nlayer_discriminator_forward.16} parent=23 // pred_check_branch
        %170 = sbr.rel (%p168) target = $region36
      $region35: #{nlayer_discriminator_forward.16} parent=23 // pred_region
        _
      $region36: #{nlayer_discriminator_forward.16} parent=23 // pred_fallthru
        _
    $region24: #{nlayer_discriminator_forward.16} parent=5 // pred_fallthru
      _
    %p171 = scmp.le.s32.totalorder 2, %s7
    // Predicated region
    $region37: #{nlayer_discriminator_forward.16} parent=5 // pred_check
      %p172 = pneg %p171
    $region38: #{nlayer_discriminator_forward.16} parent=5 // pred_check_branch
      %174 = sbr.rel (%p172) target = $region40
    $region39: #{nlayer_discriminator_forward.16} parent=5 // pred_region
      %s175 = ssub.s32 %s7, 2
    $region40: #{nlayer_discriminator_forward.16} parent=5 // pred_fallthru
      _
  $region6: #{nlayer_discriminator_forward.16} parent=0 // loop_footer
    %s11 = sadd.s32 1, %s7
  $region7: #{nlayer_discriminator_forward.16} parent=0 // loop_footer_branch
    %6 = sbr.rel target = $region3
  $region8: #{nlayer_discriminator_forward.16} parent=0 // loop_exit
    _

// kernel: nlayer_discriminator_forward.17
$region0: #{nlayer_discriminator_forward.17}
  #allocation0 [shape = 'u32[]', space=smem, size = 0x4, offset = 0x4, fixed_abs, tag = 'smem constant byte address 0x4 - core index']
  #allocation1 [shape = 'u32[144,128]{1,0:T(1,128)}', space=vmem, size = 0x12000, scoped, tag = 'internal scratch']
  %s0 = inlined_call_operand.vmem [shape: bf16[18,128], index: 0, kind: input, shape index: {}]
  %s1 = inlined_call_operand.vmem [shape: f32[1,128], index: 1, kind: input, shape index: {}]
  %s2 = inlined_call_operand.vmem [shape: f32[1,128], index: 2, kind: input, shape index: {}]
  %s3 = inlined_call_operand.vmem [shape: bf16[18,128], index: 3, kind: output, shape index: {}]
  %s4 = sld [smem:[#allocation0]]
  $region89: #{nlayer_discriminator_forward.17} parent=0
    _
  %s6 = ssub.s32 1, %s4
  %s7 = scalar_select 0, %s6, %s4
  $region1: #{nlayer_discriminator_forward.17} parent=0
    #allocation2 [shape = 'u8[8192]{0}', space=vmem, size = 0x2000, scoped, tag = 'output window, operand 0']
    loop: start=0, step=1, limit=4
    $region2: #{nlayer_discriminator_forward.17} parent=1 // loop_pre_header
      _
    $region3: #{nlayer_discriminator_forward.17} parent=1 // loop_header
      %s9 = sphi 0, %s13
      %p10 = scmp.ge.s32.totalorder %s9, 4
      %s19 = sphi 0, %s21
      %s22 = sphi 0, %s19
      %s23 = sphi 0, %s22
      %s39 = sphi 0, %s23
      %s43 = sphi 0, %s43
      %s45 = sphi 0, %s43
      %s46 = sphi 0, %s45
      %s60 = sphi 0, %s46
      %s64 = sphi 0, %s64
      %s66 = sphi 0, %s64
      %s67 = sphi 0, %s66
      %s81 = sphi 0, %s67
      %s87 = sphi 0, %s89
      %s90 = sphi 0, %s87
      %s91 = sphi 0, %s90
      %s107 = sphi 0, %s91
    $region4: #{nlayer_discriminator_forward.17} parent=1 // loop_header_branch
      %12 = sbr.rel (%p10) target = $region8
    $region5: #{nlayer_discriminator_forward.17} parent=1 // loop_body
      %s14 = ssub.s32 %s9, 1
      %s15 = ssub.s32 %s9, 2
      %s16 = sadd.s32 %s9, 1
      %s17 = ssub.s32 %s9, %s16
      %p18 = scmp.eq.s32.totalorder %s17, 0
      %s20 = sadd.s32 %s19, 1
      %s21 = scalar_select %p18, %s19, %s20
      %p24 = pneg %p18
      %p25 = scmp.eq.s32.totalorder %s9, 1
      %p26 = por %p24, %p25
      %p27 = scmp.ne.s32.totalorder %s19, %s22
      %p28 = scmp.eq.s32.totalorder %s9, 0
      %p29 = por %p27, %p28
      %p30 = scmp.ne.s32.totalorder %s19, %s22
      %p31 = scmp.eq.s32.totalorder %s14, 1
      %p32 = por %p30, %p31
      %p33 = scmp.ne.s32.totalorder %s22, %s23
      %p34 = scmp.eq.s32.totalorder %s14, 0
      %p35 = por %p33, %p34
      %p36 = scmp.ne.s32.totalorder %s22, %s23
      %p37 = scmp.eq.s32.totalorder %s15, 1
      %p38 = por %p36, %p37
      %p40 = scmp.ne.s32.totalorder %s23, %s39
      %p41 = scmp.eq.s32.totalorder %s15, 0
      %p42 = por %p40, %p41
      %s44 = sadd.s32 %s43, 1
      %p47 = scmp.eq.s32.totalorder %s9, 1
      %p48 = scmp.ne.s32.totalorder %s43, %s45
      %p49 = scmp.eq.s32.totalorder %s9, 0
      %p50 = por %p48, %p49
      %p51 = scmp.ne.s32.totalorder %s43, %s45
      %p52 = scmp.eq.s32.totalorder %s14, 1
      %p53 = por %p51, %p52
      %p54 = scmp.ne.s32.totalorder %s45, %s46
      %p55 = scmp.eq.s32.totalorder %s14, 0
      %p56 = por %p54, %p55
      %p57 = scmp.ne.s32.totalorder %s45, %s46
      %p58 = scmp.eq.s32.totalorder %s15, 1
      %p59 = por %p57, %p58
      %p61 = scmp.ne.s32.totalorder %s46, %s60
      %p62 = scmp.eq.s32.totalorder %s15, 0
      %p63 = por %p61, %p62
      %s65 = sadd.s32 %s64, 1
      %p68 = scmp.eq.s32.totalorder %s9, 1
      %p69 = scmp.ne.s32.totalorder %s64, %s66
      %p70 = scmp.eq.s32.totalorder %s9, 0
      %p71 = por %p69, %p70
      %p72 = scmp.ne.s32.totalorder %s64, %s66
      %p73 = scmp.eq.s32.totalorder %s14, 1
      %p74 = por %p72, %p73
      %p75 = scmp.ne.s32.totalorder %s66, %s67
      %p76 = scmp.eq.s32.totalorder %s14, 0
      %p77 = por %p75, %p76
      %p78 = scmp.ne.s32.totalorder %s66, %s67
      %p79 = scmp.eq.s32.totalorder %s15, 1
      %p80 = por %p78, %p79
      %p82 = scmp.ne.s32.totalorder %s67, %s81
      %p83 = scmp.eq.s32.totalorder %s15, 0
      %p84 = por %p82, %p83
      %s85 = ssub.s32 %s9, %s16
      %p86 = scmp.eq.s32.totalorder %s85, 0
      %s88 = sadd.s32 %s87, 1
      %s89 = scalar_select %p86, %s87, %s88
      %p92 = pneg %p86
      %p93 = scmp.eq.s32.totalorder %s9, 1
      %p94 = por %p92, %p93
      %p95 = scmp.ne.s32.totalorder %s87, %s90
      %p96 = scmp.eq.s32.totalorder %s9, 0
      %p97 = por %p95, %p96
      %p98 = scmp.ne.s32.totalorder %s87, %s90
      %p99 = scmp.eq.s32.totalorder %s14, 1
      %p100 = por %p98, %p99
      %p101 = scmp.ne.s32.totalorder %s90, %s91
      %p102 = scmp.eq.s32.totalorder %s14, 0
      %p103 = por %p101, %p102
      %p104 = scmp.ne.s32.totalorder %s90, %s91
      %p105 = scmp.eq.s32.totalorder %s15, 1
      %p106 = por %p104, %p105
      %p108 = scmp.ne.s32.totalorder %s91, %s107
      %p109 = scmp.eq.s32.totalorder %s15, 0
      %p110 = por %p108, %p109
      %p111 = scmp.le.s32.totalorder 1, %s9
      %p112 = scmp.lt.s32.totalorder %s9, 3
      %p113 = pnand %p111, %p112
      %p114 = pneg %p113
      // Predicated region
      $region9: #{nlayer_discriminator_forward.17} parent=5 // pred_check
        _
      $region10: #{nlayer_discriminator_forward.17} parent=5 // pred_check_branch
        %116 = sbr.rel (%p113) target = $region12
      $region11: #{nlayer_discriminator_forward.17} parent=5 // pred_region
        %s117 = ssub.s32 %s9, 1
        // Predicated region
        $region13: #{nlayer_discriminator_forward.17} parent=11 // pred_check
          %p118 = pneg %p56
        $region14: #{nlayer_discriminator_forward.17} parent=11 // pred_check_branch
          %120 = sbr.rel (%p118) target = $region16
        $region15: #{nlayer_discriminator_forward.17} parent=11 // pred_region
          _
        $region16: #{nlayer_discriminator_forward.17} parent=11 // pred_fallthru
          _
        // Predicated region
        $region17: #{nlayer_discriminator_forward.17} parent=11 // pred_check
          %p121 = pneg %p77
        $region18: #{nlayer_discriminator_forward.17} parent=11 // pred_check_branch
          %123 = sbr.rel (%p121) target = $region20
        $region19: #{nlayer_discriminator_forward.17} parent=11 // pred_region
          _
        $region20: #{nlayer_discriminator_forward.17} parent=11 // pred_fallthru
          _
      $region12: #{nlayer_discriminator_forward.17} parent=5 // pred_fallthru
        _
      %p124 = scmp.lt.s32.totalorder %s9, 2
      // Predicated region
      $region21: #{nlayer_discriminator_forward.17} parent=5 // pred_check
        %p125 = pneg %p124
      $region22: #{nlayer_discriminator_forward.17} parent=5 // pred_check_branch
        %127 = sbr.rel (%p125) target = $region24
      $region23: #{nlayer_discriminator_forward.17} parent=5 // pred_region
        // Predicated region
        $region25: #{nlayer_discriminator_forward.17} parent=23 // pred_check
          %p128 = pneg %p29
        $region26: #{nlayer_discriminator_forward.17} parent=23 // pred_check_branch
          %130 = sbr.rel (%p128) target = $region28
        $region27: #{nlayer_discriminator_forward.17} parent=23 // pred_region
          %s131 = smul.u32 2, %s9
          %s132 = ssub.s32 3, %s131
          %p133 = scmp.lt.s32.totalorder %s132, 2
          %s134 = scalar_select %p133, %s132, 2
          %s135 = smul.u32 64, %s134
          %p136 = scmp.lt.s32.totalorder %s131, 2
          %s137 = scalar_select %p136, %s131, 2
          %s138 = smul.addr %s137, 4
          %s139 = scalar_lea.vmem %s0, %s138
          %s140 = smul.u32 2, %s9
          %s141 = ssub.s32 3, %s140
          %p142 = scmp.lt.s32.totalorder %s141, 2
          %s143 = scalar_select %p142, %s141, 2
          %s144 = smul.u32 64, %s143
        $region28: #{nlayer_discriminator_forward.17} parent=23 // pred_fallthru
          _
      $region24: #{nlayer_discriminator_forward.17} parent=5 // pred_fallthru
        _
      %p145 = scmp.le.s32.totalorder 1, %s9
      %p146 = scmp.lt.s32.totalorder %s9, 3
      %p147 = pnand %p145, %p146
      %p148 = pneg %p147
      // Predicated region
      $region29: #{nlayer_discriminator_forward.17} parent=5 // pred_check
        _
      $region30: #{nlayer_discriminator_forward.17} parent=5 // pred_check_branch
        %150 = sbr.rel (%p147) target = $region32
      $region31: #{nlayer_discriminator_forward.17} parent=5 // pred_region
        %s151 = ssub.s32 %s9, 1
        %s152 = smul.u32 2, %s14
        %s153 = ssub.s32 3, %s152
        %p154 = scmp.lt.s32.totalorder %s153, 2
        %s155 = scalar_select %p154, %s153, 2
        %s156 = smul.u32 64, %s155
        %p157 = scmp.lt.s32.totalorder %s152, 2
        %s158 = scalar_select %p157, %s152, 2
        %s159 = smul.addr %s158, 4
        %s160 = scalar_lea.vmem %s0, %s159
        %p161 = pneg %p35
        %p162 = pneg %p32
        %p163 = pneg %p56
        %p164 = pneg %p53
        %p165 = pneg %p77
        %p166 = pneg %p74
        %p167 = pneg %p103
        %p168 = pneg %p100
        %s169 = sand.u32 %s90, 1
        %s170 = sand.u32 %s90, 1
        %s171 = smul.addr %s170, 8
        %s172 = scalar_lea.vmem [#allocation2], %s171
        %s173 = smul.u32 2, %s14
        %s174 = ssub.s32 3, %s173
        %p175 = scmp.lt.s32.totalorder %s174, 2
        %s176 = scalar_select %p175, %s174, 2
        %s177 = smul.u32 64, %s176
        %p178 = scmp.lt.s32.totalorder %s173, 2
        %s179 = scalar_select %p178, %s173, 2
        %s180 = smul.addr %s179, 4
        %s181 = scalar_lea.vmem %s0, %s180
        %s182 = smul.u32 2, %s14
        %s183 = ssub.s32 3, %s182
        %p184 = scmp.lt.s32.totalorder %s183, 2
        %s185 = scalar_select %p184, %s183, 2
        %s186 = smul.u32 64, %s185
        %s187 = smul.u32 2, %s14
        %s188 = ssub.s32 3, %s187
        %p189 = scmp.lt.s32.totalorder %s188, 2
        %s190 = scalar_select %p189, %s188, 2
        %s191 = smul.u32 64, %s190
        %v192 = vld [vmem:[%s181] sm:$0xf]
        %v193 = vld [vmem:[%s181 + $0x4] sm:$0xf]
        %v194 = vunpack.c.l.bf16 %v192
        %v195 = vunpack.c.l.bf16 %v193
        %v196 = vld [vmem:[%s1] sm:$0x1]
        %v198 = vlaneseq
        %v199 = vshrl.u32 %v198, 7
        %v200 = vsub.s32 0, %v199
        %v201 = vrot.slane %v196, %v200
        %v203 = vmul.f32 %v194, %v201
        %v204 = vmul.f32 %v195, %v201
        %v205 = vld [vmem:[%s2] sm:$0x1]
        %v207 = vlaneseq
        %v208 = vshrl.u32 %v207, 7
        %v209 = vsub.s32 0, %v208
        %v210 = vrot.slane %v205, %v209
        %v212 = vadd.f32 %v203, %v210
        %v213 = vadd.f32 %v204, %v210
        %vm214 = vcmp.ge.f32.partialorder %v212, 0.0
        %vm215 = vcmp.ge.f32.partialorder %v213, 0.0
        %v216 = vmul.f32 %v212, 0.2
        %v217 = vmul.f32 %v213, 0.2
        %v218 = vsel %vm214, %v212, %v216
        %v219 = vsel %vm215, %v213, %v217
        %v220 = vpack.c.bf16 %v219, %v218
        %v222 = vunpack.c.l.b16 %v220
        %v223 = vunpack.c.h.b16 %v220
        %v224 = vpack.c.b16 %v222, %v222
        %v225 = vpack.c.b16 %v223, %v223
        %228 = vst [vmem:[%s172] sm:$0xf] %v224
        %229 = vst [vmem:[%s172 + $0x4] sm:$0xf] %v225
        %s230 = sand.u32 %s90, 1
        %s231 = sand.u32 %s90, 1
        %s232 = smul.addr %s231, 8
        %s233 = scalar_lea.vmem [#allocation2], %s232
        // Predicated region
        $region33: #{nlayer_discriminator_forward.17} parent=31 // pred_check
          %p234 = pneg %p100
        $region34: #{nlayer_discriminator_forward.17} parent=31 // pred_check_branch
          %236 = sbr.rel (%p234) target = $region36
        $region35: #{nlayer_discriminator_forward.17} parent=31 // pred_region
          %s237 = smul.u32 2, %s14
          %s238 = ssub.s32 3, %s237
          %p239 = scmp.lt.s32.totalorder %s238, 2
          %s240 = scalar_select %p239, %s238, 2
          %s241 = smul.u32 64, %s240
          %p242 = scmp.ne.s32.totalorder 0, %s241
          %s243 = smul.addr %s237, 4
          %s244 = scalar_lea.vmem %s3, %s243
          // Predicated region
          $region37: #{nlayer_discriminator_forward.17} parent=35 // pred_check
            %p245 = pneg %p242
          $region38: #{nlayer_discriminator_forward.17} parent=35 // pred_check_branch
            %247 = sbr.rel (%p245) target = $region40
          $region39: #{nlayer_discriminator_forward.17} parent=35 // pred_region
            // Predicated region
            $region41: #{nlayer_discriminator_forward.17} parent=39 // pred_check
              _
            $region42: #{nlayer_discriminator_forward.17} parent=39 // pred_check_branch
              %249 = sbr.rel target = $region44
            $region43: #{nlayer_discriminator_forward.17} parent=39 // pred_region
              // Predicated region
              $region63: #{nlayer_discriminator_forward.17} parent=43 // pred_check
                _
              $region64: #{nlayer_discriminator_forward.17} parent=43 // pred_check_branch
                %300 = sbr.rel (0) target = $region66
              $region65: #{nlayer_discriminator_forward.17} parent=43 // pred_region
                %s302 = sshrl.u32 %s240, 1
                // While loop
                $region67: #{nlayer_discriminator_forward.17} parent=65 // loop_pre_header
                  _
                $region68: #{nlayer_discriminator_forward.17} parent=65 // loop_header
                  %s304 = sphi 0, %s306
                  %p305 = scmp.ge.s32.totalorder %s304, %s302
                  %s309 = sphi 0, %s318
                  %s310 = sphi %s233, %s321
                  %s311 = sphi %s244, %s322
                $region69: #{nlayer_discriminator_forward.17} parent=65 // loop_header_branch
                  %308 = sbr.rel (%p305) target = $region73
                $region70: #{nlayer_discriminator_forward.17} parent=65 // loop_body
                  %v312 = vld [vmem:[%s310] sm:$0xf]
                  %313 = vst [vmem:[%s311] sm:$0xf] %v312
                  %v314 = vld [vmem:[%s310 + $0x4] sm:$0xf]
                  %315 = vst [vmem:[%s311 + $0x4] sm:$0xf] %v314
                  %s316 = sadd.s32 1, %s309
                  %p317 = scmp.ge.s32.totalorder %s316, %s302
                  %s318 = scalar_select %p317, 0, %s316
                  %s319 = smul.u32 %s318, 8
                  %s320 = smul.u32 %s318, 8
                  %s321 = scalar_lea.vmem %s233, %s319 [#allocation2]
                  %s322 = scalar_lea.vmem %s244, %s320
                $region71: #{nlayer_discriminator_forward.17} parent=65 // loop_footer
                  %s306 = sadd.s32 %s304, 1
                $region72: #{nlayer_discriminator_forward.17} parent=65 // loop_footer_branch
                  %303 = sbr.rel target = $region68
                $region73: #{nlayer_discriminator_forward.17} parent=65 // loop_exit
                  _
                %s323 = sshrl.u32 %s240, 1
                %s324 = sand.u32 %s240, 1
                %s325 = smul.u32 %s323, 2
                %s326 = smul.u32 4, %s325
                %s327 = scalar_lea.vmem %s233, %s326 [#allocation2]
                %s328 = smul.u32 4, %s325
                %s329 = scalar_lea.vmem %s244, %s328
                // While loop
                $region74: #{nlayer_discriminator_forward.17} parent=65 // loop_pre_header
                  _
                $region75: #{nlayer_discriminator_forward.17} parent=65 // loop_header
                  %s331 = sphi 0, %s333
                  %p332 = scmp.ge.s32.totalorder %s331, %s324
                  %s336 = sphi 0, %s343
                  %s337 = sphi %s327, %s346
                  %s338 = sphi %s329, %s347
                $region76: #{nlayer_discriminator_forward.17} parent=65 // loop_header_branch
                  %335 = sbr.rel (%p332) target = $region80
                $region77: #{nlayer_discriminator_forward.17} parent=65 // loop_body
                  %v339 = vld [vmem:[%s337] sm:$0xf]
                  %340 = vst [vmem:[%s338] sm:$0xf] %v339
                  %s341 = sadd.s32 1, %s336
                  %p342 = scmp.ge.s32.totalorder %s341, %s324
                  %s343 = scalar_select %p342, 0, %s341
                  %s344 = smul.u32 %s343, 4
                  %s345 = smul.u32 %s343, 4
                  %s346 = scalar_lea.vmem %s327, %s344 [#allocation2]
                  %s347 = scalar_lea.vmem %s329, %s345
                $region78: #{nlayer_discriminator_forward.17} parent=65 // loop_footer
                  %s333 = sadd.s32 %s331, 1
                $region79: #{nlayer_discriminator_forward.17} parent=65 // loop_footer_branch
                  %330 = sbr.rel target = $region75
                $region80: #{nlayer_discriminator_forward.17} parent=65 // loop_exit
                  _
              $region66: #{nlayer_discriminator_forward.17} parent=43 // pred_fallthru
                _
            $region44: #{nlayer_discriminator_forward.17} parent=39 // pred_fallthru
              _
            // Predicated region
            $region45: #{nlayer_discriminator_forward.17} parent=39 // pred_check
              _
            $region46: #{nlayer_discriminator_forward.17} parent=39 // pred_check_branch
              %251 = sbr.rel (0) target = $region48
            $region47: #{nlayer_discriminator_forward.17} parent=39 // pred_region
              %s253 = sshrl.u32 %s240, 1
              // While loop
              $region49: #{nlayer_discriminator_forward.17} parent=47 // loop_pre_header
                _
              $region50: #{nlayer_discriminator_forward.17} parent=47 // loop_header
                %s255 = sphi 0, %s257
                %p256 = scmp.ge.s32.totalorder %s255, %s253
                %s260 = sphi 0, %s269
                %s261 = sphi %s233, %s272
                %s262 = sphi %s244, %s273
              $region51: #{nlayer_discriminator_forward.17} parent=47 // loop_header_branch
                %259 = sbr.rel (%p256) target = $region55
              $region52: #{nlayer_discriminator_forward.17} parent=47 // loop_body
                %v263 = vld [vmem:[%s261] sm:$0xf]
                %264 = vst [vmem:[%s262] sm:$0xf] %v263
                %v265 = vld [vmem:[%s261 + $0x4] sm:$0xf]
                %266 = vst [vmem:[%s262 + $0x4] sm:$0xf] %v265
                %s267 = sadd.s32 1, %s260
                %p268 = scmp.ge.s32.totalorder %s267, %s253
                %s269 = scalar_select %p268, 0, %s267
                %s270 = smul.u32 %s269, 8
                %s271 = smul.u32 %s269, 8
                %s272 = scalar_lea.vmem %s233, %s270 [#allocation2]
                %s273 = scalar_lea.vmem %s244, %s271
              $region53: #{nlayer_discriminator_forward.17} parent=47 // loop_footer
                %s257 = sadd.s32 %s255, 1
              $region54: #{nlayer_discriminator_forward.17} parent=47 // loop_footer_branch
                %254 = sbr.rel target = $region50
              $region55: #{nlayer_discriminator_forward.17} parent=47 // loop_exit
                _
              %s274 = sshrl.u32 %s240, 1
              %s275 = sand.u32 %s240, 1
              %s276 = smul.u32 %s274, 2
              %s277 = smul.u32 4, %s276
              %s278 = scalar_lea.vmem %s233, %s277 [#allocation2]
              %s279 = smul.u32 4, %s276
              %s280 = scalar_lea.vmem %s244, %s279
              // While loop
              $region56: #{nlayer_discriminator_forward.17} parent=47 // loop_pre_header
                _
              $region57: #{nlayer_discriminator_forward.17} parent=47 // loop_header
                %s282 = sphi 0, %s284
                %p283 = scmp.ge.s32.totalorder %s282, %s275
                %s287 = sphi 0, %s294
                %s288 = sphi %s278, %s297
                %s289 = sphi %s280, %s298
              $region58: #{nlayer_discriminator_forward.17} parent=47 // loop_header_branch
                %286 = sbr.rel (%p283) target = $region62
              $region59: #{nlayer_discriminator_forward.17} parent=47 // loop_body
                %v290 = vld [vmem:[%s288] sm:$0xf]
                %291 = vst [vmem:[%s289] sm:$0xf] %v290
                %s292 = sadd.s32 1, %s287
                %p293 = scmp.ge.s32.totalorder %s292, %s275
                %s294 = scalar_select %p293, 0, %s292
                %s295 = smul.u32 %s294, 4
                %s296 = smul.u32 %s294, 4
                %s297 = scalar_lea.vmem %s278, %s295 [#allocation2]
                %s298 = scalar_lea.vmem %s280, %s296
              $region60: #{nlayer_discriminator_forward.17} parent=47 // loop_footer
                %s284 = sadd.s32 %s282, 1
              $region61: #{nlayer_discriminator_forward.17} parent=47 // loop_footer_branch
                %281 = sbr.rel target = $region57
              $region62: #{nlayer_discriminator_forward.17} parent=47 // loop_exit
                _
            $region48: #{nlayer_discriminator_forward.17} parent=39 // pred_fallthru
              _
          $region40: #{nlayer_discriminator_forward.17} parent=35 // pred_fallthru
            _
          %348 = vnop
        $region36: #{nlayer_discriminator_forward.17} parent=31 // pred_fallthru
          _
      $region32: #{nlayer_discriminator_forward.17} parent=5 // pred_fallthru
        _
      %p349 = scmp.le.s32.totalorder 2, %s9
      // Predicated region
      $region81: #{nlayer_discriminator_forward.17} parent=5 // pred_check
        %p350 = pneg %p349
      $region82: #{nlayer_discriminator_forward.17} parent=5 // pred_check_branch
        %352 = sbr.rel (%p350) target = $region84
      $region83: #{nlayer_discriminator_forward.17} parent=5 // pred_region
        %s353 = ssub.s32 %s9, 2
        // Predicated region
        $region85: #{nlayer_discriminator_forward.17} parent=83 // pred_check
          %p354 = pneg %p106
        $region86: #{nlayer_discriminator_forward.17} parent=83 // pred_check_branch
          %356 = sbr.rel (%p354) target = $region88
        $region87: #{nlayer_discriminator_forward.17} parent=83 // pred_region
          %s357 = sand.u32 %s91, 1
          %s358 = sand.u32 %s91, 1
          %s359 = smul.addr %s358, 8
          %s360 = scalar_lea.vmem [#allocation2], %s359
        $region88: #{nlayer_discriminator_forward.17} parent=83 // pred_fallthru
          _
      $region84: #{nlayer_discriminator_forward.17} parent=5 // pred_fallthru
        _
    $region6: #{nlayer_discriminator_forward.17} parent=1 // loop_footer
      %s13 = sadd.s32 1, %s9
    $region7: #{nlayer_discriminator_forward.17} parent=1 // loop_footer_branch
      %8 = sbr.rel target = $region3
    $region8: #{nlayer_discriminator_forward.17} parent=1 // loop_exit
      _

// kernel: nlayer_discriminator_forward.18
$region0: #{nlayer_discriminator_forward.18}
  #allocation0 [shape = 'u32[]', space=smem, size = 0x4, offset = 0x4, fixed_abs, tag = 'smem constant byte address 0x4 - core index']
  #allocation1 [shape = 'u32[144,128]{1,0:T(1,128)}', space=vmem, size = 0x12000, scoped, tag = 'internal scratch']
  %s0 = inlined_call_operand.vmem [shape: bf16[32,512], index: 0, kind: input, shape index: {}]
  %s1 = inlined_call_operand.vmem [shape: bf16[512,128], index: 1, kind: input, shape index: {}]
  %s2 = inlined_call_operand.vmem [shape: f32[1,128], index: 2, kind: input, shape index: {}]
  %s3 = inlined_call_operand.vmem [shape: bf16[32,128], index: 3, kind: output, shape index: {}]
  %s4 = sld [smem:[#allocation0]]
  $region22: #{nlayer_discriminator_forward.18} parent=0
    _
  %s6 = ssub.s32 1, %s4
  %s7 = scalar_select 0, %s6, %s4
  // Predicated region
  $region2: #{nlayer_discriminator_forward.18} parent=0 // pred_check
    _
  $region3: #{nlayer_discriminator_forward.18} parent=0 // pred_check_branch
    %9 = sbr.rel (0) target = $region5
  $region4: #{nlayer_discriminator_forward.18} parent=0 // pred_region
    _
  $region5: #{nlayer_discriminator_forward.18} parent=0 // pred_fallthru
    _
  // Predicated region
  $region6: #{nlayer_discriminator_forward.18} parent=0 // pred_check
    _
  $region7: #{nlayer_discriminator_forward.18} parent=0 // pred_check_branch
    %11 = sbr.rel (0) target = $region9
  $region8: #{nlayer_discriminator_forward.18} parent=0 // pred_region
    _
  $region9: #{nlayer_discriminator_forward.18} parent=0 // pred_fallthru
    _
  // Predicated region
  $region10: #{nlayer_discriminator_forward.18} parent=0 // pred_check
    _
  $region11: #{nlayer_discriminator_forward.18} parent=0 // pred_check_branch
    %13 = sbr.rel (0) target = $region13
  $region12: #{nlayer_discriminator_forward.18} parent=0 // pred_region
    _
  $region13: #{nlayer_discriminator_forward.18} parent=0 // pred_fallthru
    _
  %v15 = vld [vmem:[%s0] sm:$0xff]
  %v16 = vld [vmem:[%s0 + $0x8] sm:$0xff]
  %v17 = vld [vmem:[%s0 + $0x10] sm:$0xff]
  %v18 = vld [vmem:[%s0 + $0x18] sm:$0xff]
  %v19 = vld [vmem:[%s0 + $0x20] sm:$0xff]
  %v20 = vld [vmem:[%s0 + $0x28] sm:$0xff]
  %v21 = vld [vmem:[%s0 + $0x30] sm:$0xff]
  %v22 = vld [vmem:[%s0 + $0x38] sm:$0xff]
  %v23 = vld [vmem:[%s1] sm:$0xf]
  %v24 = vld [vmem:[%s1 + $0x4] sm:$0xf]
  %v25 = vld [vmem:[%s1 + $0x8] sm:$0xf]
  %v26 = vld [vmem:[%s1 + $0xc] sm:$0xf]
  %v27 = vld [vmem:[%s1 + $0x10] sm:$0xf]
  %v28 = vld [vmem:[%s1 + $0x14] sm:$0xf]
  %v29 = vld [vmem:[%s1 + $0x18] sm:$0xf]
  %v30 = vld [vmem:[%s1 + $0x1c] sm:$0xf]
  %v31 = vld [vmem:[%s1 + $0x20] sm:$0xf]
  %v32 = vld [vmem:[%s1 + $0x24] sm:$0xf]
  %v33 = vld [vmem:[%s1 + $0x28] sm:$0xf]
  %v34 = vld [vmem:[%s1 + $0x2c] sm:$0xf]
  %v35 = vld [vmem:[%s1 + $0x30] sm:$0xf]
  %v36 = vld [vmem:[%s1 + $0x34] sm:$0xf]
  %v37 = vld [vmem:[%s1 + $0x38] sm:$0xf]
  %v38 = vld [vmem:[%s1 + $0x3c] sm:$0xf]
  %v39 = vld [vmem:[%s1 + $0x40] sm:$0xf]
  %v40 = vld [vmem:[%s1 + $0x44] sm:$0xf]
  %v41 = vld [vmem:[%s1 + $0x48] sm:$0xf]
  %v42 = vld [vmem:[%s1 + $0x4c] sm:$0xf]
  %v43 = vld [vmem:[%s1 + $0x50] sm:$0xf]
  %v44 = vld [vmem:[%s1 + $0x54] sm:$0xf]
  %v45 = vld [vmem:[%s1 + $0x58] sm:$0xf]
  %v46 = vld [vmem:[%s1 + $0x5c] sm:$0xf]
  %v47 = vld [vmem:[%s1 + $0x60] sm:$0xf]
  %v48 = vld [vmem:[%s1 + $0x64] sm:$0xf]
  %v49 = vld [vmem:[%s1 + $0x68] sm:$0xf]
  %v50 = vld [vmem:[%s1 + $0x6c] sm:$0xf]
  %v51 = vld [vmem:[%s1 + $0x70] sm:$0xf]
  %v52 = vld [vmem:[%s1 + $0x74] sm:$0xf]
  %v53 = vld [vmem:[%s1 + $0x78] sm:$0xf]
  %v54 = vld [vmem:[%s1 + $0x7c] sm:$0xf]
  %v55 = vld [vmem:[%s1 + $0x80] sm:$0xf]
  %v56 = vld [vmem:[%s1 + $0x84] sm:$0xf]
  %v57 = vld [vmem:[%s1 + $0x88] sm:$0xf]
  %v58 = vld [vmem:[%s1 + $0x8c] sm:$0xf]
  %v59 = vld [vmem:[%s1 + $0x90] sm:$0xf]
  %v60 = vld [vmem:[%s1 + $0x94] sm:$0xf]
  %v61 = vld [vmem:[%s1 + $0x98] sm:$0xf]
  %v62 = vld [vmem:[%s1 + $0x9c] sm:$0xf]
  %v63 = vld [vmem:[%s1 + $0xa0] sm:$0xf]
  %v64 = vld [vmem:[%s1 + $0xa4] sm:$0xf]
  %v65 = vld [vmem:[%s1 + $0xa8] sm:$0xf]
  %v66 = vld [vmem:[%s1 + $0xac] sm:$0xf]
  %v67 = vld [vmem:[%s1 + $0xb0] sm:$0xf]
  %v68 = vld [vmem:[%s1 + $0xb4] sm:$0xf]
  %v69 = vld [vmem:[%s1 + $0xb8] sm:$0xf]
  %v70 = vld [vmem:[%s1 + $0xbc] sm:$0xf]
  %v71 = vld [vmem:[%s1 + $0xc0] sm:$0xf]
  %v72 = vld [vmem:[%s1 + $0xc4] sm:$0xf]
  %v73 = vld [vmem:[%s1 + $0xc8] sm:$0xf]
  %v74 = vld [vmem:[%s1 + $0xcc] sm:$0xf]
  %v75 = vld [vmem:[%s1 + $0xd0] sm:$0xf]
  %v76 = vld [vmem:[%s1 + $0xd4] sm:$0xf]
  %v77 = vld [vmem:[%s1 + $0xd8] sm:$0xf]
  %v78 = vld [vmem:[%s1 + $0xdc] sm:$0xf]
  %v79 = vld [vmem:[%s1 + $0xe0] sm:$0xf]
  %v80 = vld [vmem:[%s1 + $0xe4] sm:$0xf]
  %v81 = vld [vmem:[%s1 + $0xe8] sm:$0xf]
  %v82 = vld [vmem:[%s1 + $0xec] sm:$0xf]
  %v83 = vld [vmem:[%s1 + $0xf0] sm:$0xf]
  %v84 = vld [vmem:[%s1 + $0xf4] sm:$0xf]
  %v85 = vld [vmem:[%s1 + $0xf8] sm:$0xf]
  %v86 = vld [vmem:[%s1 + $0xfc] sm:$0xf]
  %v87 = vld [vmem:[%s2] sm:$0x1]
  %v89 = vlaneseq
  %v90 = vshrl.u32 %v89, 7
  %v91 = vsub.s32 0, %v90
  %v92 = vrot.slane %v87, %v91
  %v102 = vunpack.c.l.b16 %v15
  %v103 = vunpack.c.h.b16 %v15
  %v104 = vunpack.c.l.b16 %v16
  %v105 = vunpack.c.h.b16 %v16
  %v106 = vunpack.c.l.b16 %v17
  %v107 = vunpack.c.h.b16 %v17
  %v108 = vunpack.c.l.b16 %v18
  %v109 = vunpack.c.h.b16 %v18
  %v110 = vunpack.c.l.b16 %v19
  %v111 = vunpack.c.h.b16 %v19
  %v112 = vunpack.c.l.b16 %v20
  %v113 = vunpack.c.h.b16 %v20
  %v114 = vunpack.c.l.b16 %v21
  %v115 = vunpack.c.h.b16 %v21
  %v116 = vunpack.c.l.b16 %v22
  %v117 = vunpack.c.h.b16 %v22
  %v118 = vpack.c.b16 %v106, %v102
  %v119 = vpack.c.b16 %v107, %v103
  %v120 = vpack.c.b16 %v108, %v104
  %v121 = vpack.c.b16 %v109, %v105
  %v122 = vpack.c.b16 %v114, %v110
  %v123 = vpack.c.b16 %v115, %v111
  %v124 = vpack.c.b16 %v116, %v112
  %v125 = vpack.c.b16 %v117, %v113
  %v198 = vunpack.c.l.b16 %v23
  %v199 = vunpack.c.l.b16 %v24
  %v200 = vunpack.c.l.b16 %v25
  %v201 = vunpack.c.l.b16 %v26
  %v202 = vunpack.c.l.b16 %v27
  %v203 = vunpack.c.l.b16 %v28
  %v204 = vunpack.c.l.b16 %v29
  %v205 = vunpack.c.l.b16 %v30
  %v206 = vunpack.c.l.b16 %v31
  %v207 = vunpack.c.l.b16 %v32
  %v208 = vunpack.c.l.b16 %v33
  %v209 = vunpack.c.l.b16 %v34
  %v210 = vunpack.c.l.b16 %v35
  %v211 = vunpack.c.l.b16 %v36
  %v212 = vunpack.c.l.b16 %v37
  %v213 = vunpack.c.l.b16 %v38
  %v214 = vunpack.c.l.b16 %v39
  %v215 = vunpack.c.l.b16 %v40
  %v216 = vunpack.c.l.b16 %v41
  %v217 = vunpack.c.l.b16 %v42
  %v218 = vunpack.c.l.b16 %v43
  %v219 = vunpack.c.l.b16 %v44
  %v220 = vunpack.c.l.b16 %v45
  %v221 = vunpack.c.l.b16 %v46
  %v222 = vunpack.c.l.b16 %v47
  %v223 = vunpack.c.l.b16 %v48
  %v224 = vunpack.c.l.b16 %v49
  %v225 = vunpack.c.l.b16 %v50
  %v226 = vunpack.c.l.b16 %v51
  %v227 = vunpack.c.l.b16 %v52
  %v228 = vunpack.c.l.b16 %v53
  %v229 = vunpack.c.l.b16 %v54
  %v230 = vunpack.c.l.b16 %v55
  %v231 = vunpack.c.l.b16 %v56
  %v232 = vunpack.c.l.b16 %v57
  %v233 = vunpack.c.l.b16 %v58
  %v234 = vunpack.c.l.b16 %v59
  %v235 = vunpack.c.l.b16 %v60
  %v236 = vunpack.c.l.b16 %v61
  %v237 = vunpack.c.l.b16 %v62
  %v238 = vunpack.c.l.b16 %v63
  %v239 = vunpack.c.l.b16 %v64
  %v240 = vunpack.c.l.b16 %v65
  %v241 = vunpack.c.l.b16 %v66
  %v242 = vunpack.c.l.b16 %v67
  %v243 = vunpack.c.l.b16 %v68
  %v244 = vunpack.c.l.b16 %v69
  %v245 = vunpack.c.l.b16 %v70
  %v246 = vunpack.c.l.b16 %v71
  %v247 = vunpack.c.l.b16 %v72
  %v248 = vunpack.c.l.b16 %v73
  %v249 = vunpack.c.l.b16 %v74
  %v250 = vunpack.c.l.b16 %v75
  %v251 = vunpack.c.l.b16 %v76
  %v252 = vunpack.c.l.b16 %v77
  %v253 = vunpack.c.l.b16 %v78
  %v254 = vunpack.c.l.b16 %v79
  %v255 = vunpack.c.l.b16 %v80
  %v256 = vunpack.c.l.b16 %v81
  %v257 = vunpack.c.l.b16 %v82
  %v258 = vunpack.c.l.b16 %v83
  %v259 = vunpack.c.l.b16 %v84
  %v260 = vunpack.c.l.b16 %v85
  %v261 = vunpack.c.l.b16 %v86
  %v262 = vpack.c.b16 %v199, %v198
  %v263 = vpack.c.b16 %v201, %v200
  %v264 = vpack.c.b16 %v203, %v202
  %v265 = vpack.c.b16 %v205, %v204
  %v266 = vpack.c.b16 %v207, %v206
  %v267 = vpack.c.b16 %v209, %v208
  %v268 = vpack.c.b16 %v211, %v210
  %v269 = vpack.c.b16 %v213, %v212
  %v270 = vpack.c.b16 %v215, %v214
  %v271 = vpack.c.b16 %v217, %v216
  %v272 = vpack.c.b16 %v219, %v218
  %v273 = vpack.c.b16 %v221, %v220
  %v274 = vpack.c.b16 %v223, %v222
  %v275 = vpack.c.b16 %v225, %v224
  %v276 = vpack.c.b16 %v227, %v226
  %v277 = vpack.c.b16 %v229, %v228
  %v278 = vpack.c.b16 %v231, %v230
  %v279 = vpack.c.b16 %v233, %v232
  %v280 = vpack.c.b16 %v235, %v234
  %v281 = vpack.c.b16 %v237, %v236
  %v282 = vpack.c.b16 %v239, %v238
  %v283 = vpack.c.b16 %v241, %v240
  %v284 = vpack.c.b16 %v243, %v242
  %v285 = vpack.c.b16 %v245, %v244
  %v286 = vpack.c.b16 %v247, %v246
  %v287 = vpack.c.b16 %v249, %v248
  %v288 = vpack.c.b16 %v251, %v250
  %v289 = vpack.c.b16 %v253, %v252
  %v290 = vpack.c.b16 %v255, %v254
  %v291 = vpack.c.b16 %v257, %v256
  %v292 = vpack.c.b16 %v259, %v258
  %v293 = vpack.c.b16 %v261, %v260
  %326 = vmatprep.subr.bf16.mxu0 0
  %327 = vmatpush1.bf16.msra.mxu0 %v262
  %328 = vmatprep.subr.bf16.mxu0 0
  %329 = vmatpush1.bf16.msra.mxu0 %v263
  %330 = vmatprep.subr.bf16.mxu0 0
  %331 = vmatpush1.bf16.msra.mxu0 %v264
  %332 = vmatprep.subr.bf16.mxu0 0
  %333 = vmatpush1.bf16.msra.mxu0 %v265
  %334 = vmatprep.subr.bf16.mxu0 0
  %335 = vmatpush1.bf16.msra.mxu0 %v266
  %336 = vmatprep.subr.bf16.mxu0 0
  %337 = vmatpush1.bf16.msra.mxu0 %v267
  %338 = vmatprep.subr.bf16.mxu0 0
  %339 = vmatpush1.bf16.msra.mxu0 %v268
  %340 = vmatprep.subr.bf16.mxu0 0
  %341 = vmatpush1.bf16.msra.mxu0 %v269
  %342 = vmatprep.subr.bf16.mxu0 0
  %343 = vmatpush1.bf16.msra.mxu0 %v270
  %344 = vmatprep.subr.bf16.mxu0 0
  %345 = vmatpush1.bf16.msra.mxu0 %v271
  %346 = vmatprep.subr.bf16.mxu0 0
  %347 = vmatpush1.bf16.msra.mxu0 %v272
  %348 = vmatprep.subr.bf16.mxu0 0
  %349 = vmatpush1.bf16.msra.mxu0 %v273
  %350 = vmatprep.subr.bf16.mxu0 0
  %351 = vmatpush1.bf16.msra.mxu0 %v274
  %352 = vmatprep.subr.bf16.mxu0 0
  %353 = vmatpush1.bf16.msra.mxu0 %v275
  %354 = vmatprep.subr.bf16.mxu0 0
  %355 = vmatpush1.bf16.msra.mxu0 %v276
  %356 = vmatprep.subr.bf16.mxu0 0
  %357 = vmatpush1.bf16.msra.mxu0 %v277
  %358 = vmatprep.mubr.bf16.mxu0 %v119
  %359 = vmatmul.mubr.bf16.gmra.mrb[0].mxu0 %v118
  %v360 = vpop.f32.mrb[0].mxu0
  %v361 = vadd.f32 %v92, %v360
  %v362 = vpop.f32.mrb[0].mxu0
  %v363 = vpop.f32.mrb[0].mxu0
  %v364 = vadd.f32 %v92, %v363
  %v365 = vpop.f32.mrb[0].mxu0
  %366 = vmatprep.mubr.bf16.mxu0 %v123
  %367 = vmatmul.mubr.bf16.gmra.mrb[0].mxu0 %v122
  %v368 = vpop.f32.mrb[0].mxu0
  %v369 = vadd.f32 %v92, %v368
  %v370 = vpop.f32.mrb[0].mxu0
  %v371 = vpop.f32.mrb[0].mxu0
  %v372 = vadd.f32 %v92, %v371
  %v373 = vpop.f32.mrb[0].mxu0
  %374 = vdwg.mxu0
  %375 = vmatprep.subr.bf16.mxu0 0
  %376 = vmatpush1.bf16.msra.mxu0 %v278
  %377 = vmatprep.subr.bf16.mxu0 0
  %378 = vmatpush1.bf16.msra.mxu0 %v279
  %379 = vmatprep.subr.bf16.mxu0 0
  %380 = vmatpush1.bf16.msra.mxu0 %v280
  %381 = vmatprep.subr.bf16.mxu0 0
  %382 = vmatpush1.bf16.msra.mxu0 %v281
  %383 = vmatprep.subr.bf16.mxu0 0
  %384 = vmatpush1.bf16.msra.mxu0 %v282
  %385 = vmatprep.subr.bf16.mxu0 0
  %386 = vmatpush1.bf16.msra.mxu0 %v283
  %387 = vmatprep.subr.bf16.mxu0 0
  %388 = vmatpush1.bf16.msra.mxu0 %v284
  %389 = vmatprep.subr.bf16.mxu0 0
  %390 = vmatpush1.bf16.msra.mxu0 %v285
  %391 = vmatprep.subr.bf16.mxu0 0
  %392 = vmatpush1.bf16.msra.mxu0 %v286
  %393 = vmatprep.subr.bf16.mxu0 0
  %394 = vmatpush1.bf16.msra.mxu0 %v287
  %395 = vmatprep.subr.bf16.mxu0 0
  %396 = vmatpush1.bf16.msra.mxu0 %v288
  %397 = vmatprep.subr.bf16.mxu0 0
  %398 = vmatpush1.bf16.msra.mxu0 %v289
  %399 = vmatprep.subr.bf16.mxu0 0
  %400 = vmatpush1.bf16.msra.mxu0 %v290
  %401 = vmatprep.subr.bf16.mxu0 0
  %402 = vmatpush1.bf16.msra.mxu0 %v291
  %403 = vmatprep.subr.bf16.mxu0 0
  %404 = vmatpush1.bf16.msra.mxu0 %v292
  %405 = vmatprep.subr.bf16.mxu0 0
  %406 = vmatpush1.bf16.msra.mxu0 %v293
  %407 = vmatprep.mubr.bf16.mxu0 %v121
  %408 = vmatmul.mubr.bf16.gmra.mrb[0].mxu0 %v120
  %v409 = vpop.f32.mrb[0].mxu0
  %v410 = vadd.f32 %v361, %v409
  %v411 = vpop.f32.mrb[0].mxu0
  %v412 = vpop.f32.mrb[0].mxu0
  %v413 = vadd.f32 %v364, %v412
  %v414 = vpop.f32.mrb[0].mxu0
  %415 = vmatprep.mubr.bf16.mxu0 %v125
  %416 = vmatmul.mubr.bf16.gmra.mrb[0].mxu0 %v124
  %v417 = vpop.f32.mrb[0].mxu0
  %v418 = vadd.f32 %v369, %v417
  %v419 = vpop.f32.mrb[0].mxu0
  %v420 = vpop.f32.mrb[0].mxu0
  %v421 = vadd.f32 %v372, %v420
  %v422 = vpop.f32.mrb[0].mxu0
  %423 = vdwg.mxu0
  %v424 = vpack.c.bf16 %v413, %v410
  %v425 = vpack.c.bf16 %v421, %v418
  %v428 = vunpack.c.l.b16 %v424
  %v429 = vunpack.c.h.b16 %v424
  %v430 = vunpack.c.l.b16 %v425
  %v431 = vunpack.c.h.b16 %v425
  %v432 = vpack.c.b16 %v428, %v428
  %v433 = vpack.c.b16 %v429, %v429
  %v434 = vpack.c.b16 %v430, %v430
  %v435 = vpack.c.b16 %v431, %v431
  %440 = vst [vmem:[%s3] sm:$0xf] %v432
  %441 = vst [vmem:[%s3 + $0x4] sm:$0xf] %v433
  %442 = vst [vmem:[%s3 + $0x8] sm:$0xf] %v434
  %443 = vst [vmem:[%s3 + $0xc] sm:$0xf] %v435
  // Predicated region
  $region14: #{nlayer_discriminator_forward.18} parent=0 // pred_check
    _
  $region15: #{nlayer_discriminator_forward.18} parent=0 // pred_check_branch
    %445 = sbr.rel (0) target = $region17
  $region16: #{nlayer_discriminator_forward.18} parent=0 // pred_region
    _
  $region17: #{nlayer_discriminator_forward.18} parent=0 // pred_fallthru
    _
  // Predicated region
  $region18: #{nlayer_discriminator_forward.18} parent=0 // pred_check
    _
  $region19: #{nlayer_discriminator_forward.18} parent=0 // pred_check_branch
    %447 = sbr.rel (0) target = $region21
  $region20: #{nlayer_discriminator_forward.18} parent=0 // pred_region
    _
  $region21: #{nlayer_discriminator_forward.18} parent=0 // pred_fallthru
    _

// kernel: nlayer_discriminator_forward.19
$region0: #{nlayer_discriminator_forward.19}
  #allocation0 [shape = 'u32[]', space=smem, size = 0x4, offset = 0x4, fixed_abs, tag = 'smem constant byte address 0x4 - core index']
  #allocation1 [shape = 'u32[144,128]{1,0:T(1,128)}', space=vmem, size = 0x12000, scoped, tag = 'internal scratch']
  %s0 = inlined_call_operand.vmem [shape: bf16[32,128], index: 0, kind: input, shape index: {}]
  %s1 = inlined_call_operand.vmem [shape: f32[2,128], index: 1, kind: output, shape index: {}]
  %s2 = sld [smem:[#allocation0]]
  $region18: #{nlayer_discriminator_forward.19} parent=0
    _
  %s4 = ssub.s32 1, %s2
  %s5 = scalar_select 0, %s4, %s2
  // Predicated region
  $region2: #{nlayer_discriminator_forward.19} parent=0 // pred_check
    _
  $region3: #{nlayer_discriminator_forward.19} parent=0 // pred_check_branch
    %7 = sbr.rel (0) target = $region5
  $region4: #{nlayer_discriminator_forward.19} parent=0 // pred_region
    _
  $region5: #{nlayer_discriminator_forward.19} parent=0 // pred_fallthru
    _
  %p8 = scmp.eq.s32.totalorder 0, 0
  // Predicated region
  $region6: #{nlayer_discriminator_forward.19} parent=0 // pred_check
    %p9 = pneg %p8
  $region7: #{nlayer_discriminator_forward.19} parent=0 // pred_check_branch
    %11 = sbr.rel (%p9) target = $region9
  $region8: #{nlayer_discriminator_forward.19} parent=0 // pred_region
    %12 = vst [vmem:[%s1] sm:$0x3] 0.0
  $region9: #{nlayer_discriminator_forward.19} parent=0 // pred_fallthru
    _
  %v13 = vld [vmem:[%s0] sm:$0xf]
  %v14 = vld [vmem:[%s0 + $0x4] sm:$0xf]
  %v15 = vld [vmem:[%s0 + $0x8] sm:$0xf]
  %v16 = vld [vmem:[%s0 + $0xc] sm:$0xf]
  %v17 = vunpack.c.l.bf16 %v13
  %v18 = vunpack.c.l.bf16 %v14
  %v19 = vunpack.c.l.bf16 %v15
  %v20 = vunpack.c.l.bf16 %v16
  %v21 = vlaneseq
  %v22 = vshrl.u32 %v21, 7
  %v23 = vadd.s32 %v22, 8
  %v24 = vadd.s32 %v22, 16
  %v25 = vadd.s32 %v22, 24
  %s26 = smul.u32 0, 32
  %v27 = vstv %s26
  %v28 = vadd.s32 %v22, %v27
  %v29 = vadd.s32 %v23, %v27
  %v30 = vadd.s32 %v24, %v27
  %v31 = vadd.s32 %v25, %v27
  %vm32 = vcmp.lt.s32.totalorder %v28, 32
  %vm33 = vcmp.lt.s32.totalorder %v29, 32
  %vm34 = vcmp.lt.s32.totalorder %v30, 32
  %vm35 = vcmp.lt.s32.totalorder %v31, 32
  %v36 = vsel %vm32, %v17, 0.0
  %v37 = vsel %vm33, %v18, 0.0
  %v38 = vsel %vm34, %v19, 0.0
  %v39 = vsel %vm35, %v20, 0.0
  %v40 = vadd.f32 %v36, %v37
  %v41 = vadd.f32 %v40, %v38
  %v42 = vadd.f32 %v41, %v39
  %v43 = vrot.slane %v42, 4
  %v44 = vadd.f32 %v42, %v43
  %v45 = vrot.slane %v44, 2
  %v46 = vadd.f32 %v44, %v45
  %v47 = vrot.slane %v46, 1
  %v48 = vadd.f32 %v46, %v47
  %v49 = vmul.f32 %v36, %v36
  %v50 = vmul.f32 %v37, %v37
  %v51 = vmul.f32 %v38, %v38
  %v52 = vmul.f32 %v39, %v39
  %v53 = vadd.f32 %v49, %v50
  %v54 = vadd.f32 %v53, %v51
  %v55 = vadd.f32 %v54, %v52
  %v56 = vrot.slane %v55, 4
  %v57 = vadd.f32 %v55, %v56
  %v58 = vrot.slane %v57, 2
  %v59 = vadd.f32 %v57, %v58
  %v60 = vrot.slane %v59, 1
  %v61 = vadd.f32 %v59, %v60
  %v62 = vld [vmem:[%s1] sm:$0x3]
  %vm63 = vcmask 1040384
  %v64 = vsel %vm63, %v48, %v61
  %v65 = vadd.f32 %v62, %v64
  %66 = vst [vmem:[%s1] sm:$0x3] %v65
  // Predicated region
  $region10: #{nlayer_discriminator_forward.19} parent=0 // pred_check
    _
  $region11: #{nlayer_discriminator_forward.19} parent=0 // pred_check_branch
    %68 = sbr.rel (0) target = $region13
  $region12: #{nlayer_discriminator_forward.19} parent=0 // pred_region
    _
  $region13: #{nlayer_discriminator_forward.19} parent=0 // pred_fallthru
    _
  // Predicated region
  $region14: #{nlayer_discriminator_forward.19} parent=0 // pred_check
    _
  $region15: #{nlayer_discriminator_forward.19} parent=0 // pred_check_branch
    %70 = sbr.rel (0) target = $region17
  $region16: #{nlayer_discriminator_forward.19} parent=0 // pred_region
    _
  $region17: #{nlayer_discriminator_forward.19} parent=0 // pred_fallthru
    _

// kernel: nlayer_discriminator_forward.20
$region0: #{nlayer_discriminator_forward.20}
  #allocation0 [shape = 'u32[]', space=smem, size = 0x4, offset = 0x4, fixed_abs, tag = 'smem constant byte address 0x4 - core index']
  #allocation1 [shape = 'u32[144,128]{1,0:T(1,128)}', space=vmem, size = 0x12000, scoped, tag = 'internal scratch']
  %s0 = inlined_call_operand.vmem [shape: bf16[32,128], index: 0, kind: input, shape index: {}]
  %s1 = inlined_call_operand.vmem [shape: f32[1,128], index: 1, kind: input, shape index: {}]
  %s2 = inlined_call_operand.vmem [shape: f32[1,128], index: 2, kind: input, shape index: {}]
  %s3 = inlined_call_operand.vmem [shape: bf16[32,128], index: 3, kind: output, shape index: {}]
  %s4 = sld [smem:[#allocation0]]
  $region22: #{nlayer_discriminator_forward.20} parent=0
    _
  %s6 = ssub.s32 1, %s4
  %s7 = scalar_select 0, %s6, %s4
  // Predicated region
  $region2: #{nlayer_discriminator_forward.20} parent=0 // pred_check
    _
  $region3: #{nlayer_discriminator_forward.20} parent=0 // pred_check_branch
    %9 = sbr.rel (0) target = $region5
  $region4: #{nlayer_discriminator_forward.20} parent=0 // pred_region
    _
  $region5: #{nlayer_discriminator_forward.20} parent=0 // pred_fallthru
    _
  // Predicated region
  $region6: #{nlayer_discriminator_forward.20} parent=0 // pred_check
    _
  $region7: #{nlayer_discriminator_forward.20} parent=0 // pred_check_branch
    %11 = sbr.rel (0) target = $region9
  $region8: #{nlayer_discriminator_forward.20} parent=0 // pred_region
    _
  $region9: #{nlayer_discriminator_forward.20} parent=0 // pred_fallthru
    _
  // Predicated region
  $region10: #{nlayer_discriminator_forward.20} parent=0 // pred_check
    _
  $region11: #{nlayer_discriminator_forward.20} parent=0 // pred_check_branch
    %13 = sbr.rel (0) target = $region13
  $region12: #{nlayer_discriminator_forward.20} parent=0 // pred_region
    _
  $region13: #{nlayer_discriminator_forward.20} parent=0 // pred_fallthru
    _
  %v14 = vld [vmem:[%s0] sm:$0xf]
  %v15 = vld [vmem:[%s0 + $0x4] sm:$0xf]
  %v16 = vld [vmem:[%s0 + $0x8] sm:$0xf]
  %v17 = vld [vmem:[%s0 + $0xc] sm:$0xf]
  %v18 = vunpack.c.l.bf16 %v14
  %v19 = vunpack.c.l.bf16 %v15
  %v20 = vunpack.c.l.bf16 %v16
  %v21 = vunpack.c.l.bf16 %v17
  %v22 = vld [vmem:[%s1] sm:$0x1]
  %v24 = vlaneseq
  %v25 = vshrl.u32 %v24, 7
  %v26 = vsub.s32 0, %v25
  %v27 = vrot.slane %v22, %v26
  %v29 = vmul.f32 %v18, %v27
  %v30 = vmul.f32 %v19, %v27
  %v31 = vmul.f32 %v20, %v27
  %v32 = vmul.f32 %v21, %v27
  %v33 = vld [vmem:[%s2] sm:$0x1]
  %v35 = vlaneseq
  %v36 = vshrl.u32 %v35, 7
  %v37 = vsub.s32 0, %v36
  %v38 = vrot.slane %v33, %v37
  %v40 = vadd.f32 %v29, %v38
  %v41 = vadd.f32 %v30, %v38
  %v42 = vadd.f32 %v31, %v38
  %v43 = vadd.f32 %v32, %v38
  %vm44 = vcmp.ge.f32.partialorder %v40, 0.0
  %vm45 = vcmp.ge.f32.partialorder %v41, 0.0
  %vm46 = vcmp.ge.f32.partialorder %v42, 0.0
  %vm47 = vcmp.ge.f32.partialorder %v43, 0.0
  %v48 = vmul.f32 %v40, 0.2
  %v49 = vmul.f32 %v41, 0.2
  %v50 = vmul.f32 %v42, 0.2
  %v51 = vmul.f32 %v43, 0.2
  %v52 = vsel %vm44, %v40, %v48
  %v53 = vsel %vm45, %v41, %v49
  %v54 = vsel %vm46, %v42, %v50
  %v55 = vsel %vm47, %v43, %v51
  %v56 = vpack.c.bf16 %v53, %v52
  %v57 = vpack.c.bf16 %v55, %v54
  %v60 = vunpack.c.l.b16 %v56
  %v61 = vunpack.c.h.b16 %v56
  %v62 = vunpack.c.l.b16 %v57
  %v63 = vunpack.c.h.b16 %v57
  %v64 = vpack.c.b16 %v60, %v60
  %v65 = vpack.c.b16 %v61, %v61
  %v66 = vpack.c.b16 %v62, %v62
  %v67 = vpack.c.b16 %v63, %v63
  %72 = vst [vmem:[%s3] sm:$0xf] %v64
  %73 = vst [vmem:[%s3 + $0x4] sm:$0xf] %v65
  %74 = vst [vmem:[%s3 + $0x8] sm:$0xf] %v66
  %75 = vst [vmem:[%s3 + $0xc] sm:$0xf] %v67
  // Predicated region
  $region14: #{nlayer_discriminator_forward.20} parent=0 // pred_check
    _
  $region15: #{nlayer_discriminator_forward.20} parent=0 // pred_check_branch
    %77 = sbr.rel (0) target = $region17
  $region16: #{nlayer_discriminator_forward.20} parent=0 // pred_region
    _
  $region17: #{nlayer_discriminator_forward.20} parent=0 // pred_fallthru
    _
  // Predicated region
  $region18: #{nlayer_discriminator_forward.20} parent=0 // pred_check
    _
  $region19: #{nlayer_discriminator_forward.20} parent=0 // pred_check_branch
    %79 = sbr.rel (0) target = $region21
  $region20: #{nlayer_discriminator_forward.20} parent=0 // pred_region
    _
  $region21: #{nlayer_discriminator_forward.20} parent=0 // pred_fallthru
    _

// kernel: nlayer_discriminator_forward.21
$region0: #{nlayer_discriminator_forward.21}
  #allocation0 [shape = 'u32[]', space=smem, size = 0x4, offset = 0x4, fixed_abs, tag = 'smem constant byte address 0x4 - core index']
  #allocation1 [shape = 'u32[144,128]{1,0:T(1,128)}', space=vmem, size = 0x12000, scoped, tag = 'internal scratch']
  %s0 = inlined_call_operand.vmem [shape: bf16[50,1024], index: 0, kind: input, shape index: {}]
  %s1 = inlined_call_operand.vmem [shape: bf16[1024,128], index: 1, kind: input, shape index: {}]
  %s2 = inlined_call_operand.vmem [shape: f32[1,128], index: 2, kind: input, shape index: {}]
  %s3 = inlined_call_operand.vmem [shape: f32[50,128], index: 3, kind: output, shape index: {}]
  %s4 = sld [smem:[#allocation0]]
  $region93: #{nlayer_discriminator_forward.21} parent=0
    _
  %s6 = ssub.s32 1, %s4
  %s7 = scalar_select 0, %s6, %s4
  $region1: #{nlayer_discriminator_forward.21} parent=0
    #allocation2 [shape = 'u8[49152]{0}', space=vmem, size = 0xc000, scoped, tag = 'output window, operand 0']
    loop: start=0, step=1, limit=4
    $region2: #{nlayer_discriminator_forward.21} parent=1 // loop_pre_header
      _
    $region3: #{nlayer_discriminator_forward.21} parent=1 // loop_header
      %s9 = sphi 0, %s13
      %p10 = scmp.ge.s32.totalorder %s9, 4
      %s16 = sphi 0, %s28
      %s17 = sphi 0, %s24
      %s18 = sphi 0, %s16
      %s19 = sphi 0, %s17
      %s20 = sphi 0, %s18
      %s21 = sphi 0, %s19
      %s31 = sphi 0, %s33
      %s34 = sphi 0, %s31
      %s35 = sphi 0, %s34
      %s51 = sphi 0, %s35
      %s57 = sphi 0, %s59
      %s60 = sphi 0, %s57
      %s61 = sphi 0, %s60
      %s77 = sphi 0, %s61
      %s83 = sphi 0, %s85
      %s86 = sphi 0, %s83
      %s87 = sphi 0, %s86
      %s103 = sphi 0, %s87
      %s111 = sphi 0, %s113
      %s114 = sphi 0, %s111
      %s115 = sphi 0, %s114
      %s131 = sphi 0, %s115
    $region4: #{nlayer_discriminator_forward.21} parent=1 // loop_header_branch
      %12 = sbr.rel (%p10) target = $region8
    $region5: #{nlayer_discriminator_forward.21} parent=1 // loop_body
      %s14 = ssub.s32 %s9, 1
      %s15 = ssub.s32 %s9, 2
      %s22 = sadd.s32 1, %s17
      %p23 = scmp.ge.s32.totalorder %s22, 1
      %s24 = scalar_select %p23, 0, %s22
      %s25 = sadd.s32 1, %s16
      %s26 = scalar_select %p23, %s25, %s16
      %p27 = scmp.ge.s32.totalorder %s26, 2
      %s28 = scalar_select %p27, 0, %s26
      %s29 = ssub.s32 %s16, %s28
      %p30 = scmp.eq.s32.totalorder %s29, 0
      %s32 = sadd.s32 %s31, 1
      %s33 = scalar_select %p30, %s31, %s32
      %p36 = pneg %p30
      %p37 = scmp.eq.s32.totalorder %s9, 1
      %p38 = por %p36, %p37
      %p39 = scmp.ne.s32.totalorder %s31, %s34
      %p40 = scmp.eq.s32.totalorder %s9, 0
      %p41 = por %p39, %p40
      %p42 = scmp.ne.s32.totalorder %s31, %s34
      %p43 = scmp.eq.s32.totalorder %s14, 1
      %p44 = por %p42, %p43
      %p45 = scmp.ne.s32.totalorder %s34, %s35
      %p46 = scmp.eq.s32.totalorder %s14, 0
      %p47 = por %p45, %p46
      %p48 = scmp.ne.s32.totalorder %s34, %s35
      %p49 = scmp.eq.s32.totalorder %s15, 1
      %p50 = por %p48, %p49
      %p52 = scmp.ne.s32.totalorder %s35, %s51
      %p53 = scmp.eq.s32.totalorder %s15, 0
      %p54 = por %p52, %p53
      %s55 = ssub.s32 %s17, %s24
      %p56 = scmp.eq.s32.totalorder %s55, 0
      %s58 = sadd.s32 %s57, 1
      %s59 = scalar_select %p56, %s57, %s58
      %p62 = pneg %p56
      %p63 = scmp.eq.s32.totalorder %s9, 1
      %p64 = por %p62, %p63
      %p65 = scmp.ne.s32.totalorder %s57, %s60
      %p66 = scmp.eq.s32.totalorder %s9, 0
      %p67 = por %p65, %p66
      %p68 = scmp.ne.s32.totalorder %s57, %s60
      %p69 = scmp.eq.s32.totalorder %s14, 1
      %p70 = por %p68, %p69
      %p71 = scmp.ne.s32.totalorder %s60, %s61
      %p72 = scmp.eq.s32.totalorder %s14, 0
      %p73 = por %p71, %p72
      %p74 = scmp.ne.s32.totalorder %s60, %s61
      %p75 = scmp.eq.s32.totalorder %s15, 1
      %p76 = por %p74, %p75
      %p78 = scmp.ne.s32.totalorder %s61, %s77
      %p79 = scmp.eq.s32.totalorder %s15, 0
      %p80 = por %p78, %p79
      %s81 = ssub.s32 %s17, %s24
      %p82 = scmp.eq.s32.totalorder %s81, 0
      %s84 = sadd.s32 %s83, 1
      %s85 = scalar_select %p82, %s83, %s84
      %p88 = pneg %p82
      %p89 = scmp.eq.s32.totalorder %s9, 1
      %p90 = por %p88, %p89
      %p91 = scmp.ne.s32.totalorder %s83, %s86
      %p92 = scmp.eq.s32.totalorder %s9, 0
      %p93 = por %p91, %p92
      %p94 = scmp.ne.s32.totalorder %s83, %s86
      %p95 = scmp.eq.s32.totalorder %s14, 1
      %p96 = por %p94, %p95
      %p97 = scmp.ne.s32.totalorder %s86, %s87
      %p98 = scmp.eq.s32.totalorder %s14, 0
      %p99 = por %p97, %p98
      %p100 = scmp.ne.s32.totalorder %s86, %s87
      %p101 = scmp.eq.s32.totalorder %s15, 1
      %p102 = por %p100, %p101
      %p104 = scmp.ne.s32.totalorder %s87, %s103
      %p105 = scmp.eq.s32.totalorder %s15, 0
      %p106 = por %p104, %p105
      %s107 = ssub.s32 %s16, %s28
      %s108 = ssub.s32 %s17, %s24
      %s109 = sor.u32 %s107, %s108
      %p110 = scmp.eq.s32.totalorder %s109, 0
      %s112 = sadd.s32 %s111, 1
      %s113 = scalar_select %p110, %s111, %s112
      %p116 = pneg %p110
      %p117 = scmp.eq.s32.totalorder %s9, 1
      %p118 = por %p116, %p117
      %p119 = scmp.ne.s32.totalorder %s111, %s114
      %p120 = scmp.eq.s32.totalorder %s9, 0
      %p121 = por %p119, %p120
      %p122 = scmp.ne.s32.totalorder %s111, %s114
      %p123 = scmp.eq.s32.totalorder %s14, 1
      %p124 = por %p122, %p123
      %p125 = scmp.ne.s32.totalorder %s114, %s115
      %p126 = scmp.eq.s32.totalorder %s14, 0
      %p127 = por %p125, %p126
      %p128 = scmp.ne.s32.totalorder %s114, %s115
      %p129 = scmp.eq.s32.totalorder %s15, 1
      %p130 = por %p128, %p129
      %p132 = scmp.ne.s32.totalorder %s115, %s131
      %p133 = scmp.eq.s32.totalorder %s15, 0
      %p134 = por %p132, %p133
      %p135 = scmp.le.s32.totalorder 1, %s9
      %p136 = scmp.lt.s32.totalorder %s9, 3
      %p137 = pnand %p135, %p136
      %p138 = pneg %p137
      // Predicated region
      $region9: #{nlayer_discriminator_forward.21} parent=5 // pred_check
        _
      $region10: #{nlayer_discriminator_forward.21} parent=5 // pred_check_branch
        %140 = sbr.rel (%p137) target = $region12
      $region11: #{nlayer_discriminator_forward.21} parent=5 // pred_region
        %s141 = ssub.s32 %s9, 1
        // Predicated region
        $region13: #{nlayer_discriminator_forward.21} parent=11 // pred_check
          %p142 = pneg %p73
        $region14: #{nlayer_discriminator_forward.21} parent=11 // pred_check_branch
          %144 = sbr.rel (%p142) target = $region16
        $region15: #{nlayer_discriminator_forward.21} parent=11 // pred_region
          %p145 = scmp.lt.s32.totalorder %s19, 0
          %s146 = scalar_select %p145, %s19, 0
          %s147 = smul.addr %s146, 4
          %s148 = scalar_lea.vmem %s1, %s147
        $region16: #{nlayer_discriminator_forward.21} parent=11 // pred_fallthru
          _
        // Predicated region
        $region17: #{nlayer_discriminator_forward.21} parent=11 // pred_check
          %p149 = pneg %p99
        $region18: #{nlayer_discriminator_forward.21} parent=11 // pred_check_branch
          %151 = sbr.rel (%p149) target = $region20
        $region19: #{nlayer_discriminator_forward.21} parent=11 // pred_region
          %p152 = scmp.lt.s32.totalorder %s19, 0
          %s153 = scalar_select %p152, %s19, 0
          %s154 = scalar_lea.vmem %s2, %s153
        $region20: #{nlayer_discriminator_forward.21} parent=11 // pred_fallthru
          _
      $region12: #{nlayer_discriminator_forward.21} parent=5 // pred_fallthru
        _
      %p155 = scmp.lt.s32.totalorder %s9, 2
      // Predicated region
      $region21: #{nlayer_discriminator_forward.21} parent=5 // pred_check
        %p156 = pneg %p155
      $region22: #{nlayer_discriminator_forward.21} parent=5 // pred_check_branch
        %158 = sbr.rel (%p156) target = $region24
      $region23: #{nlayer_discriminator_forward.21} parent=5 // pred_region
        // Predicated region
        $region25: #{nlayer_discriminator_forward.21} parent=23 // pred_check
          %p159 = pneg %p41
        $region26: #{nlayer_discriminator_forward.21} parent=23 // pred_check_branch
          %161 = sbr.rel (%p159) target = $region28
        $region27: #{nlayer_discriminator_forward.21} parent=23 // pred_region
          %s162 = smul.u32 6, %s16
          %s163 = ssub.s32 7, %s162
          %p164 = scmp.lt.s32.totalorder %s163, 6
          %s165 = scalar_select %p164, %s163, 6
          %s166 = smul.u32 64, %s165
          %s167 = smul.u32 %s166, 8
          %p168 = scmp.lt.s32.totalorder %s162, 6
          %s169 = scalar_select %p168, %s162, 6
          %s170 = smul.addr %s169, 8
          %s171 = smul.addr %s170, 4
          %s172 = scalar_lea.vmem %s0, %s171
          %s173 = smul.u32 6, %s16
          %s174 = ssub.s32 7, %s173
          %p175 = scmp.lt.s32.totalorder %s174, 6
          %s176 = scalar_select %p175, %s174, 6
          %s177 = smul.u32 64, %s176
          %s178 = smul.u32 %s177, 8
        $region28: #{nlayer_discriminator_forward.21} parent=23 // pred_fallthru
          _
      $region24: #{nlayer_discriminator_forward.21} parent=5 // pred_fallthru
        _
      %p179 = scmp.le.s32.totalorder 1, %s9
      %p180 = scmp.lt.s32.totalorder %s9, 3
      %p181 = pnand %p179, %p180
      %p182 = pneg %p181
      // Predicated region
      $region29: #{nlayer_discriminator_forward.21} parent=5 // pred_check
        _
      $region30: #{nlayer_discriminator_forward.21} parent=5 // pred_check_branch
        %184 = sbr.rel (%p181) target = $region32
      $region31: #{nlayer_discriminator_forward.21} parent=5 // pred_region
        %s185 = ssub.s32 %s9, 1
        %s186 = smul.u32 6, %s18
        %s187 = ssub.s32 7, %s186
        %p188 = scmp.lt.s32.totalorder %s187, 6
        %s189 = scalar_select %p188, %s187, 6
        %s190 = smul.u32 64, %s189
        %s191 = smul.u32 %s190, 8
        %p192 = scmp.lt.s32.totalorder %s186, 6
        %s193 = scalar_select %p192, %s186, 6
        %s194 = smul.addr %s193, 8
        %s195 = smul.addr %s194, 4
        %s196 = scalar_lea.vmem %s0, %s195
        %p197 = pneg %p47
        %p198 = pneg %p44
        %p199 = scmp.lt.s32.totalorder %s19, 0
        %s200 = scalar_select %p199, %s19, 0
        %s201 = smul.addr %s200, 4
        %s202 = scalar_lea.vmem %s1, %s201
        %p203 = pneg %p73
        %p204 = pneg %p70
        %p205 = scmp.lt.s32.totalorder %s19, 0
        %s206 = scalar_select %p205, %s19, 0
        %s207 = scalar_lea.vmem %s2, %s206
        %p208 = pneg %p99
        %p209 = pneg %p96
        %p210 = pneg %p127
        %p211 = pneg %p124
        %s212 = sand.u32 %s114, 1
        %s213 = sand.u32 %s114, 1
        %s214 = smul.addr %s213, 48
        %s215 = scalar_lea.vmem [#allocation2], %s214
        %s216 = smul.u32 6, %s18
        %s217 = ssub.s32 7, %s216
        %p218 = scmp.lt.s32.totalorder %s217, 6
        %s219 = scalar_select %p218, %s217, 6
        %s220 = smul.u32 64, %s219
        %s221 = smul.u32 %s220, 8
        %p222 = scmp.lt.s32.totalorder %s216, 6
        %s223 = scalar_select %p222, %s216, 6
        %s224 = smul.addr %s223, 8
        %s225 = smul.addr %s224, 4
        %s226 = scalar_lea.vmem %s0, %s225
        %s227 = smul.u32 6, %s18
        %s228 = ssub.s32 7, %s227
        %p229 = scmp.lt.s32.totalorder %s228, 6
        %s230 = scalar_select %p229, %s228, 6
        %s231 = smul.u32 64, %s230
        %s232 = smul.u32 %s231, 8
        %p233 = scmp.lt.s32.totalorder %s19, 0
        %s234 = scalar_select %p233, %s19, 0
        %s235 = smul.addr %s234, 4
        %s236 = scalar_lea.vmem %s1, %s235
        %p237 = scmp.lt.s32.totalorder %s19, 0
        %s238 = scalar_select %p237, %s19, 0
        %s239 = scalar_lea.vmem %s2, %s238
        %s240 = smul.u32 6, %s18
        %s241 = ssub.s32 7, %s240
        %p242 = scmp.lt.s32.totalorder %s241, 6
        %s243 = scalar_select %p242, %s241, 6
        %s244 = smul.u32 128, %s243
        %v246 = vld [vmem:[%s226] sm:$0xff]
        %v247 = vld [vmem:[%s226 + $0x8] sm:$0xff]
        %v248 = vld [vmem:[%s226 + $0x10] sm:$0xff]
        %v249 = vld [vmem:[%s226 + $0x18] sm:$0xff]
        %v250 = vld [vmem:[%s226 + $0x20] sm:$0xff]
        %v251 = vld [vmem:[%s226 + $0x28] sm:$0xff]
        %v252 = vld [vmem:[%s226 + $0x30] sm:$0xff]
        %v253 = vld [vmem:[%s226 + $0x38] sm:$0xff]
        %v254 = vld [vmem:[%s226 + $0x40] sm:$0xff]
        %v255 = vld [vmem:[%s226 + $0x48] sm:$0xff]
        %v256 = vld [vmem:[%s226 + $0x50] sm:$0xff]
        %v257 = vld [vmem:[%s226 + $0x58] sm:$0xff]
        %v258 = vld [vmem:[%s226 + $0x60] sm:$0xff]
        %v259 = vld [vmem:[%s226 + $0x68] sm:$0xff]
        %v260 = vld [vmem:[%s226 + $0x70] sm:$0xff]
        %v261 = vld [vmem:[%s226 + $0x78] sm:$0xff]
        %v262 = vld [vmem:[%s226 + $0x80] sm:$0xff]
        %v263 = vld [vmem:[%s226 + $0x88] sm:$0xff]
        %v264 = vld [vmem:[%s226 + $0x90] sm:$0xff]
        %v265 = vld [vmem:[%s226 + $0x98] sm:$0xff]
        %v266 = vld [vmem:[%s226 + $0xa0] sm:$0xff]
        %v267 = vld [vmem:[%s226 + $0xa8] sm:$0xff]
        %v268 = vld [vmem:[%s226 + $0xb0] sm:$0xff]
        %v269 = vld [vmem:[%s226 + $0xb8] sm:$0xff]
        %v270 = vld [vmem:[%s236] sm:$0xf]
        %v271 = vld [vmem:[%s236 + $0x4] sm:$0xf]
        %v272 = vld [vmem:[%s236 + $0x8] sm:$0xf]
        %v273 = vld [vmem:[%s236 + $0xc] sm:$0xf]
        %v274 = vld [vmem:[%s236 + $0x10] sm:$0xf]
        %v275 = vld [vmem:[%s236 + $0x14] sm:$0xf]
        %v276 = vld [vmem:[%s236 + $0x18] sm:$0xf]
        %v277 = vld [vmem:[%s236 + $0x1c] sm:$0xf]
        %v278 = vld [vmem:[%s236 + $0x20] sm:$0xf]
        %v279 = vld [vmem:[%s236 + $0x24] sm:$0xf]
        %v280 = vld [vmem:[%s236 + $0x28] sm:$0xf]
        %v281 = vld [vmem:[%s236 + $0x2c] sm:$0xf]
        %v282 = vld [vmem:[%s236 + $0x30] sm:$0xf]
        %v283 = vld [vmem:[%s236 + $0x34] sm:$0xf]
        %v284 = vld [vmem:[%s236 + $0x38] sm:$0xf]
        %v285 = vld [vmem:[%s236 + $0x3c] sm:$0xf]
        %v286 = vld [vmem:[%s236 + $0x40] sm:$0xf]
        %v287 = vld [vmem:[%s236 + $0x44] sm:$0xf]
        %v288 = vld [vmem:[%s236 + $0x48] sm:$0xf]
        %v289 = vld [vmem:[%s236 + $0x4c] sm:$0xf]
        %v290 = vld [vmem:[%s236 + $0x50] sm:$0xf]
        %v291 = vld [vmem:[%s236 + $0x54] sm:$0xf]
        %v292 = vld [vmem:[%s236 + $0x58] sm:$0xf]
        %v293 = vld [vmem:[%s236 + $0x5c] sm:$0xf]
        %v294 = vld [vmem:[%s236 + $0x60] sm:$0xf]
        %v295 = vld [vmem:[%s236 + $0x64] sm:$0xf]
        %v296 = vld [vmem:[%s236 + $0x68] sm:$0xf]
        %v297 = vld [vmem:[%s236 + $0x6c] sm:$0xf]
        %v298 = vld [vmem:[%s236 + $0x70] sm:$0xf]
        %v299 = vld [vmem:[%s236 + $0x74] sm:$0xf]
        %v300 = vld [vmem:[%s236 + $0x78] sm:$0xf]
        %v301 = vld [vmem:[%s236 + $0x7c] sm:$0xf]
        %v302 = vld [vmem:[%s236 + $0x80] sm:$0xf]
        %v303 = vld [vmem:[%s236 + $0x84] sm:$0xf]
        %v304 = vld [vmem:[%s236 + $0x88] sm:$0xf]
        %v305 = vld [vmem:[%s236 + $0x8c] sm:$0xf]
        %v306 = vld [vmem:[%s236 + $0x90] sm:$0xf]
        %v307 = vld [vmem:[%s236 + $0x94] sm:$0xf]
        %v308 = vld [vmem:[%s236 + $0x98] sm:$0xf]
        %v309 = vld [vmem:[%s236 + $0x9c] sm:$0xf]
        %v310 = vld [vmem:[%s236 + $0xa0] sm:$0xf]
        %v311 = vld [vmem:[%s236 + $0xa4] sm:$0xf]
        %v312 = vld [vmem:[%s236 + $0xa8] sm:$0xf]
        %v313 = vld [vmem:[%s236 + $0xac] sm:$0xf]
        %v314 = vld [vmem:[%s236 + $0xb0] sm:$0xf]
        %v315 = vld [vmem:[%s236 + $0xb4] sm:$0xf]
        %v316 = vld [vmem:[%s236 + $0xb8] sm:$0xf]
        %v317 = vld [vmem:[%s236 + $0xbc] sm:$0xf]
        %v318 = vld [vmem:[%s236 + $0xc0] sm:$0xf]
        %v319 = vld [vmem:[%s236 + $0xc4] sm:$0xf]
        %v320 = vld [vmem:[%s236 + $0xc8] sm:$0xf]
        %v321 = vld [vmem:[%s236 + $0xcc] sm:$0xf]
        %v322 = vld [vmem:[%s236 + $0xd0] sm:$0xf]
        %v323 = vld [vmem:[%s236 + $0xd4] sm:$0xf]
        %v324 = vld [vmem:[%s236 + $0xd8] sm:$0xf]
        %v325 = vld [vmem:[%s236 + $0xdc] sm:$0xf]
        %v326 = vld [vmem:[%s236 + $0xe0] sm:$0xf]
        %v327 = vld [vmem:[%s236 + $0xe4] sm:$0xf]
        %v328 = vld [vmem:[%s236 + $0xe8] sm:$0xf]
        %v329 = vld [vmem:[%s236 + $0xec] sm:$0xf]
        %v330 = vld [vmem:[%s236 + $0xf0] sm:$0xf]
        %v331 = vld [vmem:[%s236 + $0xf4] sm:$0xf]
        %v332 = vld [vmem:[%s236 + $0xf8] sm:$0xf]
        %v333 = vld [vmem:[%s236 + $0xfc] sm:$0xf]
        %v334 = vld [vmem:[%s236 + $0x100] sm:$0xf]
        %v335 = vld [vmem:[%s236 + $0x104] sm:$0xf]
        %v336 = vld [vmem:[%s236 + $0x108] sm:$0xf]
        %v337 = vld [vmem:[%s236 + $0x10c] sm:$0xf]
        %v338 = vld [vmem:[%s236 + $0x110] sm:$0xf]
        %v339 = vld [vmem:[%s236 + $0x114] sm:$0xf]
        %v340 = vld [vmem:[%s236 + $0x118] sm:$0xf]
        %v341 = vld [vmem:[%s236 + $0x11c] sm:$0xf]
        %v342 = vld [vmem:[%s236 + $0x120] sm:$0xf]
        %v343 = vld [vmem:[%s236 + $0x124] sm:$0xf]
        %v344 = vld [vmem:[%s236 + $0x128] sm:$0xf]
        %v345 = vld [vmem:[%s236 + $0x12c] sm:$0xf]
        %v346 = vld [vmem:[%s236 + $0x130] sm:$0xf]
        %v347 = vld [vmem:[%s236 + $0x134] sm:$0xf]
        %v348 = vld [vmem:[%s236 + $0x138] sm:$0xf]
        %v349 = vld [vmem:[%s236 + $0x13c] sm:$0xf]
        %v350 = vld [vmem:[%s236 + $0x140] sm:$0xf]
        %v351 = vld [vmem:[%s236 + $0x144] sm:$0xf]
        %v352 = vld [vmem:[%s236 + $0x148] sm:$0xf]
        %v353 = vld [vmem:[%s236 + $0x14c] sm:$0xf]
        %v354 = vld [vmem:[%s236 + $0x150] sm:$0xf]
        %v355 = vld [vmem:[%s236 + $0x154] sm:$0xf]
        %v356 = vld [vmem:[%s236 + $0x158] sm:$0xf]
        %v357 = vld [vmem:[%s236 + $0x15c] sm:$0xf]
        %v358 = vld [vmem:[%s236 + $0x160] sm:$0xf]
        %v359 = vld [vmem:[%s236 + $0x164] sm:$0xf]
        %v360 = vld [vmem:[%s236 + $0x168] sm:$0xf]
        %v361 = vld [vmem:[%s236 + $0x16c] sm:$0xf]
        %v362 = vld [vmem:[%s236 + $0x170] sm:$0xf]
        %v363 = vld [vmem:[%s236 + $0x174] sm:$0xf]
        %v364 = vld [vmem:[%s236 + $0x178] sm:$0xf]
        %v365 = vld [vmem:[%s236 + $0x17c] sm:$0xf]
        %v366 = vld [vmem:[%s236 + $0x180] sm:$0xf]
        %v367 = vld [vmem:[%s236 + $0x184] sm:$0xf]
        %v368 = vld [vmem:[%s236 + $0x188] sm:$0xf]
        %v369 = vld [vmem:[%s236 + $0x18c] sm:$0xf]
        %v370 = vld [vmem:[%s236 + $0x190] sm:$0xf]
        %v371 = vld [vmem:[%s236 + $0x194] sm:$0xf]
        %v372 = vld [vmem:[%s236 + $0x198] sm:$0xf]
        %v373 = vld [vmem:[%s236 + $0x19c] sm:$0xf]
        %v374 = vld [vmem:[%s236 + $0x1a0] sm:$0xf]
        %v375 = vld [vmem:[%s236 + $0x1a4] sm:$0xf]
        %v376 = vld [vmem:[%s236 + $0x1a8] sm:$0xf]
        %v377 = vld [vmem:[%s236 + $0x1ac] sm:$0xf]
        %v378 = vld [vmem:[%s236 + $0x1b0] sm:$0xf]
        %v379 = vld [vmem:[%s236 + $0x1b4] sm:$0xf]
        %v380 = vld [vmem:[%s236 + $0x1b8] sm:$0xf]
        %v381 = vld [vmem:[%s236 + $0x1bc] sm:$0xf]
        %v382 = vld [vmem:[%s236 + $0x1c0] sm:$0xf]
        %v383 = vld [vmem:[%s236 + $0x1c4] sm:$0xf]
        %v384 = vld [vmem:[%s236 + $0x1c8] sm:$0xf]
        %v385 = vld [vmem:[%s236 + $0x1cc] sm:$0xf]
        %v386 = vld [vmem:[%s236 + $0x1d0] sm:$0xf]
        %v387 = vld [vmem:[%s236 + $0x1d4] sm:$0xf]
        %v388 = vld [vmem:[%s236 + $0x1d8] sm:$0xf]
        %v389 = vld [vmem:[%s236 + $0x1dc] sm:$0xf]
        %v390 = vld [vmem:[%s236 + $0x1e0] sm:$0xf]
        %v391 = vld [vmem:[%s236 + $0x1e4] sm:$0xf]
        %v392 = vld [vmem:[%s236 + $0x1e8] sm:$0xf]
        %v393 = vld [vmem:[%s236 + $0x1ec] sm:$0xf]
        %v394 = vld [vmem:[%s236 + $0x1f0] sm:$0xf]
        %v395 = vld [vmem:[%s236 + $0x1f4] sm:$0xf]
        %v396 = vld [vmem:[%s236 + $0x1f8] sm:$0xf]
        %v397 = vld [vmem:[%s236 + $0x1fc] sm:$0xf]
        %v398 = vld [vmem:[%s239] sm:$0x1]
        %v400 = vlaneseq
        %v401 = vshrl.u32 %v400, 7
        %v402 = vsub.s32 0, %v401
        %v403 = vrot.slane %v398, %v402
        %v429 = vunpack.c.l.b16 %v246
        %v430 = vunpack.c.h.b16 %v246
        %v431 = vunpack.c.l.b16 %v247
        %v432 = vunpack.c.h.b16 %v247
        %v433 = vunpack.c.l.b16 %v248
        %v434 = vunpack.c.h.b16 %v248
        %v435 = vunpack.c.l.b16 %v249
        %v436 = vunpack.c.h.b16 %v249
        %v437 = vunpack.c.l.b16 %v250
        %v438 = vunpack.c.h.b16 %v250
        %v439 = vunpack.c.l.b16 %v251
        %v440 = vunpack.c.h.b16 %v251
        %v441 = vunpack.c.l.b16 %v252
        %v442 = vunpack.c.h.b16 %v252
        %v443 = vunpack.c.l.b16 %v253
        %v444 = vunpack.c.h.b16 %v253
        %v445 = vunpack.c.l.b16 %v254
        %v446 = vunpack.c.h.b16 %v254
        %v447 = vunpack.c.l.b16 %v255
        %v448 = vunpack.c.h.b16 %v255
        %v449 = vunpack.c.l.b16 %v256
        %v450 = vunpack.c.h.b16 %v256
        %v451 = vunpack.c.l.b16 %v257
        %v452 = vunpack.c.h.b16 %v257
        %v453 = vunpack.c.l.b16 %v258
        %v454 = vunpack.c.h.b16 %v258
        %v455 = vunpack.c.l.b16 %v259
        %v456 = vunpack.c.h.b16 %v259
        %v457 = vunpack.c.l.b16 %v260
        %v458 = vunpack.c.h.b16 %v260
        %v459 = vunpack.c.l.b16 %v261
        %v460 = vunpack.c.h.b16 %v261
        %v461 = vunpack.c.l.b16 %v262
        %v462 = vunpack.c.h.b16 %v262
        %v463 = vunpack.c.l.b16 %v263
        %v464 = vunpack.c.h.b16 %v263
        %v465 = vunpack.c.l.b16 %v264
        %v466 = vunpack.c.h.b16 %v264
        %v467 = vunpack.c.l.b16 %v265
        %v468 = vunpack.c.h.b16 %v265
        %v469 = vunpack.c.l.b16 %v266
        %v470 = vunpack.c.h.b16 %v266
        %v471 = vunpack.c.l.b16 %v267
        %v472 = vunpack.c.h.b16 %v267
        %v473 = vunpack.c.l.b16 %v268
        %v474 = vunpack.c.h.b16 %v268
        %v475 = vunpack.c.l.b16 %v269
        %v476 = vunpack.c.h.b16 %v269
        %v477 = vpack.c.b16 %v437, %v429
        %v478 = vpack.c.b16 %v438, %v430
        %v479 = vpack.c.b16 %v439, %v431
        %v480 = vpack.c.b16 %v440, %v432
        %v481 = vpack.c.b16 %v441, %v433
        %v482 = vpack.c.b16 %v442, %v434
        %v483 = vpack.c.b16 %v443, %v435
        %v484 = vpack.c.b16 %v444, %v436
        %v485 = vpack.c.b16 %v453, %v445
        %v486 = vpack.c.b16 %v454, %v446
        %v487 = vpack.c.b16 %v455, %v447
        %v488 = vpack.c.b16 %v456, %v448
        %v489 = vpack.c.b16 %v457, %v449
        %v490 = vpack.c.b16 %v458, %v450
        %v491 = vpack.c.b16 %v459, %v451
        %v492 = vpack.c.b16 %v460, %v452
        %v493 = vpack.c.b16 %v469, %v461
        %v494 = vpack.c.b16 %v470, %v462
        %v495 = vpack.c.b16 %v471, %v463
        %v496 = vpack.c.b16 %v472, %v464
        %v497 = vpack.c.b16 %v473, %v465
        %v498 = vpack.c.b16 %v474, %v466
        %v499 = vpack.c.b16 %v475, %v467
        %v500 = vpack.c.b16 %v476, %v468
        %v653 = vunpack.c.l.b16 %v270
        %v654 = vunpack.c.l.b16 %v271
        %v655 = vunpack.c.l.b16 %v272
        %v656 = vunpack.c.l.b16 %v273
        %v657 = vunpack.c.l.b16 %v274
        %v658 = vunpack.c.l.b16 %v275
        %v659 = vunpack.c.l.b16 %v276
        %v660 = vunpack.c.l.b16 %v277
        %v661 = vunpack.c.l.b16 %v278
        %v662 = vunpack.c.l.b16 %v279
        %v663 = vunpack.c.l.b16 %v280
        %v664 = vunpack.c.l.b16 %v281
        %v665 = vunpack.c.l.b16 %v282
        %v666 = vunpack.c.l.b16 %v283
        %v667 = vunpack.c.l.b16 %v284
        %v668 = vunpack.c.l.b16 %v285
        %v669 = vunpack.c.l.b16 %v286
        %v670 = vunpack.c.l.b16 %v287
        %v671 = vunpack.c.l.b16 %v288
        %v672 = vunpack.c.l.b16 %v289
        %v673 = vunpack.c.l.b16 %v290
        %v674 = vunpack.c.l.b16 %v291
        %v675 = vunpack.c.l.b16 %v292
        %v676 = vunpack.c.l.b16 %v293
        %v677 = vunpack.c.l.b16 %v294
        %v678 = vunpack.c.l.b16 %v295
        %v679 = vunpack.c.l.b16 %v296
        %v680 = vunpack.c.l.b16 %v297
        %v681 = vunpack.c.l.b16 %v298
        %v682 = vunpack.c.l.b16 %v299
        %v683 = vunpack.c.l.b16 %v300
        %v684 = vunpack.c.l.b16 %v301
        %v685 = vunpack.c.l.b16 %v302
        %v686 = vunpack.c.l.b16 %v303
        %v687 = vunpack.c.l.b16 %v304
        %v688 = vunpack.c.l.b16 %v305
        %v689 = vunpack.c.l.b16 %v306
        %v690 = vunpack.c.l.b16 %v307
        %v691 = vunpack.c.l.b16 %v308
        %v692 = vunpack.c.l.b16 %v309
        %v693 = vunpack.c.l.b16 %v310
        %v694 = vunpack.c.l.b16 %v311
        %v695 = vunpack.c.l.b16 %v312
        %v696 = vunpack.c.l.b16 %v313
        %v697 = vunpack.c.l.b16 %v314
        %v698 = vunpack.c.l.b16 %v315
        %v699 = vunpack.c.l.b16 %v316
        %v700 = vunpack.c.l.b16 %v317
        %v701 = vunpack.c.l.b16 %v318
        %v702 = vunpack.c.l.b16 %v319
        %v703 = vunpack.c.l.b16 %v320
        %v704 = vunpack.c.l.b16 %v321
        %v705 = vunpack.c.l.b16 %v322
        %v706 = vunpack.c.l.b16 %v323
        %v707 = vunpack.c.l.b16 %v324
        %v708 = vunpack.c.l.b16 %v325
        %v709 = vunpack.c.l.b16 %v326
        %v710 = vunpack.c.l.b16 %v327
        %v711 = vunpack.c.l.b16 %v328
        %v712 = vunpack.c.l.b16 %v329
        %v713 = vunpack.c.l.b16 %v330
        %v714 = vunpack.c.l.b16 %v331
        %v715 = vunpack.c.l.b16 %v332
        %v716 = vunpack.c.l.b16 %v333
        %v717 = vunpack.c.l.b16 %v334
        %v718 = vunpack.c.l.b16 %v335
        %v719 = vunpack.c.l.b16 %v336
        %v720 = vunpack.c.l.b16 %v337
        %v721 = vunpack.c.l.b16 %v338
        %v722 = vunpack.c.l.b16 %v339
        %v723 = vunpack.c.l.b16 %v340
        %v724 = vunpack.c.l.b16 %v341
        %v725 = vunpack.c.l.b16 %v342
        %v726 = vunpack.c.l.b16 %v343
        %v727 = vunpack.c.l.b16 %v344
        %v728 = vunpack.c.l.b16 %v345
        %v729 = vunpack.c.l.b16 %v346
        %v730 = vunpack.c.l.b16 %v347
        %v731 = vunpack.c.l.b16 %v348
        %v732 = vunpack.c.l.b16 %v349
        %v733 = vunpack.c.l.b16 %v350
        %v734 = vunpack.c.l.b16 %v351
        %v735 = vunpack.c.l.b16 %v352
        %v736 = vunpack.c.l.b16 %v353
        %v737 = vunpack.c.l.b16 %v354
        %v738 = vunpack.c.l.b16 %v355
        %v739 = vunpack.c.l.b16 %v356
        %v740 = vunpack.c.l.b16 %v357
        %v741 = vunpack.c.l.b16 %v358
        %v742 = vunpack.c.l.b16 %v359
        %v743 = vunpack.c.l.b16 %v360
        %v744 = vunpack.c.l.b16 %v361
        %v745 = vunpack.c.l.b16 %v362
        %v746 = vunpack.c.l.b16 %v363
        %v747 = vunpack.c.l.b16 %v364
        %v748 = vunpack.c.l.b16 %v365
        %v749 = vunpack.c.l.b16 %v366
        %v750 = vunpack.c.l.b16 %v367
        %v751 = vunpack.c.l.b16 %v368
        %v752 = vunpack.c.l.b16 %v369
        %v753 = vunpack.c.l.b16 %v370
        %v754 = vunpack.c.l.b16 %v371
        %v755 = vunpack.c.l.b16 %v372
        %v756 = vunpack.c.l.b16 %v373
        %v757 = vunpack.c.l.b16 %v374
        %v758 = vunpack.c.l.b16 %v375
        %v759 = vunpack.c.l.b16 %v376
        %v760 = vunpack.c.l.b16 %v377
        %v761 = vunpack.c.l.b16 %v378
        %v762 = vunpack.c.l.b16 %v379
        %v763 = vunpack.c.l.b16 %v380
        %v764 = vunpack.c.l.b16 %v381
        %v765 = vunpack.c.l.b16 %v382
        %v766 = vunpack.c.l.b16 %v383
        %v767 = vunpack.c.l.b16 %v384
        %v768 = vunpack.c.l.b16 %v385
        %v769 = vunpack.c.l.b16 %v386
        %v770 = vunpack.c.l.b16 %v387
        %v771 = vunpack.c.l.b16 %v388
        %v772 = vunpack.c.l.b16 %v389
        %v773 = vunpack.c.l.b16 %v390
        %v774 = vunpack.c.l.b16 %v391
        %v775 = vunpack.c.l.b16 %v392
        %v776 = vunpack.c.l.b16 %v393
        %v777 = vunpack.c.l.b16 %v394
        %v778 = vunpack.c.l.b16 %v395
        %v779 = vunpack.c.l.b16 %v396
        %v780 = vunpack.c.l.b16 %v397
        %v781 = vpack.c.b16 %v654, %v653
        %v782 = vpack.c.b16 %v656, %v655
        %v783 = vpack.c.b16 %v658, %v657
        %v784 = vpack.c.b16 %v660, %v659
        %v785 = vpack.c.b16 %v662, %v661
        %v786 = vpack.c.b16 %v664, %v663
        %v787 = vpack.c.b16 %v666, %v665
        %v788 = vpack.c.b16 %v668, %v667
        %v789 = vpack.c.b16 %v670, %v669
        %v790 = vpack.c.b16 %v672, %v671
        %v791 = vpack.c.b16 %v674, %v673
        %v792 = vpack.c.b16 %v676, %v675
        %v793 = vpack.c.b16 %v678, %v677
        %v794 = vpack.c.b16 %v680, %v679
        %v795 = vpack.c.b16 %v682, %v681
        %v796 = vpack.c.b16 %v684, %v683
        %v797 = vpack.c.b16 %v686, %v685
        %v798 = vpack.c.b16 %v688, %v687
        %v799 = vpack.c.b16 %v690, %v689
        %v800 = vpack.c.b16 %v692, %v691
        %v801 = vpack.c.b16 %v694, %v693
        %v802 = vpack.c.b16 %v696, %v695
        %v803 = vpack.c.b16 %v698, %v697
        %v804 = vpack.c.b16 %v700, %v699
        %v805 = vpack.c.b16 %v702, %v701
        %v806 = vpack.c.b16 %v704, %v703
        %v807 = vpack.c.b16 %v706, %v705
        %v808 = vpack.c.b16 %v708, %v707
        %v809 = vpack.c.b16 %v710, %v709
        %v810 = vpack.c.b16 %v712, %v711
        %v811 = vpack.c.b16 %v714, %v713
        %v812 = vpack.c.b16 %v716, %v715
        %v813 = vpack.c.b16 %v718, %v717
        %v814 = vpack.c.b16 %v720, %v719
        %v815 = vpack.c.b16 %v722, %v721
        %v816 = vpack.c.b16 %v724, %v723
        %v817 = vpack.c.b16 %v726, %v725
        %v818 = vpack.c.b16 %v728, %v727
        %v819 = vpack.c.b16 %v730, %v729
        %v820 = vpack.c.b16 %v732, %v731
        %v821 = vpack.c.b16 %v734, %v733
        %v822 = vpack.c.b16 %v736, %v735
        %v823 = vpack.c.b16 %v738, %v737
        %v824 = vpack.c.b16 %v740, %v739
        %v825 = vpack.c.b16 %v742, %v741
        %v826 = vpack.c.b16 %v744, %v743
        %v827 = vpack.c.b16 %v746, %v745
        %v828 = vpack.c.b16 %v748, %v747
        %v829 = vpack.c.b16 %v750, %v749
        %v830 = vpack.c.b16 %v752, %v751
        %v831 = vpack.c.b16 %v754, %v753
        %v832 = vpack.c.b16 %v756, %v755
        %v833 = vpack.c.b16 %v758, %v757
        %v834 = vpack.c.b16 %v760, %v759
        %v835 = vpack.c.b16 %v762, %v761
        %v836 = vpack.c.b16 %v764, %v763
        %v837 = vpack.c.b16 %v766, %v765
        %v838 = vpack.c.b16 %v768, %v767
        %v839 = vpack.c.b16 %v770, %v769
        %v840 = vpack.c.b16 %v772, %v771
        %v841 = vpack.c.b16 %v774, %v773
        %v842 = vpack.c.b16 %v776, %v775
        %v843 = vpack.c.b16 %v778, %v777
        %v844 = vpack.c.b16 %v780, %v779
        %909 = vmatprep.subr.bf16.mxu0 0
        %910 = vmatpush1.bf16.msra.mxu0 %v781
        %911 = vmatprep.subr.bf16.mxu0 0
        %912 = vmatpush1.bf16.msra.mxu0 %v782
        %913 = vmatprep.subr.bf16.mxu0 0
        %914 = vmatpush1.bf16.msra.mxu0 %v783
        %915 = vmatprep.subr.bf16.mxu0 0
        %916 = vmatpush1.bf16.msra.mxu0 %v784
        %917 = vmatprep.subr.bf16.mxu0 0
        %918 = vmatpush1.bf16.msra.mxu0 %v785
        %919 = vmatprep.subr.bf16.mxu0 0
        %920 = vmatpush1.bf16.msra.mxu0 %v786
        %921 = vmatprep.subr.bf16.mxu0 0
        %922 = vmatpush1.bf16.msra.mxu0 %v787
        %923 = vmatprep.subr.bf16.mxu0 0
        %924 = vmatpush1.bf16.msra.mxu0 %v788
        %925 = vmatprep.subr.bf16.mxu0 0
        %926 = vmatpush1.bf16.msra.mxu0 %v789
        %927 = vmatprep.subr.bf16.mxu0 0
        %928 = vmatpush1.bf16.msra.mxu0 %v790
        %929 = vmatprep.subr.bf16.mxu0 0
        %930 = vmatpush1.bf16.msra.mxu0 %v791
        %931 = vmatprep.subr.bf16.mxu0 0
        %932 = vmatpush1.bf16.msra.mxu0 %v792
        %933 = vmatprep.subr.bf16.mxu0 0
        %934 = vmatpush1.bf16.msra.mxu0 %v793
        %935 = vmatprep.subr.bf16.mxu0 0
        %936 = vmatpush1.bf16.msra.mxu0 %v794
        %937 = vmatprep.subr.bf16.mxu0 0
        %938 = vmatpush1.bf16.msra.mxu0 %v795
        %939 = vmatprep.subr.bf16.mxu0 0
        %940 = vmatpush1.bf16.msra.mxu0 %v796
        %941 = vmatprep.mubr.bf16.mxu0 %v478
        %942 = vmatmul.mubr.bf16.gmra.mrb[0].mxu0 %v477
        %v943 = vpop.f32.mrb[0].mxu0
        %v944 = vadd.f32 %v403, %v943
        %v945 = vpop.f32.mrb[0].mxu0
        %v946 = vpop.f32.mrb[0].mxu0
        %v947 = vadd.f32 %v403, %v946
        %v948 = vpop.f32.mrb[0].mxu0
        %949 = vmatprep.mubr.bf16.mxu0 %v486
        %950 = vmatmul.mubr.bf16.gmra.mrb[0].mxu0 %v485
        %v951 = vpop.f32.mrb[0].mxu0
        %v952 = vadd.f32 %v403, %v951
        %v953 = vpop.f32.mrb[0].mxu0
        %v954 = vpop.f32.mrb[0].mxu0
        %v955 = vadd.f32 %v403, %v954
        %v956 = vpop.f32.mrb[0].mxu0
        %957 = vmatprep.mubr.bf16.mxu0 %v494
        %958 = vmatmul.mubr.bf16.gmra.mrb[0].mxu0 %v493
        %v959 = vpop.f32.mrb[0].mxu0
        %v960 = vadd.f32 %v403, %v959
        %v961 = vpop.f32.mrb[0].mxu0
        %v962 = vpop.f32.mrb[0].mxu0
        %v963 = vadd.f32 %v403, %v962
        %v964 = vpop.f32.mrb[0].mxu0
        %965 = vdwg.mxu0
        %966 = vmatprep.subr.bf16.mxu0 0
        %967 = vmatpush1.bf16.msra.mxu0 %v797
        %968 = vmatprep.subr.bf16.mxu0 0
        %969 = vmatpush1.bf16.msra.mxu0 %v798
        %970 = vmatprep.subr.bf16.mxu0 0
        %971 = vmatpush1.bf16.msra.mxu0 %v799
        %972 = vmatprep.subr.bf16.mxu0 0
        %973 = vmatpush1.bf16.msra.mxu0 %v800
        %974 = vmatprep.subr.bf16.mxu0 0
        %975 = vmatpush1.bf16.msra.mxu0 %v801
        %976 = vmatprep.subr.bf16.mxu0 0
        %977 = vmatpush1.bf16.msra.mxu0 %v802
        %978 = vmatprep.subr.bf16.mxu0 0
        %979 = vmatpush1.bf16.msra.mxu0 %v803
        %980 = vmatprep.subr.bf16.mxu0 0
        %981 = vmatpush1.bf16.msra.mxu0 %v804
        %982 = vmatprep.subr.bf16.mxu0 0
        %983 = vmatpush1.bf16.msra.mxu0 %v805
        %984 = vmatprep.subr.bf16.mxu0 0
        %985 = vmatpush1.bf16.msra.mxu0 %v806
        %986 = vmatprep.subr.bf16.mxu0 0
        %987 = vmatpush1.bf16.msra.mxu0 %v807
        %988 = vmatprep.subr.bf16.mxu0 0
        %989 = vmatpush1.bf16.msra.mxu0 %v808
        %990 = vmatprep.subr.bf16.mxu0 0
        %991 = vmatpush1.bf16.msra.mxu0 %v809
        %992 = vmatprep.subr.bf16.mxu0 0
        %993 = vmatpush1.bf16.msra.mxu0 %v810
        %994 = vmatprep.subr.bf16.mxu0 0
        %995 = vmatpush1.bf16.msra.mxu0 %v811
        %996 = vmatprep.subr.bf16.mxu0 0
        %997 = vmatpush1.bf16.msra.mxu0 %v812
        %998 = vmatprep.mubr.bf16.mxu0 %v480
        %999 = vmatmul.mubr.bf16.gmra.mrb[0].mxu0 %v479
        %v1000 = vpop.f32.mrb[0].mxu0
        %v1001 = vadd.f32 %v944, %v1000
        %v1002 = vpop.f32.mrb[0].mxu0
        %v1003 = vpop.f32.mrb[0].mxu0
        %v1004 = vadd.f32 %v947, %v1003
        %v1005 = vpop.f32.mrb[0].mxu0
        %1006 = vmatprep.mubr.bf16.mxu0 %v488
        %1007 = vmatmul.mubr.bf16.gmra.mrb[0].mxu0 %v487
        %v1008 = vpop.f32.mrb[0].mxu0
        %v1009 = vadd.f32 %v952, %v1008
        %v1010 = vpop.f32.mrb[0].mxu0
        %v1011 = vpop.f32.mrb[0].mxu0
        %v1012 = vadd.f32 %v955, %v1011
        %v1013 = vpop.f32.mrb[0].mxu0
        %1014 = vmatprep.mubr.bf16.mxu0 %v496
        %1015 = vmatmul.mubr.bf16.gmra.mrb[0].mxu0 %v495
        %v1016 = vpop.f32.mrb[0].mxu0
        %v1017 = vadd.f32 %v960, %v1016
        %v1018 = vpop.f32.mrb[0].mxu0
        %v1019 = vpop.f32.mrb[0].mxu0
        %v1020 = vadd.f32 %v963, %v1019
        %v1021 = vpop.f32.mrb[0].mxu0
        %1022 = vdwg.mxu0
        %1023 = vmatprep.subr.bf16.mxu0 0
        %1024 = vmatpush1.bf16.msra.mxu0 %v813
        %1025 = vmatprep.subr.bf16.mxu0 0
        %1026 = vmatpush1.bf16.msra.mxu0 %v814
        %1027 = vmatprep.subr.bf16.mxu0 0
        %1028 = vmatpush1.bf16.msra.mxu0 %v815
        %1029 = vmatprep.subr.bf16.mxu0 0
        %1030 = vmatpush1.bf16.msra.mxu0 %v816
        %1031 = vmatprep.subr.bf16.mxu0 0
        %1032 = vmatpush1.bf16.msra.mxu0 %v817
        %1033 = vmatprep.subr.bf16.mxu0 0
        %1034 = vmatpush1.bf16.msra.mxu0 %v818
        %1035 = vmatprep.subr.bf16.mxu0 0
        %1036 = vmatpush1.bf16.msra.mxu0 %v819
        %1037 = vmatprep.subr.bf16.mxu0 0
        %1038 = vmatpush1.bf16.msra.mxu0 %v820
        %1039 = vmatprep.subr.bf16.mxu0 0
        %1040 = vmatpush1.bf16.msra.mxu0 %v821
        %1041 = vmatprep.subr.bf16.mxu0 0
        %1042 = vmatpush1.bf16.msra.mxu0 %v822
        %1043 = vmatprep.subr.bf16.mxu0 0
        %1044 = vmatpush1.bf16.msra.mxu0 %v823
        %1045 = vmatprep.subr.bf16.mxu0 0
        %1046 = vmatpush1.bf16.msra.mxu0 %v824
        %1047 = vmatprep.subr.bf16.mxu0 0
        %1048 = vmatpush1.bf16.msra.mxu0 %v825
        %1049 = vmatprep.subr.bf16.mxu0 0
        %1050 = vmatpush1.bf16.msra.mxu0 %v826
        %1051 = vmatprep.subr.bf16.mxu0 0
        %1052 = vmatpush1.bf16.msra.mxu0 %v827
        %1053 = vmatprep.subr.bf16.mxu0 0
        %1054 = vmatpush1.bf16.msra.mxu0 %v828
        %1055 = vmatprep.mubr.bf16.mxu0 %v482
        %1056 = vmatmul.mubr.bf16.gmra.mrb[0].mxu0 %v481
        %v1057 = vpop.f32.mrb[0].mxu0
        %v1058 = vadd.f32 %v1001, %v1057
        %v1059 = vpop.f32.mrb[0].mxu0
        %v1060 = vpop.f32.mrb[0].mxu0
        %v1061 = vadd.f32 %v1004, %v1060
        %v1062 = vpop.f32.mrb[0].mxu0
        %1063 = vmatprep.mubr.bf16.mxu0 %v490
        %1064 = vmatmul.mubr.bf16.gmra.mrb[0].mxu0 %v489
        %v1065 = vpop.f32.mrb[0].mxu0
        %v1066 = vadd.f32 %v1009, %v1065
        %v1067 = vpop.f32.mrb[0].mxu0
        %v1068 = vpop.f32.mrb[0].mxu0
        %v1069 = vadd.f32 %v1012, %v1068
        %v1070 = vpop.f32.mrb[0].mxu0
        %1071 = vmatprep.mubr.bf16.mxu0 %v498
        %1072 = vmatmul.mubr.bf16.gmra.mrb[0].mxu0 %v497
        %v1073 = vpop.f32.mrb[0].mxu0
        %v1074 = vadd.f32 %v1017, %v1073
        %v1075 = vpop.f32.mrb[0].mxu0
        %v1076 = vpop.f32.mrb[0].mxu0
        %v1077 = vadd.f32 %v1020, %v1076
        %v1078 = vpop.f32.mrb[0].mxu0
        %1079 = vdwg.mxu0
        %1080 = vmatprep.subr.bf16.mxu0 0
        %1081 = vmatpush1.bf16.msra.mxu0 %v829
        %1082 = vmatprep.subr.bf16.mxu0 0
        %1083 = vmatpush1.bf16.msra.mxu0 %v830
        %1084 = vmatprep.subr.bf16.mxu0 0
        %1085 = vmatpush1.bf16.msra.mxu0 %v831
        %1086 = vmatprep.subr.bf16.mxu0 0
        %1087 = vmatpush1.bf16.msra.mxu0 %v832
        %1088 = vmatprep.subr.bf16.mxu0 0
        %1089 = vmatpush1.bf16.msra.mxu0 %v833
        %1090 = vmatprep.subr.bf16.mxu0 0
        %1091 = vmatpush1.bf16.msra.mxu0 %v834
        %1092 = vmatprep.subr.bf16.mxu0 0
        %1093 = vmatpush1.bf16.msra.mxu0 %v835
        %1094 = vmatprep.subr.bf16.mxu0 0
        %1095 = vmatpush1.bf16.msra.mxu0 %v836
        %1096 = vmatprep.subr.bf16.mxu0 0
        %1097 = vmatpush1.bf16.msra.mxu0 %v837
        %1098 = vmatprep.subr.bf16.mxu0 0
        %1099 = vmatpush1.bf16.msra.mxu0 %v838
        %1100 = vmatprep.subr.bf16.mxu0 0
        %1101 = vmatpush1.bf16.msra.mxu0 %v839
        %1102 = vmatprep.subr.bf16.mxu0 0
        %1103 = vmatpush1.bf16.msra.mxu0 %v840
        %1104 = vmatprep.subr.bf16.mxu0 0
        %1105 = vmatpush1.bf16.msra.mxu0 %v841
        %1106 = vmatprep.subr.bf16.mxu0 0
        %1107 = vmatpush1.bf16.msra.mxu0 %v842
        %1108 = vmatprep.subr.bf16.mxu0 0
        %1109 = vmatpush1.bf16.msra.mxu0 %v843
        %1110 = vmatprep.subr.bf16.mxu0 0
        %1111 = vmatpush1.bf16.msra.mxu0 %v844
        %1112 = vmatprep.mubr.bf16.mxu0 %v484
        %1113 = vmatmul.mubr.bf16.gmra.mrb[0].mxu0 %v483
        %v1114 = vpop.f32.mrb[0].mxu0
        %v1115 = vadd.f32 %v1058, %v1114
        %v1116 = vpop.f32.mrb[0].mxu0
        %v1117 = vpop.f32.mrb[0].mxu0
        %v1118 = vadd.f32 %v1061, %v1117
        %v1119 = vpop.f32.mrb[0].mxu0
        %1120 = vmatprep.mubr.bf16.mxu0 %v492
        %1121 = vmatmul.mubr.bf16.gmra.mrb[0].mxu0 %v491
        %v1122 = vpop.f32.mrb[0].mxu0
        %v1123 = vadd.f32 %v1066, %v1122
        %v1124 = vpop.f32.mrb[0].mxu0
        %v1125 = vpop.f32.mrb[0].mxu0
        %v1126 = vadd.f32 %v1069, %v1125
        %v1127 = vpop.f32.mrb[0].mxu0
        %1128 = vmatprep.mubr.bf16.mxu0 %v500
        %1129 = vmatmul.mubr.bf16.gmra.mrb[0].mxu0 %v499
        %v1130 = vpop.f32.mrb[0].mxu0
        %v1131 = vadd.f32 %v1074, %v1130
        %v1132 = vpop.f32.mrb[0].mxu0
        %v1133 = vpop.f32.mrb[0].mxu0
        %v1134 = vadd.f32 %v1077, %v1133
        %v1135 = vpop.f32.mrb[0].mxu0
        %1136 = vdwg.mxu0
        %1137 = vst [vmem:[%s215] sm:$0xff] %v1115
        %1138 = vst [vmem:[%s215 + $0x8] sm:$0xff] %v1118
        %1139 = vst [vmem:[%s215 + $0x10] sm:$0xff] %v1123
        %1140 = vst [vmem:[%s215 + $0x18] sm:$0xff] %v1126
        %1141 = vst [vmem:[%s215 + $0x20] sm:$0xff] %v1131
        %1142 = vst [vmem:[%s215 + $0x28] sm:$0xff] %v1134
        %s1143 = sand.u32 %s114, 1
        %s1144 = sand.u32 %s114, 1
        %s1145 = smul.addr %s1144, 48
        %s1146 = scalar_lea.vmem [#allocation2], %s1145
        // Predicated region
        $region33: #{nlayer_discriminator_forward.21} parent=31 // pred_check
          %p1147 = pneg %p124
        $region34: #{nlayer_discriminator_forward.21} parent=31 // pred_check_branch
          %1149 = sbr.rel (%p1147) target = $region36
        $region35: #{nlayer_discriminator_forward.21} parent=31 // pred_region
          %s1150 = smul.u32 6, %s18
          %s1151 = ssub.s32 7, %s1150
          %p1152 = scmp.lt.s32.totalorder %s1151, 6
          %s1153 = scalar_select %p1152, %s1151, 6
          %s1154 = smul.u32 128, %s1153
          %p1155 = scmp.ne.s32.totalorder 0, %s1154
          %s1156 = sadd.s32 %s19, %s1150
          %s1157 = smul.addr %s1156, 8
          %s1158 = scalar_lea.vmem %s3, %s1157
          // Predicated region
          $region37: #{nlayer_discriminator_forward.21} parent=35 // pred_check
            %p1159 = pneg %p1155
          $region38: #{nlayer_discriminator_forward.21} parent=35 // pred_check_branch
            %1161 = sbr.rel (%p1159) target = $region40
          $region39: #{nlayer_discriminator_forward.21} parent=35 // pred_region
            // Predicated region
            $region41: #{nlayer_discriminator_forward.21} parent=39 // pred_check
              _
            $region42: #{nlayer_discriminator_forward.21} parent=39 // pred_check_branch
              %1163 = sbr.rel (0) target = $region44
            $region43: #{nlayer_discriminator_forward.21} parent=39 // pred_region
              // Predicated region
              $region63: #{nlayer_discriminator_forward.21} parent=43 // pred_check
                _
              $region64: #{nlayer_discriminator_forward.21} parent=43 // pred_check_branch
                %1223 = sbr.rel (0) target = $region66
              $region65: #{nlayer_discriminator_forward.21} parent=43 // pred_region
                %s1224 = sdiv.u32.pop %s1153, 6
                %s1225 = srem.u32.pop %s1153, 6
                // While loop
                $region67: #{nlayer_discriminator_forward.21} parent=65 // loop_pre_header
                  _
                $region68: #{nlayer_discriminator_forward.21} parent=65 // loop_header
                  %s1227 = sphi 0, %s1229
                  %p1228 = scmp.ge.s32.totalorder %s1227, %s1224
                  %s1232 = sphi 0, %s1249
                  %s1233 = sphi %s1146, %s1252
                  %s1234 = sphi %s1158, %s1253
                $region69: #{nlayer_discriminator_forward.21} parent=65 // loop_header_branch
                  %1231 = sbr.rel (%p1228) target = $region73
                $region70: #{nlayer_discriminator_forward.21} parent=65 // loop_body
                  %v1235 = vld [vmem:[%s1233] sm:$0xff]
                  %1236 = vst [vmem:[%s1234] sm:$0xff] %v1235
                  %v1237 = vld [vmem:[%s1233 + $0x8] sm:$0xff]
                  %1238 = vst [vmem:[%s1234 + $0x8] sm:$0xff] %v1237
                  %v1239 = vld [vmem:[%s1233 + $0x10] sm:$0xff]
                  %1240 = vst [vmem:[%s1234 + $0x10] sm:$0xff] %v1239
                  %v1241 = vld [vmem:[%s1233 + $0x18] sm:$0xff]
                  %1242 = vst [vmem:[%s1234 + $0x18] sm:$0xff] %v1241
                  %v1243 = vld [vmem:[%s1233 + $0x20] sm:$0xff]
                  %1244 = vst [vmem:[%s1234 + $0x20] sm:$0xff] %v1243
                  %v1245 = vld [vmem:[%s1233 + $0x28] sm:$0xff]
                  %1246 = vst [vmem:[%s1234 + $0x28] sm:$0xff] %v1245
                  %s1247 = sadd.s32 1, %s1232
                  %p1248 = scmp.ge.s32.totalorder %s1247, %s1224
                  %s1249 = scalar_select %p1248, 0, %s1247
                  %s1250 = smul.u32 %s1249, 48
                  %s1251 = smul.u32 %s1249, 48
                  %s1252 = scalar_lea.vmem %s1146, %s1250 [#allocation2]
                  %s1253 = scalar_lea.vmem %s1158, %s1251
                $region71: #{nlayer_discriminator_forward.21} parent=65 // loop_footer
                  %s1229 = sadd.s32 %s1227, 1
                $region72: #{nlayer_discriminator_forward.21} parent=65 // loop_footer_branch
                  %1226 = sbr.rel target = $region68
                $region73: #{nlayer_discriminator_forward.21} parent=65 // loop_exit
                  _
                %s1254 = sdiv.u32.pop %s1153, 6
                %s1255 = srem.u32.pop %s1153, 6
                %s1256 = smul.u32 %s1254, 6
                %s1257 = smul.u32 8, %s1256
                %s1258 = scalar_lea.vmem %s1146, %s1257 [#allocation2]
                %s1259 = smul.u32 8, %s1256
                %s1260 = scalar_lea.vmem %s1158, %s1259
                // While loop
                $region74: #{nlayer_discriminator_forward.21} parent=65 // loop_pre_header
                  _
                $region75: #{nlayer_discriminator_forward.21} parent=65 // loop_header
                  %s1262 = sphi 0, %s1264
                  %p1263 = scmp.ge.s32.totalorder %s1262, %s1255
                  %s1267 = sphi 0, %s1274
                  %s1268 = sphi %s1258, %s1277
                  %s1269 = sphi %s1260, %s1278
                $region76: #{nlayer_discriminator_forward.21} parent=65 // loop_header_branch
                  %1266 = sbr.rel (%p1263) target = $region80
                $region77: #{nlayer_discriminator_forward.21} parent=65 // loop_body
                  %v1270 = vld [vmem:[%s1268] sm:$0xff]
                  %1271 = vst [vmem:[%s1269] sm:$0xff] %v1270
                  %s1272 = sadd.s32 1, %s1267
                  %p1273 = scmp.ge.s32.totalorder %s1272, %s1255
                  %s1274 = scalar_select %p1273, 0, %s1272
                  %s1275 = smul.u32 %s1274, 8
                  %s1276 = smul.u32 %s1274, 8
                  %s1277 = scalar_lea.vmem %s1258, %s1275 [#allocation2]
                  %s1278 = scalar_lea.vmem %s1260, %s1276
                $region78: #{nlayer_discriminator_forward.21} parent=65 // loop_footer
                  %s1264 = sadd.s32 %s1262, 1
                $region79: #{nlayer_discriminator_forward.21} parent=65 // loop_footer_branch
                  %1261 = sbr.rel target = $region75
                $region80: #{nlayer_discriminator_forward.21} parent=65 // loop_exit
                  _
              $region66: #{nlayer_discriminator_forward.21} parent=43 // pred_fallthru
                _
              // Predicated region
              $region81: #{nlayer_discriminator_forward.21} parent=43 // pred_check
                _
              $region82: #{nlayer_discriminator_forward.21} parent=43 // pred_check_branch
                %1280 = sbr.rel target = $region84
              $region83: #{nlayer_discriminator_forward.21} parent=43 // pred_region
                _
              $region84: #{nlayer_discriminator_forward.21} parent=43 // pred_fallthru
                _
            $region44: #{nlayer_discriminator_forward.21} parent=39 // pred_fallthru
              _
            // Predicated region
            $region45: #{nlayer_discriminator_forward.21} parent=39 // pred_check
              _
            $region46: #{nlayer_discriminator_forward.21} parent=39 // pred_check_branch
              %1165 = sbr.rel target = $region48
            $region47: #{nlayer_discriminator_forward.21} parent=39 // pred_region
              %s1167 = sdiv.u32.pop %s1153, 6
              %s1168 = srem.u32.pop %s1153, 6
              // While loop
              $region49: #{nlayer_discriminator_forward.21} parent=47 // loop_pre_header
                _
              $region50: #{nlayer_discriminator_forward.21} parent=47 // loop_header
                %s1170 = sphi 0, %s1172
                %p1171 = scmp.ge.s32.totalorder %s1170, %s1167
                %s1175 = sphi 0, %s1192
                %s1176 = sphi %s1146, %s1195
                %s1177 = sphi %s1158, %s1196
              $region51: #{nlayer_discriminator_forward.21} parent=47 // loop_header_branch
                %1174 = sbr.rel (%p1171) target = $region55
              $region52: #{nlayer_discriminator_forward.21} parent=47 // loop_body
                %v1178 = vld [vmem:[%s1176] sm:$0xff]
                %1179 = vst [vmem:[%s1177] sm:$0xff] %v1178
                %v1180 = vld [vmem:[%s1176 + $0x8] sm:$0xff]
                %1181 = vst [vmem:[%s1177 + $0x8] sm:$0xff] %v1180
                %v1182 = vld [vmem:[%s1176 + $0x10] sm:$0xff]
                %1183 = vst [vmem:[%s1177 + $0x10] sm:$0xff] %v1182
                %v1184 = vld [vmem:[%s1176 + $0x18] sm:$0xff]
                %1185 = vst [vmem:[%s1177 + $0x18] sm:$0xff] %v1184
                %v1186 = vld [vmem:[%s1176 + $0x20] sm:$0xff]
                %1187 = vst [vmem:[%s1177 + $0x20] sm:$0xff] %v1186
                %v1188 = vld [vmem:[%s1176 + $0x28] sm:$0xff]
                %1189 = vst [vmem:[%s1177 + $0x28] sm:$0xff] %v1188
                %s1190 = sadd.s32 1, %s1175
                %p1191 = scmp.ge.s32.totalorder %s1190, %s1167
                %s1192 = scalar_select %p1191, 0, %s1190
                %s1193 = smul.u32 %s1192, 48
                %s1194 = smul.u32 %s1192, 48
                %s1195 = scalar_lea.vmem %s1146, %s1193 [#allocation2]
                %s1196 = scalar_lea.vmem %s1158, %s1194
              $region53: #{nlayer_discriminator_forward.21} parent=47 // loop_footer
                %s1172 = sadd.s32 %s1170, 1
              $region54: #{nlayer_discriminator_forward.21} parent=47 // loop_footer_branch
                %1169 = sbr.rel target = $region50
              $region55: #{nlayer_discriminator_forward.21} parent=47 // loop_exit
                _
              %s1197 = sdiv.u32.pop %s1153, 6
              %s1198 = srem.u32.pop %s1153, 6
              %s1199 = smul.u32 %s1197, 6
              %s1200 = smul.u32 8, %s1199
              %s1201 = scalar_lea.vmem %s1146, %s1200 [#allocation2]
              %s1202 = smul.u32 8, %s1199
              %s1203 = scalar_lea.vmem %s1158, %s1202
              // While loop
              $region56: #{nlayer_discriminator_forward.21} parent=47 // loop_pre_header
                _
              $region57: #{nlayer_discriminator_forward.21} parent=47 // loop_header
                %s1205 = sphi 0, %s1207
                %p1206 = scmp.ge.s32.totalorder %s1205, %s1198
                %s1210 = sphi 0, %s1217
                %s1211 = sphi %s1201, %s1220
                %s1212 = sphi %s1203, %s1221
              $region58: #{nlayer_discriminator_forward.21} parent=47 // loop_header_branch
                %1209 = sbr.rel (%p1206) target = $region62
              $region59: #{nlayer_discriminator_forward.21} parent=47 // loop_body
                %v1213 = vld [vmem:[%s1211] sm:$0xff]
                %1214 = vst [vmem:[%s1212] sm:$0xff] %v1213
                %s1215 = sadd.s32 1, %s1210
                %p1216 = scmp.ge.s32.totalorder %s1215, %s1198
                %s1217 = scalar_select %p1216, 0, %s1215
                %s1218 = smul.u32 %s1217, 8
                %s1219 = smul.u32 %s1217, 8
                %s1220 = scalar_lea.vmem %s1201, %s1218 [#allocation2]
                %s1221 = scalar_lea.vmem %s1203, %s1219
              $region60: #{nlayer_discriminator_forward.21} parent=47 // loop_footer
                %s1207 = sadd.s32 %s1205, 1
              $region61: #{nlayer_discriminator_forward.21} parent=47 // loop_footer_branch
                %1204 = sbr.rel target = $region57
              $region62: #{nlayer_discriminator_forward.21} parent=47 // loop_exit
                _
            $region48: #{nlayer_discriminator_forward.21} parent=39 // pred_fallthru
              _
          $region40: #{nlayer_discriminator_forward.21} parent=35 // pred_fallthru
            _
          %1281 = vnop
        $region36: #{nlayer_discriminator_forward.21} parent=31 // pred_fallthru
          _
      $region32: #{nlayer_discriminator_forward.21} parent=5 // pred_fallthru
        _
      %p1282 = scmp.le.s32.totalorder 2, %s9
      // Predicated region
      $region85: #{nlayer_discriminator_forward.21} parent=5 // pred_check
        %p1283 = pneg %p1282
      $region86: #{nlayer_discriminator_forward.21} parent=5 // pred_check_branch
        %1285 = sbr.rel (%p1283) target = $region88
      $region87: #{nlayer_discriminator_forward.21} parent=5 // pred_region
        %s1286 = ssub.s32 %s9, 2
        // Predicated region
        $region89: #{nlayer_discriminator_forward.21} parent=87 // pred_check
          %p1287 = pneg %p130
        $region90: #{nlayer_discriminator_forward.21} parent=87 // pred_check_branch
          %1289 = sbr.rel (%p1287) target = $region92
        $region91: #{nlayer_discriminator_forward.21} parent=87 // pred_region
          %s1290 = sand.u32 %s115, 1
          %s1291 = sand.u32 %s115, 1
          %s1292 = smul.addr %s1291, 48
          %s1293 = scalar_lea.vmem [#allocation2], %s1292
        $region92: #{nlayer_discriminator_forward.21} parent=87 // pred_fallthru
          _
      $region88: #{nlayer_discriminator_forward.21} parent=5 // pred_fallthru
        _
    $region6: #{nlayer_discriminator_forward.21} parent=1 // loop_footer
      %s13 = sadd.s32 1, %s9
    $region7: #{nlayer_discriminator_forward.21} parent=1 // loop_footer_branch
      %8 = sbr.rel target = $region3
    $region8: #{nlayer_discriminator_forward.21} parent=1 // loop_exit
      _

</llo_original>
